<compile_context>
chip_gen: v5e
topology: v5e:2x2
jax: 0.10.0
libtpu: 0.0.40
codegen_flags: <defaults>
</compile_context>

<pallas_src>
import functools

import numpy as np
import jax
import jax.numpy as jnp
from jax.experimental import pallas as pl
from jax.experimental.pallas import tpu as pltpu


# ----------------------------- Pallas kernel --------------------------------
def _lenet5_kernel(x_ref, t1_ref, b1_ref, rs1_ref, cs1_ref,
                   t2_ref, b2_ref, rs2_ref, cs2_ref,
                   wf1_ref, fb1_ref, wf2_ref, fb2_ref, wf3_ref, fb3_ref,
                   out_ref, p1_s, p2_s, *, block_b):
    f32 = jnp.float32
    dot = functools.partial(jnp.dot, preferred_element_type=f32)

    # Shared (per-step resident) small operands, loaded once.
    b1 = b1_ref[...]          # (1, 168)   conv1 bias, repeated per column
    b2 = b2_ref[...]          # (1, 160)   conv2 bias, repeated per column
    fb1 = fb1_ref[...]        # (1, 120)
    fb2 = fb2_ref[...]        # (1, 84)
    fb3 = fb3_ref[...]        # (1, nc_pad)
    wf2 = wf2_ref[...]        # (120, 84)
    wf3 = wf3_ref[...]        # (84, nc_pad)

    for bi in range(block_b):
        # ---- conv1 + bias + ReLU: (32, 96) -> (28, 168), lane = co*28 + j ----
        acc1 = dot(x_ref[bi, 0:28, :], t1_ref[0])
        for dy in range(1, 5):
            acc1 = acc1 + dot(x_ref[bi, dy:dy + 28, :], t1_ref[dy])
        a1 = jnp.maximum(acc1 + b1, 0.0)                       # (28, 168)

        # ---- maxpool 2x2: (28, 168) -> (14, 84), lane = ci*14 + w ------------
        rmax1 = jnp.maximum(dot(rs1_ref[0], a1), dot(rs1_ref[1], a1))  # (14,168)
        p1 = jnp.maximum(dot(rmax1, cs1_ref[0]), dot(rmax1, cs1_ref[1]))
        p1_s[bi] = p1                                          # (14, 84)

        # ---- conv2 + bias + ReLU: (14, 84) -> (10, 160), lane = co*10 + j ----
        acc2 = dot(p1_s[bi, 0:10, :], t2_ref[0])
        for dy in range(1, 5):
            acc2 = acc2 + dot(p1_s[bi, dy:dy + 10, :], t2_ref[dy])
        a2 = jnp.maximum(acc2 + b2, 0.0)                       # (10, 160)

        # ---- maxpool 2x2: (10, 160) -> (5, 80), lane = co*5 + w --------------
        rmax2 = jnp.maximum(dot(rs2_ref[0], a2), dot(rs2_ref[1], a2))  # (5,160)
        p2 = jnp.maximum(dot(rmax2, cs2_ref[0]), dot(rmax2, cs2_ref[1]))
        p2_s[bi] = p2                                          # (5, 80)

        # ---- fc1 (400 -> 120) + ReLU: 5 row-matmuls against permuted weight --
        acc3 = fb1
        for h in range(5):
            acc3 = acc3 + dot(p2_s[bi, h:h + 1, :], wf1_ref[h])
        h1 = jnp.maximum(acc3, 0.0)                            # (1, 120)

        # ---- fc2 (120 -> 84) + ReLU ------------------------------------------
        h2 = jnp.maximum(dot(h1, wf2) + fb2, 0.0)              # (1, 84)

        # ---- fc3 (84 -> num_classes), lane-padded to 128 ----------------------
        out_ref[0, pl.ds(bi, 1), :] = dot(h2, wf3) + fb3       # (1, nc_pad)


# --------------------------- weight repacking --------------------------------
def _build_packed_params(conv1_w, conv1_b, conv2_w, conv2_b,
                         fc1_w, fc1_b, fc2_w, fc2_b, fc3_w, fc3_b, nc_pad):
    w1 = np.asarray(conv1_w, np.float32)      # (6, 3, 5, 5)
    w2 = np.asarray(conv2_w, np.float32)      # (16, 6, 5, 5)
    f1 = np.asarray(fc1_w, np.float32)        # (120, 400)
    f2 = np.asarray(fc2_w, np.float32)        # (84, 120)
    f3 = np.asarray(fc3_w, np.float32)        # (nc, 84)

    # conv1 Toeplitz: T1[dy, ci*32 + (j+dx), co*28 + j] = w1[co, ci, dy, dx]
    T1 = np.zeros((5, 3 * 32, 6 * 28), np.float32)
    j = np.arange(28)
    for dy in range(5):
        for dx in range(5):
            for ci in range(3):
                for co in range(6):
                    T1[dy, ci * 32 + j + dx, co * 28 + j] = w1[co, ci, dy, dx]

    # conv2 Toeplitz: T2[dy, ci*14 + (j+dx), co*10 + j] = w2[co, ci, dy, dx]
    T2 = np.zeros((5, 6 * 14, 16 * 10), np.float32)
    j = np.arange(10)
    for dy in range(5):
        for dx in range(5):
            for ci in range(6):
                for co in range(16):
                    T2[dy, ci * 14 + j + dx, co * 10 + j] = w2[co, ci, dy, dx]

    # 2x2 max-pool selectors (row pickers on the left, column pickers on right)
    def row_sel(n_out):
        r = np.zeros((2, n_out, 2 * n_out), np.float32)
        i = np.arange(n_out)
        r[0, i, 2 * i] = 1.0
        r[1, i, 2 * i + 1] = 1.0
        return r

    def col_sel(n_ch, w_out):
        c = np.zeros((2, n_ch * 2 * w_out, n_ch * w_out), np.float32)
        for ch in range(n_ch):
            for w in range(w_out):
                c[0, ch * 2 * w_out + 2 * w, ch * w_out + w] = 1.0
                c[1, ch * 2 * w_out + 2 * w + 1, ch * w_out + w] = 1.0
        return c

    Rsel1 = row_sel(14)          # (2, 14, 28)
    Csel1 = col_sel(6, 14)       # (2, 168, 84)
    Rsel2 = row_sel(5)           # (2, 5, 10)
    Csel2 = col_sel(16, 5)       # (2, 160, 80)

    b1r = np.repeat(np.asarray(conv1_b, np.float32), 28)[None, :]   # (1, 168)
    b2r = np.repeat(np.asarray(conv2_b, np.float32), 10)[None, :]   # (1, 160)

    # fc1 permuted to match p2 layout (row=h, lane=co*5+w) and torch's
    # view(-1, 16*5*5) flattening order c*25 + h*5 + w.
    Wf1 = f1.reshape(120, 16, 5, 5).transpose(2, 1, 3, 0).reshape(5, 80, 120)
    Wf2 = f2.T                                                      # (120, 84)
    Wf3 = np.zeros((84, nc_pad), np.float32)
    Wf3[:, :f3.shape[0]] = f3.T
    fb3 = np.zeros((1, nc_pad), np.float32)
    fb3[0, :f3.shape[0]] = np.asarray(fc3_b, np.float32)

    packed = (T1, b1r, Rsel1, Csel1, T2, b2r, Rsel2, Csel2,
              Wf1, np.asarray(fc1_b, np.float32)[None, :],
              Wf2, np.asarray(fc2_b, np.float32)[None, :],
              Wf3, fb3)
    return tuple(jnp.asarray(a) for a in packed)


# ------------------------------ host wrapper ---------------------------------
@functools.partial(jax.jit, static_argnames=("num_classes", "nc_pad", "block_b"))
def lenet5_forward(x_nchw, packed, *, num_classes, nc_pad, block_b=4):
    """x_nchw: (B, 3, 32, 32) float32 -> (B, num_classes) float32."""
    B = x_nchw.shape[0]
    assert x_nchw.shape[1:] == (3, 32, 32), x_nchw.shape

    # (B, C, H, W) -> (B, H, C*W): lane index = ci*32 + w.
    x2d = jnp.transpose(x_nchw.astype(jnp.float32), (0, 2, 1, 3)).reshape(B, 32, 96)

    bb = min(block_b, B)
    padded_b = pl.cdiv(B, bb) * bb
    if padded_b != B:
        x2d = jnp.pad(x2d, ((0, padded_b - B), (0, 0), (0, 0)))
    num_blocks = padded_b // bb

    (T1, b1r, Rsel1, Csel1, T2, b2r, Rsel2, Csel2,
     Wf1, fb1, Wf2, fb2, Wf3, fb3) = packed

    def full(a):
        return pl.BlockSpec(a.shape, lambda g, _nd=a.ndim: (0,) * _nd)

    kernel = functools.partial(_lenet5_kernel, block_b=bb)

    out = pl.pallas_call(
        kernel,
        out_shape=jax.ShapeDtypeStruct((num_blocks, bb, nc_pad), jnp.float32),
        grid=(num_blocks,),
        in_specs=[
            pl.BlockSpec((bb, 32, 96), lambda g: (g, 0, 0)),   # images
            full(T1), full(b1r), full(Rsel1), full(Csel1),     # conv1 / pool1
            full(T2), full(b2r), full(Rsel2), full(Csel2),     # conv2 / pool2
            full(Wf1), full(fb1), full(Wf2), full(fb2),        # fc1 / fc2
            full(Wf3), full(fb3),                              # fc3 (padded)
        ],
        out_specs=pl.BlockSpec((1, bb, nc_pad), lambda g: (g, 0, 0)),
        scratch_shapes=[
            pltpu.VMEM((bb, 14, 84), jnp.float32),   # pool1 activations
            pltpu.VMEM((bb, 5, 80), jnp.float32),    # pool2 activations
        ],
        compiler_params=pltpu.CompilerParams(
            dimension_semantics=("parallel",),
        ),
    )(x2d, T1, b1r, Rsel1, Csel1, T2, b2r, Rsel2, Csel2,
      Wf1, fb1, Wf2, fb2, Wf3, fb3)

    out = out.reshape(padded_b, nc_pad)
    return out[:B, :num_classes]


class LeNet5:
    """JAX/Pallas port of the PyTorch LeNet5 module."""

    def __init__(self, output_dim, input_dim=None, key=None):
        del input_dim  # unused, kept for API parity with the torch module
        self.output_dim = output_dim
        self.nc_pad = ((output_dim + 127) // 128) * 128
        if key is None:
            key = jax.random.PRNGKey(0)
        ks = jax.random.split(key, 5)

        def xavier_normal(k, shape, fan_in, fan_out):
            std = (2.0 / (fan_in + fan_out)) ** 0.5
            return std * jax.random.normal(k, shape, jnp.float32)

        # Parameters in torch layout (same init scheme as the spec).
        conv1_w = xavier_normal(ks[0], (6, 3, 5, 5), 3 * 25, 6 * 25)
        conv2_w = xavier_normal(ks[1], (16, 6, 5, 5), 6 * 25, 16 * 25)
        fc1_w = xavier_normal(ks[2], (120, 400), 400, 120)
        fc2_w = xavier_normal(ks[3], (84, 120), 120, 84)
        fc3_w = xavier_normal(ks[4], (output_dim, 84), 84, output_dim)
        conv1_b = jnp.zeros((6,), jnp.float32)
        conv2_b = jnp.zeros((16,), jnp.float32)
        fc1_b = jnp.zeros((120,), jnp.float32)
        fc2_b = jnp.zeros((84,), jnp.float32)
        fc3_b = jnp.zeros((output_dim,), jnp.float32)

        self._torch_params = (conv1_w, conv1_b, conv2_w, conv2_b,
                              fc1_w, fc1_b, fc2_w, fc2_b, fc3_w, fc3_b)
        self.packed = _build_packed_params(
            conv1_w, conv1_b, conv2_w, conv2_b,
            fc1_w, fc1_b, fc2_w, fc2_b, fc3_w, fc3_b, self.nc_pad)

    def __call__(self, x):
        """x: (B, 3, 32, 32) NCHW, as in the PyTorch module."""
        return lenet5_forward(x, self.packed,
                              num_classes=self.output_dim, nc_pad=self.nc_pad)

    # Pure-JAX (XLA) reference used only for correctness checking.
    def reference_forward(self, x):
        (c1w, c1b, c2w, c2b, f1w, f1b, f2w, f2b, f3w, f3b) = self._torch_params
        hi = jax.lax.Precision.HIGHEST
        dn = ("NCHW", "OIHW", "NCHW")

        def pool(a):
            return jax.lax.reduce_window(a, -jnp.inf, jax.lax.max,
                                         (1, 1, 2, 2), (1, 1, 2, 2), "VALID")

        y = jax.lax.conv_general_dilated(x, c1w, (1, 1), "VALID",
                                         dimension_numbers=dn, precision=hi)
        y = pool(jnp.maximum(y + c1b.reshape(1, -1, 1, 1), 0.0))
        y = jax.lax.conv_general_dilated(y, c2w, (1, 1), "VALID",
                                         dimension_numbers=dn, precision=hi)
        y = pool(jnp.maximum(y + c2b.reshape(1, -1, 1, 1), 0.0))
        y = y.reshape(y.shape[0], 16 * 5 * 5)
        y = jnp.maximum(jnp.dot(y, f1w.T, precision=hi) + f1b, 0.0)
        y = jnp.maximum(jnp.dot(y, f2w.T, precision=hi) + f2b, 0.0)
        return jnp.dot(y, f3w.T, precision=hi) + f3b


# --------------------------------- demo ---------------------------------------
if __name__ == "__main__":
    key = jax.random.PRNGKey(0)
    k_in, k_par = jax.random.split(key)

    B = 2
    x = jax.random.normal(k_in, (B, 3, 32, 32), dtype=jnp.float32)

    model = LeNet5(output_dim=10, key=k_par)

    out = jax.block_until_ready(model(x))
    assert out.shape == (B, 10), out.shape
    assert bool(jnp.all(jnp.isfinite(out)))

    ref = jax.block_until_ready(model.reference_forward(x))
    assert bool(jnp.allclose(out, ref, atol=2e-2, rtol=2e-2)), (
        "Pallas LeNet5 output mismatch vs. pure-JAX reference")

    print("KERNEL_OK")
</pallas_src>

<mosaic_0001>
module attributes {stable_mosaic.version = 11 : i64} {
  func.func @_lenet5_kernel(%arg0: i32, %arg1: memref<2x32x96xf32, #tpu.memory_space<vmem>>, %arg2: memref<5x96x168xf32, #tpu.memory_space<vmem>>, %arg3: memref<1x168xf32, #tpu.memory_space<vmem>>, %arg4: memref<2x14x28xf32, #tpu.memory_space<vmem>>, %arg5: memref<2x168x84xf32, #tpu.memory_space<vmem>>, %arg6: memref<5x84x160xf32, #tpu.memory_space<vmem>>, %arg7: memref<1x160xf32, #tpu.memory_space<vmem>>, %arg8: memref<2x5x10xf32, #tpu.memory_space<vmem>>, %arg9: memref<2x160x80xf32, #tpu.memory_space<vmem>>, %arg10: memref<5x80x120xf32, #tpu.memory_space<vmem>>, %arg11: memref<1x120xf32, #tpu.memory_space<vmem>>, %arg12: memref<120x84xf32, #tpu.memory_space<vmem>>, %arg13: memref<1x84xf32, #tpu.memory_space<vmem>>, %arg14: memref<84x128xf32, #tpu.memory_space<vmem>>, %arg15: memref<1x128xf32, #tpu.memory_space<vmem>>, %arg16: memref<1x2x128xf32, #tpu.memory_space<vmem>>, %arg17: memref<2x14x84xf32, #tpu.memory_space<vmem>>, %arg18: memref<2x5x80xf32, #tpu.memory_space<vmem>>) attributes {dimension_semantics = [#tpu.dimension_semantics<parallel>], iteration_bounds = array<i64: 1>, scalar_prefetch = 0 : i64, scratch_operands = 2 : i64, tpu.core_type = #tpu.core_type<tc>, window_params = [{transform_indices = @transform_0, window_bounds = array<i64: 2, 32, 96>}, {pipeline_mode = #tpu.pipeline_mode<synchronous>, transform_indices = @transform_1, window_bounds = array<i64: 5, 96, 168>}, {pipeline_mode = #tpu.pipeline_mode<synchronous>, transform_indices = @transform_2, window_bounds = array<i64: 1, 168>}, {pipeline_mode = #tpu.pipeline_mode<synchronous>, transform_indices = @transform_3, window_bounds = array<i64: 2, 14, 28>}, {pipeline_mode = #tpu.pipeline_mode<synchronous>, transform_indices = @transform_4, window_bounds = array<i64: 2, 168, 84>}, {pipeline_mode = #tpu.pipeline_mode<synchronous>, transform_indices = @transform_5, window_bounds = array<i64: 5, 84, 160>}, {pipeline_mode = #tpu.pipeline_mode<synchronous>, transform_indices = @transform_6, window_bounds = array<i64: 1, 160>}, {pipeline_mode = #tpu.pipeline_mode<synchronous>, transform_indices = @transform_7, window_bounds = array<i64: 2, 5, 10>}, {pipeline_mode = #tpu.pipeline_mode<synchronous>, transform_indices = @transform_8, window_bounds = array<i64: 2, 160, 80>}, {pipeline_mode = #tpu.pipeline_mode<synchronous>, transform_indices = @transform_9, window_bounds = array<i64: 5, 80, 120>}, {pipeline_mode = #tpu.pipeline_mode<synchronous>, transform_indices = @transform_10, window_bounds = array<i64: 1, 120>}, {pipeline_mode = #tpu.pipeline_mode<synchronous>, transform_indices = @transform_11, window_bounds = array<i64: 120, 84>}, {pipeline_mode = #tpu.pipeline_mode<synchronous>, transform_indices = @transform_12, window_bounds = array<i64: 1, 84>}, {pipeline_mode = #tpu.pipeline_mode<synchronous>, transform_indices = @transform_13, window_bounds = array<i64: 84, 128>}, {pipeline_mode = #tpu.pipeline_mode<synchronous>, transform_indices = @transform_14, window_bounds = array<i64: 1, 128>}, {transform_indices = @transform_15, window_bounds = array<i64: 1, 2, 128>}]} {
    %c0 = arith.constant 0 : index
    %c0_0 = arith.constant 0 : index
    %0 = vector.load %arg3[%c0, %c0_0] : memref<1x168xf32, #tpu.memory_space<vmem>>, vector<1x168xf32>
    %c0_1 = arith.constant 0 : index
    %c0_2 = arith.constant 0 : index
    %1 = vector.load %arg7[%c0_1, %c0_2] : memref<1x160xf32, #tpu.memory_space<vmem>>, vector<1x160xf32>
    %c0_3 = arith.constant 0 : index
    %c0_4 = arith.constant 0 : index
    %2 = vector.load %arg11[%c0_3, %c0_4] : memref<1x120xf32, #tpu.memory_space<vmem>>, vector<1x120xf32>
    %c0_5 = arith.constant 0 : index
    %c0_6 = arith.constant 0 : index
    %3 = vector.load %arg13[%c0_5, %c0_6] : memref<1x84xf32, #tpu.memory_space<vmem>>, vector<1x84xf32>
    %c0_7 = arith.constant 0 : index
    %c0_8 = arith.constant 0 : index
    %4 = vector.load %arg15[%c0_7, %c0_8] : memref<1x128xf32, #tpu.memory_space<vmem>>, vector<1x128xf32>
    %c0_9 = arith.constant 0 : index
    %c0_10 = arith.constant 0 : index
    %5 = vector.load %arg12[%c0_9, %c0_10] : memref<120x84xf32, #tpu.memory_space<vmem>>, vector<120x84xf32>
    %c0_11 = arith.constant 0 : index
    %c0_12 = arith.constant 0 : index
    %6 = vector.load %arg14[%c0_11, %c0_12] : memref<84x128xf32, #tpu.memory_space<vmem>>, vector<84x128xf32>
    %c0_13 = arith.constant 0 : index
    %c0_14 = arith.constant 0 : index
    %c0_15 = arith.constant 0 : index
    %7 = vector.load %arg1[%c0_13, %c0_14, %c0_15] : memref<2x32x96xf32, #tpu.memory_space<vmem>>, vector<1x28x96xf32>
    %8 = vector.shape_cast %7 : vector<1x28x96xf32> to vector<28x96xf32>
    %c0_16 = arith.constant 0 : index
    %c0_17 = arith.constant 0 : index
    %c0_18 = arith.constant 0 : index
    %9 = vector.load %arg2[%c0_16, %c0_17, %c0_18] : memref<5x96x168xf32, #tpu.memory_space<vmem>>, vector<1x96x168xf32>
    %10 = vector.shape_cast %9 : vector<1x96x168xf32> to vector<96x168xf32>
    %cst = arith.constant dense<0.000000e+00> : vector<28x168xf32>
    %11 = tpu.matmul %8, %10, %cst {dimension_numbers = #tpu.dot_dimension_numbers<[1], [0], [0], [1], [0, 0, 1, 1], [], []>} : vector<28x96xf32>, vector<96x168xf32>, vector<28x168xf32> -> vector<28x168xf32>
    %c0_19 = arith.constant 0 : index
    %c1 = arith.constant 1 : index
    %c0_20 = arith.constant 0 : index
    %12 = vector.load %arg1[%c0_19, %c1, %c0_20] : memref<2x32x96xf32, #tpu.memory_space<vmem>>, vector<1x28x96xf32>
    %13 = vector.shape_cast %12 : vector<1x28x96xf32> to vector<28x96xf32>
    %c1_21 = arith.constant 1 : index
    %c0_22 = arith.constant 0 : index
    %c0_23 = arith.constant 0 : index
    %14 = vector.load %arg2[%c1_21, %c0_22, %c0_23] : memref<5x96x168xf32, #tpu.memory_space<vmem>>, vector<1x96x168xf32>
    %15 = vector.shape_cast %14 : vector<1x96x168xf32> to vector<96x168xf32>
    %cst_24 = arith.constant dense<0.000000e+00> : vector<28x168xf32>
    %16 = tpu.matmul %13, %15, %cst_24 {dimension_numbers = #tpu.dot_dimension_numbers<[1], [0], [0], [1], [0, 0, 1, 1], [], []>} : vector<28x96xf32>, vector<96x168xf32>, vector<28x168xf32> -> vector<28x168xf32>
    %17 = arith.addf %11, %16 : vector<28x168xf32>
    %c0_25 = arith.constant 0 : index
    %c2 = arith.constant 2 : index
    %c0_26 = arith.constant 0 : index
    %18 = vector.load %arg1[%c0_25, %c2, %c0_26] : memref<2x32x96xf32, #tpu.memory_space<vmem>>, vector<1x28x96xf32>
    %19 = vector.shape_cast %18 : vector<1x28x96xf32> to vector<28x96xf32>
    %c2_27 = arith.constant 2 : index
    %c0_28 = arith.constant 0 : index
    %c0_29 = arith.constant 0 : index
    %20 = vector.load %arg2[%c2_27, %c0_28, %c0_29] : memref<5x96x168xf32, #tpu.memory_space<vmem>>, vector<1x96x168xf32>
    %21 = vector.shape_cast %20 : vector<1x96x168xf32> to vector<96x168xf32>
    %cst_30 = arith.constant dense<0.000000e+00> : vector<28x168xf32>
    %22 = tpu.matmul %19, %21, %cst_30 {dimension_numbers = #tpu.dot_dimension_numbers<[1], [0], [0], [1], [0, 0, 1, 1], [], []>} : vector<28x96xf32>, vector<96x168xf32>, vector<28x168xf32> -> vector<28x168xf32>
    %23 = arith.addf %17, %22 : vector<28x168xf32>
    %c0_31 = arith.constant 0 : index
    %c3 = arith.constant 3 : index
    %c0_32 = arith.constant 0 : index
    %24 = vector.load %arg1[%c0_31, %c3, %c0_32] : memref<2x32x96xf32, #tpu.memory_space<vmem>>, vector<1x28x96xf32>
    %25 = vector.shape_cast %24 : vector<1x28x96xf32> to vector<28x96xf32>
    %c3_33 = arith.constant 3 : index
    %c0_34 = arith.constant 0 : index
    %c0_35 = arith.constant 0 : index
    %26 = vector.load %arg2[%c3_33, %c0_34, %c0_35] : memref<5x96x168xf32, #tpu.memory_space<vmem>>, vector<1x96x168xf32>
    %27 = vector.shape_cast %26 : vector<1x96x168xf32> to vector<96x168xf32>
    %cst_36 = arith.constant dense<0.000000e+00> : vector<28x168xf32>
    %28 = tpu.matmul %25, %27, %cst_36 {dimension_numbers = #tpu.dot_dimension_numbers<[1], [0], [0], [1], [0, 0, 1, 1], [], []>} : vector<28x96xf32>, vector<96x168xf32>, vector<28x168xf32> -> vector<28x168xf32>
    %29 = arith.addf %23, %28 : vector<28x168xf32>
    %c0_37 = arith.constant 0 : index
    %c4 = arith.constant 4 : index
    %c0_38 = arith.constant 0 : index
    %30 = vector.load %arg1[%c0_37, %c4, %c0_38] : memref<2x32x96xf32, #tpu.memory_space<vmem>>, vector<1x28x96xf32>
    %31 = vector.shape_cast %30 : vector<1x28x96xf32> to vector<28x96xf32>
    %c4_39 = arith.constant 4 : index
    %c0_40 = arith.constant 0 : index
    %c0_41 = arith.constant 0 : index
    %32 = vector.load %arg2[%c4_39, %c0_40, %c0_41] : memref<5x96x168xf32, #tpu.memory_space<vmem>>, vector<1x96x168xf32>
    %33 = vector.shape_cast %32 : vector<1x96x168xf32> to vector<96x168xf32>
    %cst_42 = arith.constant dense<0.000000e+00> : vector<28x168xf32>
    %34 = tpu.matmul %31, %33, %cst_42 {dimension_numbers = #tpu.dot_dimension_numbers<[1], [0], [0], [1], [0, 0, 1, 1], [], []>} : vector<28x96xf32>, vector<96x168xf32>, vector<28x168xf32> -> vector<28x168xf32>
    %35 = arith.addf %29, %34 : vector<28x168xf32>
    %36 = vector.broadcast %0 : vector<1x168xf32> to vector<28x168xf32>
    %37 = arith.addf %35, %36 : vector<28x168xf32>
    %cst_43 = arith.constant 0.000000e+00 : f32
    %38 = vector.broadcast %cst_43 : f32 to vector<28x168xf32>
    %39 = arith.maximumf %37, %38 : vector<28x168xf32>
    %c0_44 = arith.constant 0 : index
    %c0_45 = arith.constant 0 : index
    %c0_46 = arith.constant 0 : index
    %40 = vector.load %arg4[%c0_44, %c0_45, %c0_46] : memref<2x14x28xf32, #tpu.memory_space<vmem>>, vector<1x14x28xf32>
    %41 = vector.shape_cast %40 : vector<1x14x28xf32> to vector<14x28xf32>
    %cst_47 = arith.constant dense<0.000000e+00> : vector<14x168xf32>
    %42 = tpu.matmul %41, %39, %cst_47 {dimension_numbers = #tpu.dot_dimension_numbers<[1], [0], [0], [1], [0, 0, 1, 1], [], []>} : vector<14x28xf32>, vector<28x168xf32>, vector<14x168xf32> -> vector<14x168xf32>
    %c1_48 = arith.constant 1 : index
    %c0_49 = arith.constant 0 : index
    %c0_50 = arith.constant 0 : index
    %43 = vector.load %arg4[%c1_48, %c0_49, %c0_50] : memref<2x14x28xf32, #tpu.memory_space<vmem>>, vector<1x14x28xf32>
    %44 = vector.shape_cast %43 : vector<1x14x28xf32> to vector<14x28xf32>
    %cst_51 = arith.constant dense<0.000000e+00> : vector<14x168xf32>
    %45 = tpu.matmul %44, %39, %cst_51 {dimension_numbers = #tpu.dot_dimension_numbers<[1], [0], [0], [1], [0, 0, 1, 1], [], []>} : vector<14x28xf32>, vector<28x168xf32>, vector<14x168xf32> -> vector<14x168xf32>
    %46 = arith.maximumf %42, %45 : vector<14x168xf32>
    %c0_52 = arith.constant 0 : index
    %c0_53 = arith.constant 0 : index
    %c0_54 = arith.constant 0 : index
    %47 = vector.load %arg5[%c0_52, %c0_53, %c0_54] : memref<2x168x84xf32, #tpu.memory_space<vmem>>, vector<1x168x84xf32>
    %48 = vector.shape_cast %47 : vector<1x168x84xf32> to vector<168x84xf32>
    %cst_55 = arith.constant dense<0.000000e+00> : vector<14x84xf32>
    %49 = tpu.matmul %46, %48, %cst_55 {dimension_numbers = #tpu.dot_dimension_numbers<[1], [0], [0], [1], [0, 0, 1, 1], [], []>} : vector<14x168xf32>, vector<168x84xf32>, vector<14x84xf32> -> vector<14x84xf32>
    %c1_56 = arith.constant 1 : index
    %c0_57 = arith.constant 0 : index
    %c0_58 = arith.constant 0 : index
    %50 = vector.load %arg5[%c1_56, %c0_57, %c0_58] : memref<2x168x84xf32, #tpu.memory_space<vmem>>, vector<1x168x84xf32>
    %51 = vector.shape_cast %50 : vector<1x168x84xf32> to vector<168x84xf32>
    %cst_59 = arith.constant dense<0.000000e+00> : vector<14x84xf32>
    %52 = tpu.matmul %46, %51, %cst_59 {dimension_numbers = #tpu.dot_dimension_numbers<[1], [0], [0], [1], [0, 0, 1, 1], [], []>} : vector<14x168xf32>, vector<168x84xf32>, vector<14x84xf32> -> vector<14x84xf32>
    %53 = arith.maximumf %49, %52 : vector<14x84xf32>
    %c0_60 = arith.constant 0 : index
    %c0_61 = arith.constant 0 : index
    %c0_62 = arith.constant 0 : index
    %54 = vector.load %arg17[%c0_60, %c0_61, %c0_62] : memref<2x14x84xf32, #tpu.memory_space<vmem>>, vector<1x14x84xf32>
    %55 = vector.shape_cast %54 : vector<1x14x84xf32> to vector<14x84xf32>
    %56 = vector.shape_cast %53 : vector<14x84xf32> to vector<1x14x84xf32>
    tpu.vector_store %arg17[%c0_60, %c0_61, %c0_62], %56 {strides = array<i32>} : memref<2x14x84xf32, #tpu.memory_space<vmem>>, vector<1x14x84xf32>,
    %c0_63 = arith.constant 0 : index
    %c0_64 = arith.constant 0 : index
    %c0_65 = arith.constant 0 : index
    %57 = vector.load %arg17[%c0_63, %c0_64, %c0_65] : memref<2x14x84xf32, #tpu.memory_space<vmem>>, vector<1x10x84xf32>
    %58 = vector.shape_cast %57 : vector<1x10x84xf32> to vector<10x84xf32>
    %c0_66 = arith.constant 0 : index
    %c0_67 = arith.constant 0 : index
    %c0_68 = arith.constant 0 : index
    %59 = vector.load %arg6[%c0_66, %c0_67, %c0_68] : memref<5x84x160xf32, #tpu.memory_space<vmem>>, vector<1x84x160xf32>
    %60 = vector.shape_cast %59 : vector<1x84x160xf32> to vector<84x160xf32>
    %cst_69 = arith.constant dense<0.000000e+00> : vector<10x160xf32>
    %61 = tpu.matmul %58, %60, %cst_69 {dimension_numbers = #tpu.dot_dimension_numbers<[1], [0], [0], [1], [0, 0, 1, 1], [], []>} : vector<10x84xf32>, vector<84x160xf32>, vector<10x160xf32> -> vector<10x160xf32>
    %c0_70 = arith.constant 0 : index
    %c1_71 = arith.constant 1 : index
    %c0_72 = arith.constant 0 : index
    %62 = vector.load %arg17[%c0_70, %c1_71, %c0_72] : memref<2x14x84xf32, #tpu.memory_space<vmem>>, vector<1x10x84xf32>
    %63 = vector.shape_cast %62 : vector<1x10x84xf32> to vector<10x84xf32>
    %c1_73 = arith.constant 1 : index
    %c0_74 = arith.constant 0 : index
    %c0_75 = arith.constant 0 : index
    %64 = vector.load %arg6[%c1_73, %c0_74, %c0_75] : memref<5x84x160xf32, #tpu.memory_space<vmem>>, vector<1x84x160xf32>
    %65 = vector.shape_cast %64 : vector<1x84x160xf32> to vector<84x160xf32>
    %cst_76 = arith.constant dense<0.000000e+00> : vector<10x160xf32>
    %66 = tpu.matmul %63, %65, %cst_76 {dimension_numbers = #tpu.dot_dimension_numbers<[1], [0], [0], [1], [0, 0, 1, 1], [], []>} : vector<10x84xf32>, vector<84x160xf32>, vector<10x160xf32> -> vector<10x160xf32>
    %67 = arith.addf %61, %66 : vector<10x160xf32>
    %c0_77 = arith.constant 0 : index
    %c2_78 = arith.constant 2 : index
    %c0_79 = arith.constant 0 : index
    %68 = vector.load %arg17[%c0_77, %c2_78, %c0_79] : memref<2x14x84xf32, #tpu.memory_space<vmem>>, vector<1x10x84xf32>
    %69 = vector.shape_cast %68 : vector<1x10x84xf32> to vector<10x84xf32>
    %c2_80 = arith.constant 2 : index
    %c0_81 = arith.constant 0 : index
    %c0_82 = arith.constant 0 : index
    %70 = vector.load %arg6[%c2_80, %c0_81, %c0_82] : memref<5x84x160xf32, #tpu.memory_space<vmem>>, vector<1x84x160xf32>
    %71 = vector.shape_cast %70 : vector<1x84x160xf32> to vector<84x160xf32>
    %cst_83 = arith.constant dense<0.000000e+00> : vector<10x160xf32>
    %72 = tpu.matmul %69, %71, %cst_83 {dimension_numbers = #tpu.dot_dimension_numbers<[1], [0], [0], [1], [0, 0, 1, 1], [], []>} : vector<10x84xf32>, vector<84x160xf32>, vector<10x160xf32> -> vector<10x160xf32>
    %73 = arith.addf %67, %72 : vector<10x160xf32>
    %c0_84 = arith.constant 0 : index
    %c3_85 = arith.constant 3 : index
    %c0_86 = arith.constant 0 : index
    %74 = vector.load %arg17[%c0_84, %c3_85, %c0_86] : memref<2x14x84xf32, #tpu.memory_space<vmem>>, vector<1x10x84xf32>
    %75 = vector.shape_cast %74 : vector<1x10x84xf32> to vector<10x84xf32>
    %c3_87 = arith.constant 3 : index
    %c0_88 = arith.constant 0 : index
    %c0_89 = arith.constant 0 : index
    %76 = vector.load %arg6[%c3_87, %c0_88, %c0_89] : memref<5x84x160xf32, #tpu.memory_space<vmem>>, vector<1x84x160xf32>
    %77 = vector.shape_cast %76 : vector<1x84x160xf32> to vector<84x160xf32>
    %cst_90 = arith.constant dense<0.000000e+00> : vector<10x160xf32>
    %78 = tpu.matmul %75, %77, %cst_90 {dimension_numbers = #tpu.dot_dimension_numbers<[1], [0], [0], [1], [0, 0, 1, 1], [], []>} : vector<10x84xf32>, vector<84x160xf32>, vector<10x160xf32> -> vector<10x160xf32>
    %79 = arith.addf %73, %78 : vector<10x160xf32>
    %c0_91 = arith.constant 0 : index
    %c4_92 = arith.constant 4 : index
    %c0_93 = arith.constant 0 : index
    %80 = vector.load %arg17[%c0_91, %c4_92, %c0_93] : memref<2x14x84xf32, #tpu.memory_space<vmem>>, vector<1x10x84xf32>
    %81 = vector.shape_cast %80 : vector<1x10x84xf32> to vector<10x84xf32>
    %c4_94 = arith.constant 4 : index
    %c0_95 = arith.constant 0 : index
    %c0_96 = arith.constant 0 : index
    %82 = vector.load %arg6[%c4_94, %c0_95, %c0_96] : memref<5x84x160xf32, #tpu.memory_space<vmem>>, vector<1x84x160xf32>
    %83 = vector.shape_cast %82 : vector<1x84x160xf32> to vector<84x160xf32>
    %cst_97 = arith.constant dense<0.000000e+00> : vector<10x160xf32>
    %84 = tpu.matmul %81, %83, %cst_97 {dimension_numbers = #tpu.dot_dimension_numbers<[1], [0], [0], [1], [0, 0, 1, 1], [], []>} : vector<10x84xf32>, vector<84x160xf32>, vector<10x160xf32> -> vector<10x160xf32>
    %85 = arith.addf %79, %84 : vector<10x160xf32>
    %86 = vector.broadcast %1 : vector<1x160xf32> to vector<10x160xf32>
    %87 = arith.addf %85, %86 : vector<10x160xf32>
    %cst_98 = arith.constant 0.000000e+00 : f32
    %88 = vector.broadcast %cst_98 : f32 to vector<10x160xf32>
    %89 = arith.maximumf %87, %88 : vector<10x160xf32>
    %c0_99 = arith.constant 0 : index
    %c0_100 = arith.constant 0 : index
    %c0_101 = arith.constant 0 : index
    %90 = vector.load %arg8[%c0_99, %c0_100, %c0_101] : memref<2x5x10xf32, #tpu.memory_space<vmem>>, vector<1x5x10xf32>
    %91 = vector.shape_cast %90 : vector<1x5x10xf32> to vector<5x10xf32>
    %cst_102 = arith.constant dense<0.000000e+00> : vector<5x160xf32>
    %92 = tpu.matmul %91, %89, %cst_102 {dimension_numbers = #tpu.dot_dimension_numbers<[1], [0], [0], [1], [0, 0, 1, 1], [], []>} : vector<5x10xf32>, vector<10x160xf32>, vector<5x160xf32> -> vector<5x160xf32>
    %c1_103 = arith.constant 1 : index
    %c0_104 = arith.constant 0 : index
    %c0_105 = arith.constant 0 : index
    %93 = vector.load %arg8[%c1_103, %c0_104, %c0_105] : memref<2x5x10xf32, #tpu.memory_space<vmem>>, vector<1x5x10xf32>
    %94 = vector.shape_cast %93 : vector<1x5x10xf32> to vector<5x10xf32>
    %cst_106 = arith.constant dense<0.000000e+00> : vector<5x160xf32>
    %95 = tpu.matmul %94, %89, %cst_106 {dimension_numbers = #tpu.dot_dimension_numbers<[1], [0], [0], [1], [0, 0, 1, 1], [], []>} : vector<5x10xf32>, vector<10x160xf32>, vector<5x160xf32> -> vector<5x160xf32>
    %96 = arith.maximumf %92, %95 : vector<5x160xf32>
    %c0_107 = arith.constant 0 : index
    %c0_108 = arith.constant 0 : index
    %c0_109 = arith.constant 0 : index
    %97 = vector.load %arg9[%c0_107, %c0_108, %c0_109] : memref<2x160x80xf32, #tpu.memory_space<vmem>>, vector<1x160x80xf32>
    %98 = vector.shape_cast %97 : vector<1x160x80xf32> to vector<160x80xf32>
    %cst_110 = arith.constant dense<0.000000e+00> : vector<5x80xf32>
    %99 = tpu.matmul %96, %98, %cst_110 {dimension_numbers = #tpu.dot_dimension_numbers<[1], [0], [0], [1], [0, 0, 1, 1], [], []>} : vector<5x160xf32>, vector<160x80xf32>, vector<5x80xf32> -> vector<5x80xf32>
    %c1_111 = arith.constant 1 : index
    %c0_112 = arith.constant 0 : index
    %c0_113 = arith.constant 0 : index
    %100 = vector.load %arg9[%c1_111, %c0_112, %c0_113] : memref<2x160x80xf32, #tpu.memory_space<vmem>>, vector<1x160x80xf32>
    %101 = vector.shape_cast %100 : vector<1x160x80xf32> to vector<160x80xf32>
    %cst_114 = arith.constant dense<0.000000e+00> : vector<5x80xf32>
    %102 = tpu.matmul %96, %101, %cst_114 {dimension_numbers = #tpu.dot_dimension_numbers<[1], [0], [0], [1], [0, 0, 1, 1], [], []>} : vector<5x160xf32>, vector<160x80xf32>, vector<5x80xf32> -> vector<5x80xf32>
    %103 = arith.maximumf %99, %102 : vector<5x80xf32>
    %c0_115 = arith.constant 0 : index
    %c0_116 = arith.constant 0 : index
    %c0_117 = arith.constant 0 : index
    %104 = vector.load %arg18[%c0_115, %c0_116, %c0_117] : memref<2x5x80xf32, #tpu.memory_space<vmem>>, vector<1x5x80xf32>
    %105 = vector.shape_cast %104 : vector<1x5x80xf32> to vector<5x80xf32>
    %106 = vector.shape_cast %103 : vector<5x80xf32> to vector<1x5x80xf32>
    tpu.vector_store %arg18[%c0_115, %c0_116, %c0_117], %106 {strides = array<i32>} : memref<2x5x80xf32, #tpu.memory_space<vmem>>, vector<1x5x80xf32>,
    %c0_118 = arith.constant 0 : index
    %c0_119 = arith.constant 0 : index
    %c0_120 = arith.constant 0 : index
    %107 = vector.load %arg18[%c0_118, %c0_119, %c0_120] : memref<2x5x80xf32, #tpu.memory_space<vmem>>, vector<1x1x80xf32>
    %108 = vector.shape_cast %107 : vector<1x1x80xf32> to vector<1x80xf32>
    %c0_121 = arith.constant 0 : index
    %c0_122 = arith.constant 0 : index
    %c0_123 = arith.constant 0 : index
    %109 = vector.load %arg10[%c0_121, %c0_122, %c0_123] : memref<5x80x120xf32, #tpu.memory_space<vmem>>, vector<1x80x120xf32>
    %110 = vector.shape_cast %109 : vector<1x80x120xf32> to vector<80x120xf32>
    %cst_124 = arith.constant dense<0.000000e+00> : vector<1x120xf32>
    %111 = tpu.matmul %108, %110, %cst_124 {dimension_numbers = #tpu.dot_dimension_numbers<[1], [0], [0], [1], [0, 0, 1, 1], [], []>} : vector<1x80xf32>, vector<80x120xf32>, vector<1x120xf32> -> vector<1x120xf32>
    %112 = arith.addf %2, %111 : vector<1x120xf32>
    %c0_125 = arith.constant 0 : index
    %c1_126 = arith.constant 1 : index
    %c0_127 = arith.constant 0 : index
    %113 = vector.load %arg18[%c0_125, %c1_126, %c0_127] : memref<2x5x80xf32, #tpu.memory_space<vmem>>, vector<1x1x80xf32>
    %114 = vector.shape_cast %113 : vector<1x1x80xf32> to vector<1x80xf32>
    %c1_128 = arith.constant 1 : index
    %c0_129 = arith.constant 0 : index
    %c0_130 = arith.constant 0 : index
    %115 = vector.load %arg10[%c1_128, %c0_129, %c0_130] : memref<5x80x120xf32, #tpu.memory_space<vmem>>, vector<1x80x120xf32>
    %116 = vector.shape_cast %115 : vector<1x80x120xf32> to vector<80x120xf32>
    %cst_131 = arith.constant dense<0.000000e+00> : vector<1x120xf32>
    %117 = tpu.matmul %114, %116, %cst_131 {dimension_numbers = #tpu.dot_dimension_numbers<[1], [0], [0], [1], [0, 0, 1, 1], [], []>} : vector<1x80xf32>, vector<80x120xf32>, vector<1x120xf32> -> vector<1x120xf32>
    %118 = arith.addf %112, %117 : vector<1x120xf32>
    %c0_132 = arith.constant 0 : index
    %c2_133 = arith.constant 2 : index
    %c0_134 = arith.constant 0 : index
    %119 = vector.load %arg18[%c0_132, %c2_133, %c0_134] : memref<2x5x80xf32, #tpu.memory_space<vmem>>, vector<1x1x80xf32>
    %120 = vector.shape_cast %119 : vector<1x1x80xf32> to vector<1x80xf32>
    %c2_135 = arith.constant 2 : index
    %c0_136 = arith.constant 0 : index
    %c0_137 = arith.constant 0 : index
    %121 = vector.load %arg10[%c2_135, %c0_136, %c0_137] : memref<5x80x120xf32, #tpu.memory_space<vmem>>, vector<1x80x120xf32>
    %122 = vector.shape_cast %121 : vector<1x80x120xf32> to vector<80x120xf32>
    %cst_138 = arith.constant dense<0.000000e+00> : vector<1x120xf32>
    %123 = tpu.matmul %120, %122, %cst_138 {dimension_numbers = #tpu.dot_dimension_numbers<[1], [0], [0], [1], [0, 0, 1, 1], [], []>} : vector<1x80xf32>, vector<80x120xf32>, vector<1x120xf32> -> vector<1x120xf32>
    %124 = arith.addf %118, %123 : vector<1x120xf32>
    %c0_139 = arith.constant 0 : index
    %c3_140 = arith.constant 3 : index
    %c0_141 = arith.constant 0 : index
    %125 = vector.load %arg18[%c0_139, %c3_140, %c0_141] : memref<2x5x80xf32, #tpu.memory_space<vmem>>, vector<1x1x80xf32>
    %126 = vector.shape_cast %125 : vector<1x1x80xf32> to vector<1x80xf32>
    %c3_142 = arith.constant 3 : index
    %c0_143 = arith.constant 0 : index
    %c0_144 = arith.constant 0 : index
    %127 = vector.load %arg10[%c3_142, %c0_143, %c0_144] : memref<5x80x120xf32, #tpu.memory_space<vmem>>, vector<1x80x120xf32>
    %128 = vector.shape_cast %127 : vector<1x80x120xf32> to vector<80x120xf32>
    %cst_145 = arith.constant dense<0.000000e+00> : vector<1x120xf32>
    %129 = tpu.matmul %126, %128, %cst_145 {dimension_numbers = #tpu.dot_dimension_numbers<[1], [0], [0], [1], [0, 0, 1, 1], [], []>} : vector<1x80xf32>, vector<80x120xf32>, vector<1x120xf32> -> vector<1x120xf32>
    %130 = arith.addf %124, %129 : vector<1x120xf32>
    %c0_146 = arith.constant 0 : index
    %c4_147 = arith.constant 4 : index
    %c0_148 = arith.constant 0 : index
    %131 = vector.load %arg18[%c0_146, %c4_147, %c0_148] : memref<2x5x80xf32, #tpu.memory_space<vmem>>, vector<1x1x80xf32>
    %132 = vector.shape_cast %131 : vector<1x1x80xf32> to vector<1x80xf32>
    %c4_149 = arith.constant 4 : index
    %c0_150 = arith.constant 0 : index
    %c0_151 = arith.constant 0 : index
    %133 = vector.load %arg10[%c4_149, %c0_150, %c0_151] : memref<5x80x120xf32, #tpu.memory_space<vmem>>, vector<1x80x120xf32>
    %134 = vector.shape_cast %133 : vector<1x80x120xf32> to vector<80x120xf32>
    %cst_152 = arith.constant dense<0.000000e+00> : vector<1x120xf32>
    %135 = tpu.matmul %132, %134, %cst_152 {dimension_numbers = #tpu.dot_dimension_numbers<[1], [0], [0], [1], [0, 0, 1, 1], [], []>} : vector<1x80xf32>, vector<80x120xf32>, vector<1x120xf32> -> vector<1x120xf32>
    %136 = arith.addf %130, %135 : vector<1x120xf32>
    %cst_153 = arith.constant 0.000000e+00 : f32
    %137 = vector.broadcast %cst_153 : f32 to vector<1x120xf32>
    %138 = arith.maximumf %136, %137 : vector<1x120xf32>
    %cst_154 = arith.constant dense<0.000000e+00> : vector<1x84xf32>
    %139 = tpu.matmul %138, %5, %cst_154 {dimension_numbers = #tpu.dot_dimension_numbers<[1], [0], [0], [1], [0, 0, 1, 1], [], []>} : vector<1x120xf32>, vector<120x84xf32>, vector<1x84xf32> -> vector<1x84xf32>
    %140 = arith.addf %139, %3 : vector<1x84xf32>
    %cst_155 = arith.constant 0.000000e+00 : f32
    %141 = vector.broadcast %cst_155 : f32 to vector<1x84xf32>
    %142 = arith.maximumf %140, %141 : vector<1x84xf32>
    %cst_156 = arith.constant dense<0.000000e+00> : vector<1x128xf32>
    %143 = tpu.matmul %142, %6, %cst_156 {dimension_numbers = #tpu.dot_dimension_numbers<[1], [0], [0], [1], [0, 0, 1, 1], [], []>} : vector<1x84xf32>, vector<84x128xf32>, vector<1x128xf32> -> vector<1x128xf32>
    %144 = arith.addf %143, %4 : vector<1x128xf32>
    %c0_157 = arith.constant 0 : index
    %c0_158 = arith.constant 0 : index
    %c0_159 = arith.constant 0 : index
    %145 = vector.load %arg16[%c0_157, %c0_158, %c0_159] : memref<1x2x128xf32, #tpu.memory_space<vmem>>, vector<1x1x128xf32>
    %146 = vector.shape_cast %145 : vector<1x1x128xf32> to vector<1x128xf32>
    %147 = vector.shape_cast %144 : vector<1x128xf32> to vector<1x1x128xf32>
    tpu.vector_store %arg16[%c0_157, %c0_158, %c0_159], %147 {strides = array<i32>} : memref<1x2x128xf32, #tpu.memory_space<vmem>>, vector<1x1x128xf32>,
    %c1_160 = arith.constant 1 : index
    %c0_161 = arith.constant 0 : index
    %c0_162 = arith.constant 0 : index
    %148 = vector.load %arg1[%c1_160, %c0_161, %c0_162] : memref<2x32x96xf32, #tpu.memory_space<vmem>>, vector<1x28x96xf32>
    %149 = vector.shape_cast %148 : vector<1x28x96xf32> to vector<28x96xf32>
    %c0_163 = arith.constant 0 : index
    %c0_164 = arith.constant 0 : index
    %c0_165 = arith.constant 0 : index
    %150 = vector.load %arg2[%c0_163, %c0_164, %c0_165] : memref<5x96x168xf32, #tpu.memory_space<vmem>>, vector<1x96x168xf32>
    %151 = vector.shape_cast %150 : vector<1x96x168xf32> to vector<96x168xf32>
    %cst_166 = arith.constant dense<0.000000e+00> : vector<28x168xf32>
    %152 = tpu.matmul %149, %151, %cst_166 {dimension_numbers = #tpu.dot_dimension_numbers<[1], [0], [0], [1], [0, 0, 1, 1], [], []>} : vector<28x96xf32>, vector<96x168xf32>, vector<28x168xf32> -> vector<28x168xf32>
    %c1_167 = arith.constant 1 : index
    %c1_168 = arith.constant 1 : index
    %c0_169 = arith.constant 0 : index
    %153 = vector.load %arg1[%c1_167, %c1_168, %c0_169] : memref<2x32x96xf32, #tpu.memory_space<vmem>>, vector<1x28x96xf32>
    %154 = vector.shape_cast %153 : vector<1x28x96xf32> to vector<28x96xf32>
    %c1_170 = arith.constant 1 : index
    %c0_171 = arith.constant 0 : index
    %c0_172 = arith.constant 0 : index
    %155 = vector.load %arg2[%c1_170, %c0_171, %c0_172] : memref<5x96x168xf32, #tpu.memory_space<vmem>>, vector<1x96x168xf32>
    %156 = vector.shape_cast %155 : vector<1x96x168xf32> to vector<96x168xf32>
    %cst_173 = arith.constant dense<0.000000e+00> : vector<28x168xf32>
    %157 = tpu.matmul %154, %156, %cst_173 {dimension_numbers = #tpu.dot_dimension_numbers<[1], [0], [0], [1], [0, 0, 1, 1], [], []>} : vector<28x96xf32>, vector<96x168xf32>, vector<28x168xf32> -> vector<28x168xf32>
    %158 = arith.addf %152, %157 : vector<28x168xf32>
    %c1_174 = arith.constant 1 : index
    %c2_175 = arith.constant 2 : index
    %c0_176 = arith.constant 0 : index
    %159 = vector.load %arg1[%c1_174, %c2_175, %c0_176] : memref<2x32x96xf32, #tpu.memory_space<vmem>>, vector<1x28x96xf32>
    %160 = vector.shape_cast %159 : vector<1x28x96xf32> to vector<28x96xf32>
    %c2_177 = arith.constant 2 : index
    %c0_178 = arith.constant 0 : index
    %c0_179 = arith.constant 0 : index
    %161 = vector.load %arg2[%c2_177, %c0_178, %c0_179] : memref<5x96x168xf32, #tpu.memory_space<vmem>>, vector<1x96x168xf32>
    %162 = vector.shape_cast %161 : vector<1x96x168xf32> to vector<96x168xf32>
    %cst_180 = arith.constant dense<0.000000e+00> : vector<28x168xf32>
    %163 = tpu.matmul %160, %162, %cst_180 {dimension_numbers = #tpu.dot_dimension_numbers<[1], [0], [0], [1], [0, 0, 1, 1], [], []>} : vector<28x96xf32>, vector<96x168xf32>, vector<28x168xf32> -> vector<28x168xf32>
    %164 = arith.addf %158, %163 : vector<28x168xf32>
    %c1_181 = arith.constant 1 : index
    %c3_182 = arith.constant 3 : index
    %c0_183 = arith.constant 0 : index
    %165 = vector.load %arg1[%c1_181, %c3_182, %c0_183] : memref<2x32x96xf32, #tpu.memory_space<vmem>>, vector<1x28x96xf32>
    %166 = vector.shape_cast %165 : vector<1x28x96xf32> to vector<28x96xf32>
    %c3_184 = arith.constant 3 : index
    %c0_185 = arith.constant 0 : index
    %c0_186 = arith.constant 0 : index
    %167 = vector.load %arg2[%c3_184, %c0_185, %c0_186] : memref<5x96x168xf32, #tpu.memory_space<vmem>>, vector<1x96x168xf32>
    %168 = vector.shape_cast %167 : vector<1x96x168xf32> to vector<96x168xf32>
    %cst_187 = arith.constant dense<0.000000e+00> : vector<28x168xf32>
    %169 = tpu.matmul %166, %168, %cst_187 {dimension_numbers = #tpu.dot_dimension_numbers<[1], [0], [0], [1], [0, 0, 1, 1], [], []>} : vector<28x96xf32>, vector<96x168xf32>, vector<28x168xf32> -> vector<28x168xf32>
    %170 = arith.addf %164, %169 : vector<28x168xf32>
    %c1_188 = arith.constant 1 : index
    %c4_189 = arith.constant 4 : index
    %c0_190 = arith.constant 0 : index
    %171 = vector.load %arg1[%c1_188, %c4_189, %c0_190] : memref<2x32x96xf32, #tpu.memory_space<vmem>>, vector<1x28x96xf32>
    %172 = vector.shape_cast %171 : vector<1x28x96xf32> to vector<28x96xf32>
    %c4_191 = arith.constant 4 : index
    %c0_192 = arith.constant 0 : index
    %c0_193 = arith.constant 0 : index
    %173 = vector.load %arg2[%c4_191, %c0_192, %c0_193] : memref<5x96x168xf32, #tpu.memory_space<vmem>>, vector<1x96x168xf32>
    %174 = vector.shape_cast %173 : vector<1x96x168xf32> to vector<96x168xf32>
    %cst_194 = arith.constant dense<0.000000e+00> : vector<28x168xf32>
    %175 = tpu.matmul %172, %174, %cst_194 {dimension_numbers = #tpu.dot_dimension_numbers<[1], [0], [0], [1], [0, 0, 1, 1], [], []>} : vector<28x96xf32>, vector<96x168xf32>, vector<28x168xf32> -> vector<28x168xf32>
    %176 = arith.addf %170, %175 : vector<28x168xf32>
    %177 = vector.broadcast %0 : vector<1x168xf32> to vector<28x168xf32>
    %178 = arith.addf %176, %177 : vector<28x168xf32>
    %cst_195 = arith.constant 0.000000e+00 : f32
    %179 = vector.broadcast %cst_195 : f32 to vector<28x168xf32>
    %180 = arith.maximumf %178, %179 : vector<28x168xf32>
    %c0_196 = arith.constant 0 : index
    %c0_197 = arith.constant 0 : index
    %c0_198 = arith.constant 0 : index
    %181 = vector.load %arg4[%c0_196, %c0_197, %c0_198] : memref<2x14x28xf32, #tpu.memory_space<vmem>>, vector<1x14x28xf32>
    %182 = vector.shape_cast %181 : vector<1x14x28xf32> to vector<14x28xf32>
    %cst_199 = arith.constant dense<0.000000e+00> : vector<14x168xf32>
    %183 = tpu.matmul %182, %180, %cst_199 {dimension_numbers = #tpu.dot_dimension_numbers<[1], [0], [0], [1], [0, 0, 1, 1], [], []>} : vector<14x28xf32>, vector<28x168xf32>, vector<14x168xf32> -> vector<14x168xf32>
    %c1_200 = arith.constant 1 : index
    %c0_201 = arith.constant 0 : index
    %c0_202 = arith.constant 0 : index
    %184 = vector.load %arg4[%c1_200, %c0_201, %c0_202] : memref<2x14x28xf32, #tpu.memory_space<vmem>>, vector<1x14x28xf32>
    %185 = vector.shape_cast %184 : vector<1x14x28xf32> to vector<14x28xf32>
    %cst_203 = arith.constant dense<0.000000e+00> : vector<14x168xf32>
    %186 = tpu.matmul %185, %180, %cst_203 {dimension_numbers = #tpu.dot_dimension_numbers<[1], [0], [0], [1], [0, 0, 1, 1], [], []>} : vector<14x28xf32>, vector<28x168xf32>, vector<14x168xf32> -> vector<14x168xf32>
    %187 = arith.maximumf %183, %186 : vector<14x168xf32>
    %c0_204 = arith.constant 0 : index
    %c0_205 = arith.constant 0 : index
    %c0_206 = arith.constant 0 : index
    %188 = vector.load %arg5[%c0_204, %c0_205, %c0_206] : memref<2x168x84xf32, #tpu.memory_space<vmem>>, vector<1x168x84xf32>
    %189 = vector.shape_cast %188 : vector<1x168x84xf32> to vector<168x84xf32>
    %cst_207 = arith.constant dense<0.000000e+00> : vector<14x84xf32>
    %190 = tpu.matmul %187, %189, %cst_207 {dimension_numbers = #tpu.dot_dimension_numbers<[1], [0], [0], [1], [0, 0, 1, 1], [], []>} : vector<14x168xf32>, vector<168x84xf32>, vector<14x84xf32> -> vector<14x84xf32>
    %c1_208 = arith.constant 1 : index
    %c0_209 = arith.constant 0 : index
    %c0_210 = arith.constant 0 : index
    %191 = vector.load %arg5[%c1_208, %c0_209, %c0_210] : memref<2x168x84xf32, #tpu.memory_space<vmem>>, vector<1x168x84xf32>
    %192 = vector.shape_cast %191 : vector<1x168x84xf32> to vector<168x84xf32>
    %cst_211 = arith.constant dense<0.000000e+00> : vector<14x84xf32>
    %193 = tpu.matmul %187, %192, %cst_211 {dimension_numbers = #tpu.dot_dimension_numbers<[1], [0], [0], [1], [0, 0, 1, 1], [], []>} : vector<14x168xf32>, vector<168x84xf32>, vector<14x84xf32> -> vector<14x84xf32>
    %194 = arith.maximumf %190, %193 : vector<14x84xf32>
    %c1_212 = arith.constant 1 : index
    %c0_213 = arith.constant 0 : index
    %c0_214 = arith.constant 0 : index
    %195 = vector.load %arg17[%c1_212, %c0_213, %c0_214] : memref<2x14x84xf32, #tpu.memory_space<vmem>>, vector<1x14x84xf32>
    %196 = vector.shape_cast %195 : vector<1x14x84xf32> to vector<14x84xf32>
    %197 = vector.shape_cast %194 : vector<14x84xf32> to vector<1x14x84xf32>
    tpu.vector_store %arg17[%c1_212, %c0_213, %c0_214], %197 {strides = array<i32>} : memref<2x14x84xf32, #tpu.memory_space<vmem>>, vector<1x14x84xf32>,
    %c1_215 = arith.constant 1 : index
    %c0_216 = arith.constant 0 : index
    %c0_217 = arith.constant 0 : index
    %198 = vector.load %arg17[%c1_215, %c0_216, %c0_217] : memref<2x14x84xf32, #tpu.memory_space<vmem>>, vector<1x10x84xf32>
    %199 = vector.shape_cast %198 : vector<1x10x84xf32> to vector<10x84xf32>
    %c0_218 = arith.constant 0 : index
    %c0_219 = arith.constant 0 : index
    %c0_220 = arith.constant 0 : index
    %200 = vector.load %arg6[%c0_218, %c0_219, %c0_220] : memref<5x84x160xf32, #tpu.memory_space<vmem>>, vector<1x84x160xf32>
    %201 = vector.shape_cast %200 : vector<1x84x160xf32> to vector<84x160xf32>
    %cst_221 = arith.constant dense<0.000000e+00> : vector<10x160xf32>
    %202 = tpu.matmul %199, %201, %cst_221 {dimension_numbers = #tpu.dot_dimension_numbers<[1], [0], [0], [1], [0, 0, 1, 1], [], []>} : vector<10x84xf32>, vector<84x160xf32>, vector<10x160xf32> -> vector<10x160xf32>
    %c1_222 = arith.constant 1 : index
    %c1_223 = arith.constant 1 : index
    %c0_224 = arith.constant 0 : index
    %203 = vector.load %arg17[%c1_222, %c1_223, %c0_224] : memref<2x14x84xf32, #tpu.memory_space<vmem>>, vector<1x10x84xf32>
    %204 = vector.shape_cast %203 : vector<1x10x84xf32> to vector<10x84xf32>
    %c1_225 = arith.constant 1 : index
    %c0_226 = arith.constant 0 : index
    %c0_227 = arith.constant 0 : index
    %205 = vector.load %arg6[%c1_225, %c0_226, %c0_227] : memref<5x84x160xf32, #tpu.memory_space<vmem>>, vector<1x84x160xf32>
    %206 = vector.shape_cast %205 : vector<1x84x160xf32> to vector<84x160xf32>
    %cst_228 = arith.constant dense<0.000000e+00> : vector<10x160xf32>
    %207 = tpu.matmul %204, %206, %cst_228 {dimension_numbers = #tpu.dot_dimension_numbers<[1], [0], [0], [1], [0, 0, 1, 1], [], []>} : vector<10x84xf32>, vector<84x160xf32>, vector<10x160xf32> -> vector<10x160xf32>
    %208 = arith.addf %202, %207 : vector<10x160xf32>
    %c1_229 = arith.constant 1 : index
    %c2_230 = arith.constant 2 : index
    %c0_231 = arith.constant 0 : index
    %209 = vector.load %arg17[%c1_229, %c2_230, %c0_231] : memref<2x14x84xf32, #tpu.memory_space<vmem>>, vector<1x10x84xf32>
    %210 = vector.shape_cast %209 : vector<1x10x84xf32> to vector<10x84xf32>
    %c2_232 = arith.constant 2 : index
    %c0_233 = arith.constant 0 : index
    %c0_234 = arith.constant 0 : index
    %211 = vector.load %arg6[%c2_232, %c0_233, %c0_234] : memref<5x84x160xf32, #tpu.memory_space<vmem>>, vector<1x84x160xf32>
    %212 = vector.shape_cast %211 : vector<1x84x160xf32> to vector<84x160xf32>
    %cst_235 = arith.constant dense<0.000000e+00> : vector<10x160xf32>
    %213 = tpu.matmul %210, %212, %cst_235 {dimension_numbers = #tpu.dot_dimension_numbers<[1], [0], [0], [1], [0, 0, 1, 1], [], []>} : vector<10x84xf32>, vector<84x160xf32>, vector<10x160xf32> -> vector<10x160xf32>
    %214 = arith.addf %208, %213 : vector<10x160xf32>
    %c1_236 = arith.constant 1 : index
    %c3_237 = arith.constant 3 : index
    %c0_238 = arith.constant 0 : index
    %215 = vector.load %arg17[%c1_236, %c3_237, %c0_238] : memref<2x14x84xf32, #tpu.memory_space<vmem>>, vector<1x10x84xf32>
    %216 = vector.shape_cast %215 : vector<1x10x84xf32> to vector<10x84xf32>
    %c3_239 = arith.constant 3 : index
    %c0_240 = arith.constant 0 : index
    %c0_241 = arith.constant 0 : index
    %217 = vector.load %arg6[%c3_239, %c0_240, %c0_241] : memref<5x84x160xf32, #tpu.memory_space<vmem>>, vector<1x84x160xf32>
    %218 = vector.shape_cast %217 : vector<1x84x160xf32> to vector<84x160xf32>
    %cst_242 = arith.constant dense<0.000000e+00> : vector<10x160xf32>
    %219 = tpu.matmul %216, %218, %cst_242 {dimension_numbers = #tpu.dot_dimension_numbers<[1], [0], [0], [1], [0, 0, 1, 1], [], []>} : vector<10x84xf32>, vector<84x160xf32>, vector<10x160xf32> -> vector<10x160xf32>
    %220 = arith.addf %214, %219 : vector<10x160xf32>
    %c1_243 = arith.constant 1 : index
    %c4_244 = arith.constant 4 : index
    %c0_245 = arith.constant 0 : index
    %221 = vector.load %arg17[%c1_243, %c4_244, %c0_245] : memref<2x14x84xf32, #tpu.memory_space<vmem>>, vector<1x10x84xf32>
    %222 = vector.shape_cast %221 : vector<1x10x84xf32> to vector<10x84xf32>
    %c4_246 = arith.constant 4 : index
    %c0_247 = arith.constant 0 : index
    %c0_248 = arith.constant 0 : index
    %223 = vector.load %arg6[%c4_246, %c0_247, %c0_248] : memref<5x84x160xf32, #tpu.memory_space<vmem>>, vector<1x84x160xf32>
    %224 = vector.shape_cast %223 : vector<1x84x160xf32> to vector<84x160xf32>
    %cst_249 = arith.constant dense<0.000000e+00> : vector<10x160xf32>
    %225 = tpu.matmul %222, %224, %cst_249 {dimension_numbers = #tpu.dot_dimension_numbers<[1], [0], [0], [1], [0, 0, 1, 1], [], []>} : vector<10x84xf32>, vector<84x160xf32>, vector<10x160xf32> -> vector<10x160xf32>
    %226 = arith.addf %220, %225 : vector<10x160xf32>
    %227 = vector.broadcast %1 : vector<1x160xf32> to vector<10x160xf32>
    %228 = arith.addf %226, %227 : vector<10x160xf32>
    %cst_250 = arith.constant 0.000000e+00 : f32
    %229 = vector.broadcast %cst_250 : f32 to vector<10x160xf32>
    %230 = arith.maximumf %228, %229 : vector<10x160xf32>
    %c0_251 = arith.constant 0 : index
    %c0_252 = arith.constant 0 : index
    %c0_253 = arith.constant 0 : index
    %231 = vector.load %arg8[%c0_251, %c0_252, %c0_253] : memref<2x5x10xf32, #tpu.memory_space<vmem>>, vector<1x5x10xf32>
    %232 = vector.shape_cast %231 : vector<1x5x10xf32> to vector<5x10xf32>
    %cst_254 = arith.constant dense<0.000000e+00> : vector<5x160xf32>
    %233 = tpu.matmul %232, %230, %cst_254 {dimension_numbers = #tpu.dot_dimension_numbers<[1], [0], [0], [1], [0, 0, 1, 1], [], []>} : vector<5x10xf32>, vector<10x160xf32>, vector<5x160xf32> -> vector<5x160xf32>
    %c1_255 = arith.constant 1 : index
    %c0_256 = arith.constant 0 : index
    %c0_257 = arith.constant 0 : index
    %234 = vector.load %arg8[%c1_255, %c0_256, %c0_257] : memref<2x5x10xf32, #tpu.memory_space<vmem>>, vector<1x5x10xf32>
    %235 = vector.shape_cast %234 : vector<1x5x10xf32> to vector<5x10xf32>
    %cst_258 = arith.constant dense<0.000000e+00> : vector<5x160xf32>
    %236 = tpu.matmul %235, %230, %cst_258 {dimension_numbers = #tpu.dot_dimension_numbers<[1], [0], [0], [1], [0, 0, 1, 1], [], []>} : vector<5x10xf32>, vector<10x160xf32>, vector<5x160xf32> -> vector<5x160xf32>
    %237 = arith.maximumf %233, %236 : vector<5x160xf32>
    %c0_259 = arith.constant 0 : index
    %c0_260 = arith.constant 0 : index
    %c0_261 = arith.constant 0 : index
    %238 = vector.load %arg9[%c0_259, %c0_260, %c0_261] : memref<2x160x80xf32, #tpu.memory_space<vmem>>, vector<1x160x80xf32>
    %239 = vector.shape_cast %238 : vector<1x160x80xf32> to vector<160x80xf32>
    %cst_262 = arith.constant dense<0.000000e+00> : vector<5x80xf32>
    %240 = tpu.matmul %237, %239, %cst_262 {dimension_numbers = #tpu.dot_dimension_numbers<[1], [0], [0], [1], [0, 0, 1, 1], [], []>} : vector<5x160xf32>, vector<160x80xf32>, vector<5x80xf32> -> vector<5x80xf32>
    %c1_263 = arith.constant 1 : index
    %c0_264 = arith.constant 0 : index
    %c0_265 = arith.constant 0 : index
    %241 = vector.load %arg9[%c1_263, %c0_264, %c0_265] : memref<2x160x80xf32, #tpu.memory_space<vmem>>, vector<1x160x80xf32>
    %242 = vector.shape_cast %241 : vector<1x160x80xf32> to vector<160x80xf32>
    %cst_266 = arith.constant dense<0.000000e+00> : vector<5x80xf32>
    %243 = tpu.matmul %237, %242, %cst_266 {dimension_numbers = #tpu.dot_dimension_numbers<[1], [0], [0], [1], [0, 0, 1, 1], [], []>} : vector<5x160xf32>, vector<160x80xf32>, vector<5x80xf32> -> vector<5x80xf32>
    %244 = arith.maximumf %240, %243 : vector<5x80xf32>
    %c1_267 = arith.constant 1 : index
    %c0_268 = arith.constant 0 : index
    %c0_269 = arith.constant 0 : index
    %245 = vector.load %arg18[%c1_267, %c0_268, %c0_269] : memref<2x5x80xf32, #tpu.memory_space<vmem>>, vector<1x5x80xf32>
    %246 = vector.shape_cast %245 : vector<1x5x80xf32> to vector<5x80xf32>
    %247 = vector.shape_cast %244 : vector<5x80xf32> to vector<1x5x80xf32>
    tpu.vector_store %arg18[%c1_267, %c0_268, %c0_269], %247 {strides = array<i32>} : memref<2x5x80xf32, #tpu.memory_space<vmem>>, vector<1x5x80xf32>,
    %c1_270 = arith.constant 1 : index
    %c0_271 = arith.constant 0 : index
    %c0_272 = arith.constant 0 : index
    %248 = vector.load %arg18[%c1_270, %c0_271, %c0_272] : memref<2x5x80xf32, #tpu.memory_space<vmem>>, vector<1x1x80xf32>
    %249 = vector.shape_cast %248 : vector<1x1x80xf32> to vector<1x80xf32>
    %c0_273 = arith.constant 0 : index
    %c0_274 = arith.constant 0 : index
    %c0_275 = arith.constant 0 : index
    %250 = vector.load %arg10[%c0_273, %c0_274, %c0_275] : memref<5x80x120xf32, #tpu.memory_space<vmem>>, vector<1x80x120xf32>
    %251 = vector.shape_cast %250 : vector<1x80x120xf32> to vector<80x120xf32>
    %cst_276 = arith.constant dense<0.000000e+00> : vector<1x120xf32>
    %252 = tpu.matmul %249, %251, %cst_276 {dimension_numbers = #tpu.dot_dimension_numbers<[1], [0], [0], [1], [0, 0, 1, 1], [], []>} : vector<1x80xf32>, vector<80x120xf32>, vector<1x120xf32> -> vector<1x120xf32>
    %253 = arith.addf %2, %252 : vector<1x120xf32>
    %c1_277 = arith.constant 1 : index
    %c1_278 = arith.constant 1 : index
    %c0_279 = arith.constant 0 : index
    %254 = vector.load %arg18[%c1_277, %c1_278, %c0_279] : memref<2x5x80xf32, #tpu.memory_space<vmem>>, vector<1x1x80xf32>
    %255 = vector.shape_cast %254 : vector<1x1x80xf32> to vector<1x80xf32>
    %c1_280 = arith.constant 1 : index
    %c0_281 = arith.constant 0 : index
    %c0_282 = arith.constant 0 : index
    %256 = vector.load %arg10[%c1_280, %c0_281, %c0_282] : memref<5x80x120xf32, #tpu.memory_space<vmem>>, vector<1x80x120xf32>
    %257 = vector.shape_cast %256 : vector<1x80x120xf32> to vector<80x120xf32>
    %cst_283 = arith.constant dense<0.000000e+00> : vector<1x120xf32>
    %258 = tpu.matmul %255, %257, %cst_283 {dimension_numbers = #tpu.dot_dimension_numbers<[1], [0], [0], [1], [0, 0, 1, 1], [], []>} : vector<1x80xf32>, vector<80x120xf32>, vector<1x120xf32> -> vector<1x120xf32>
    %259 = arith.addf %253, %258 : vector<1x120xf32>
    %c1_284 = arith.constant 1 : index
    %c2_285 = arith.constant 2 : index
    %c0_286 = arith.constant 0 : index
    %260 = vector.load %arg18[%c1_284, %c2_285, %c0_286] : memref<2x5x80xf32, #tpu.memory_space<vmem>>, vector<1x1x80xf32>
    %261 = vector.shape_cast %260 : vector<1x1x80xf32> to vector<1x80xf32>
    %c2_287 = arith.constant 2 : index
    %c0_288 = arith.constant 0 : index
    %c0_289 = arith.constant 0 : index
    %262 = vector.load %arg10[%c2_287, %c0_288, %c0_289] : memref<5x80x120xf32, #tpu.memory_space<vmem>>, vector<1x80x120xf32>
    %263 = vector.shape_cast %262 : vector<1x80x120xf32> to vector<80x120xf32>
    %cst_290 = arith.constant dense<0.000000e+00> : vector<1x120xf32>
    %264 = tpu.matmul %261, %263, %cst_290 {dimension_numbers = #tpu.dot_dimension_numbers<[1], [0], [0], [1], [0, 0, 1, 1], [], []>} : vector<1x80xf32>, vector<80x120xf32>, vector<1x120xf32> -> vector<1x120xf32>
    %265 = arith.addf %259, %264 : vector<1x120xf32>
    %c1_291 = arith.constant 1 : index
    %c3_292 = arith.constant 3 : index
    %c0_293 = arith.constant 0 : index
    %266 = vector.load %arg18[%c1_291, %c3_292, %c0_293] : memref<2x5x80xf32, #tpu.memory_space<vmem>>, vector<1x1x80xf32>
    %267 = vector.shape_cast %266 : vector<1x1x80xf32> to vector<1x80xf32>
    %c3_294 = arith.constant 3 : index
    %c0_295 = arith.constant 0 : index
    %c0_296 = arith.constant 0 : index
    %268 = vector.load %arg10[%c3_294, %c0_295, %c0_296] : memref<5x80x120xf32, #tpu.memory_space<vmem>>, vector<1x80x120xf32>
    %269 = vector.shape_cast %268 : vector<1x80x120xf32> to vector<80x120xf32>
    %cst_297 = arith.constant dense<0.000000e+00> : vector<1x120xf32>
    %270 = tpu.matmul %267, %269, %cst_297 {dimension_numbers = #tpu.dot_dimension_numbers<[1], [0], [0], [1], [0, 0, 1, 1], [], []>} : vector<1x80xf32>, vector<80x120xf32>, vector<1x120xf32> -> vector<1x120xf32>
    %271 = arith.addf %265, %270 : vector<1x120xf32>
    %c1_298 = arith.constant 1 : index
    %c4_299 = arith.constant 4 : index
    %c0_300 = arith.constant 0 : index
    %272 = vector.load %arg18[%c1_298, %c4_299, %c0_300] : memref<2x5x80xf32, #tpu.memory_space<vmem>>, vector<1x1x80xf32>
    %273 = vector.shape_cast %272 : vector<1x1x80xf32> to vector<1x80xf32>
    %c4_301 = arith.constant 4 : index
    %c0_302 = arith.constant 0 : index
    %c0_303 = arith.constant 0 : index
    %274 = vector.load %arg10[%c4_301, %c0_302, %c0_303] : memref<5x80x120xf32, #tpu.memory_space<vmem>>, vector<1x80x120xf32>
    %275 = vector.shape_cast %274 : vector<1x80x120xf32> to vector<80x120xf32>
    %cst_304 = arith.constant dense<0.000000e+00> : vector<1x120xf32>
    %276 = tpu.matmul %273, %275, %cst_304 {dimension_numbers = #tpu.dot_dimension_numbers<[1], [0], [0], [1], [0, 0, 1, 1], [], []>} : vector<1x80xf32>, vector<80x120xf32>, vector<1x120xf32> -> vector<1x120xf32>
    %277 = arith.addf %271, %276 : vector<1x120xf32>
    %cst_305 = arith.constant 0.000000e+00 : f32
    %278 = vector.broadcast %cst_305 : f32 to vector<1x120xf32>
    %279 = arith.maximumf %277, %278 : vector<1x120xf32>
    %cst_306 = arith.constant dense<0.000000e+00> : vector<1x84xf32>
    %280 = tpu.matmul %279, %5, %cst_306 {dimension_numbers = #tpu.dot_dimension_numbers<[1], [0], [0], [1], [0, 0, 1, 1], [], []>} : vector<1x120xf32>, vector<120x84xf32>, vector<1x84xf32> -> vector<1x84xf32>
    %281 = arith.addf %280, %3 : vector<1x84xf32>
    %cst_307 = arith.constant 0.000000e+00 : f32
    %282 = vector.broadcast %cst_307 : f32 to vector<1x84xf32>
    %283 = arith.maximumf %281, %282 : vector<1x84xf32>
    %cst_308 = arith.constant dense<0.000000e+00> : vector<1x128xf32>
    %284 = tpu.matmul %283, %6, %cst_308 {dimension_numbers = #tpu.dot_dimension_numbers<[1], [0], [0], [1], [0, 0, 1, 1], [], []>} : vector<1x84xf32>, vector<84x128xf32>, vector<1x128xf32> -> vector<1x128xf32>
    %285 = arith.addf %284, %4 : vector<1x128xf32>
    %c0_309 = arith.constant 0 : index
    %c1_310 = arith.constant 1 : index
    %c0_311 = arith.constant 0 : index
    %286 = vector.load %arg16[%c0_309, %c1_310, %c0_311] : memref<1x2x128xf32, #tpu.memory_space<vmem>>, vector<1x1x128xf32>
    %287 = vector.shape_cast %286 : vector<1x1x128xf32> to vector<1x128xf32>
    %288 = vector.shape_cast %285 : vector<1x128xf32> to vector<1x1x128xf32>
    tpu.vector_store %arg16[%c0_309, %c1_310, %c0_311], %288 {strides = array<i32>} : memref<1x2x128xf32, #tpu.memory_space<vmem>>, vector<1x1x128xf32>,
    return
  }
  func.func @transform_0(%arg0: i32) -> (i32, i32, i32) {
    %c0_i32 = arith.constant 0 : i32
    %c0_i32_0 = arith.constant 0 : i32
    %c0_i32_1 = arith.constant 0 : i32
    return %arg0, %c0_i32, %c0_i32_0 : i32, i32, i32
  }
  func.func @transform_1(%arg0: i32) -> (i32, i32, i32) {
    %c0_i32 = arith.constant 0 : i32
    %c0_i32_0 = arith.constant 0 : i32
    %c0_i32_1 = arith.constant 0 : i32
    %c0_i32_2 = arith.constant 0 : i32
    return %c0_i32, %c0_i32_0, %c0_i32_1 : i32, i32, i32
  }
  func.func @transform_2(%arg0: i32) -> (i32, i32) {
    %c0_i32 = arith.constant 0 : i32
    %c0_i32_0 = arith.constant 0 : i32
    %c0_i32_1 = arith.constant 0 : i32
    return %c0_i32, %c0_i32_0 : i32, i32
  }
  func.func @transform_3(%arg0: i32) -> (i32, i32, i32) {
    %c0_i32 = arith.constant 0 : i32
    %c0_i32_0 = arith.constant 0 : i32
    %c0_i32_1 = arith.constant 0 : i32
    %c0_i32_2 = arith.constant 0 : i32
    return %c0_i32, %c0_i32_0, %c0_i32_1 : i32, i32, i32
  }
  func.func @transform_4(%arg0: i32) -> (i32, i32, i32) {
    %c0_i32 = arith.constant 0 : i32
    %c0_i32_0 = arith.constant 0 : i32
    %c0_i32_1 = arith.constant 0 : i32
    %c0_i32_2 = arith.constant 0 : i32
    return %c0_i32, %c0_i32_0, %c0_i32_1 : i32, i32, i32
  }
  func.func @transform_5(%arg0: i32) -> (i32, i32, i32) {
    %c0_i32 = arith.constant 0 : i32
    %c0_i32_0 = arith.constant 0 : i32
    %c0_i32_1 = arith.constant 0 : i32
    %c0_i32_2 = arith.constant 0 : i32
    return %c0_i32, %c0_i32_0, %c0_i32_1 : i32, i32, i32
  }
  func.func @transform_6(%arg0: i32) -> (i32, i32) {
    %c0_i32 = arith.constant 0 : i32
    %c0_i32_0 = arith.constant 0 : i32
    %c0_i32_1 = arith.constant 0 : i32
    return %c0_i32, %c0_i32_0 : i32, i32
  }
  func.func @transform_7(%arg0: i32) -> (i32, i32, i32) {
    %c0_i32 = arith.constant 0 : i32
    %c0_i32_0 = arith.constant 0 : i32
    %c0_i32_1 = arith.constant 0 : i32
    %c0_i32_2 = arith.constant 0 : i32
    return %c0_i32, %c0_i32_0, %c0_i32_1 : i32, i32, i32
  }
  func.func @transform_8(%arg0: i32) -> (i32, i32, i32) {
    %c0_i32 = arith.constant 0 : i32
    %c0_i32_0 = arith.constant 0 : i32
    %c0_i32_1 = arith.constant 0 : i32
    %c0_i32_2 = arith.constant 0 : i32
    return %c0_i32, %c0_i32_0, %c0_i32_1 : i32, i32, i32
  }
  func.func @transform_9(%arg0: i32) -> (i32, i32, i32) {
    %c0_i32 = arith.constant 0 : i32
    %c0_i32_0 = arith.constant 0 : i32
    %c0_i32_1 = arith.constant 0 : i32
    %c0_i32_2 = arith.constant 0 : i32
    return %c0_i32, %c0_i32_0, %c0_i32_1 : i32, i32, i32
  }
  func.func @transform_10(%arg0: i32) -> (i32, i32) {
    %c0_i32 = arith.constant 0 : i32
    %c0_i32_0 = arith.constant 0 : i32
    %c0_i32_1 = arith.constant 0 : i32
    return %c0_i32, %c0_i32_0 : i32, i32
  }
  func.func @transform_11(%arg0: i32) -> (i32, i32) {
    %c0_i32 = arith.constant 0 : i32
    %c0_i32_0 = arith.constant 0 : i32
    %c0_i32_1 = arith.constant 0 : i32
    return %c0_i32, %c0_i32_0 : i32, i32
  }
  func.func @transform_12(%arg0: i32) -> (i32, i32) {
    %c0_i32 = arith.constant 0 : i32
    %c0_i32_0 = arith.constant 0 : i32
    %c0_i32_1 = arith.constant 0 : i32
    return %c0_i32, %c0_i32_0 : i32, i32
  }
  func.func @transform_13(%arg0: i32) -> (i32, i32) {
    %c0_i32 = arith.constant 0 : i32
    %c0_i32_0 = arith.constant 0 : i32
    %c0_i32_1 = arith.constant 0 : i32
    return %c0_i32, %c0_i32_0 : i32, i32
  }
  func.func @transform_14(%arg0: i32) -> (i32, i32) {
    %c0_i32 = arith.constant 0 : i32
    %c0_i32_0 = arith.constant 0 : i32
    %c0_i32_1 = arith.constant 0 : i32
    return %c0_i32, %c0_i32_0 : i32, i32
  }
  func.func @transform_15(%arg0: i32) -> (i32, i32, i32) {
    %c0_i32 = arith.constant 0 : i32
    %c0_i32_0 = arith.constant 0 : i32
    %c0_i32_1 = arith.constant 0 : i32
    return %arg0, %c0_i32, %c0_i32_0 : i32, i32, i32
  }
}

</mosaic_0001>

<llo_original>
// kernel: lenet5_forward.1
$region0: #{lenet5_forward.1}
  #allocation0 [shape = 'u32[]', space=smem, size = 0x4, offset = 0x4, fixed_abs, tag = 'smem constant byte address 0x4 - core index']
  #allocation1 [shape = 'u32[72,128]{1,0:T(1,128)}', space=vmem, size = 0x9000, scoped, tag = 'internal scratch']
  #allocation2 [shape = 'f32[2,14,84]{2,1,0:T(8,128)}', space=vmem, size = 0x4000, scoped, tag = 'scratch operand']
  #allocation3 [shape = 'f32[2,5,80]{2,1,0:T(8,128)}', space=vmem, size = 0x2000, scoped, tag = 'scratch operand']
  %s0 = inlined_call_operand.vmem [shape: f32[2,32,96], index: 0, kind: input, shape index: {}]
  %s1 = inlined_call_operand.vmem [shape: f32[5,96,168], index: 1, kind: input, shape index: {}]
  %s2 = inlined_call_operand.vmem [shape: f32[1,168], index: 2, kind: input, shape index: {}]
  %s3 = inlined_call_operand.vmem [shape: f32[2,14,28], index: 3, kind: input, shape index: {}]
  %s4 = inlined_call_operand.vmem [shape: f32[2,168,84], index: 4, kind: input, shape index: {}]
  %s5 = inlined_call_operand.vmem [shape: f32[5,84,160], index: 5, kind: input, shape index: {}]
  %s6 = inlined_call_operand.vmem [shape: f32[1,160], index: 6, kind: input, shape index: {}]
  %s7 = inlined_call_operand.vmem [shape: f32[2,5,10], index: 7, kind: input, shape index: {}]
  %s8 = inlined_call_operand.vmem [shape: f32[2,160,80], index: 8, kind: input, shape index: {}]
  %s9 = inlined_call_operand.vmem [shape: f32[5,80,120], index: 9, kind: input, shape index: {}]
  %s10 = inlined_call_operand.vmem [shape: f32[1,120], index: 10, kind: input, shape index: {}]
  %s11 = inlined_call_operand.vmem [shape: f32[120,84], index: 11, kind: input, shape index: {}]
  %s12 = inlined_call_operand.vmem [shape: f32[1,84], index: 12, kind: input, shape index: {}]
  %s13 = inlined_call_operand.vmem [shape: f32[84,128], index: 13, kind: input, shape index: {}]
  %s14 = inlined_call_operand.vmem [shape: f32[1,128], index: 14, kind: input, shape index: {}]
  %s15 = inlined_call_operand.hbm [shape: f32[1,2,128], index: 15, kind: output, shape index: {}]
  %s16 = sld [smem:[#allocation0]]
  $region70: #{lenet5_forward.1} parent=0
    _
  %s18 = ssub.s32 1, %s16
  %s19 = scalar_select 0, %s18, %s16
  $region1: #{lenet5_forward.1} parent=0
    #allocation4 [shape = 'u8[1024]{0}', space=vmem, size = 0x400, scoped, tag = 'output window, operand 0, single buffered']
    #allocation5 [shape = 's32[1]{0}', space=sflag, size = 0x4, scoped, tag = 'scoped memory for lenet5_forward.1']
    %20 = vsyncpa [#allocation5], 0
    // Predicated region
    $region2: #{lenet5_forward.1} parent=1 // pred_check
      _
    $region3: #{lenet5_forward.1} parent=1 // pred_check_branch
      %22 = sbr.rel (0) target = $region5
    $region4: #{lenet5_forward.1} parent=1 // pred_region
      _
    $region5: #{lenet5_forward.1} parent=1 // pred_fallthru
      _
    // Predicated region
    $region6: #{lenet5_forward.1} parent=1 // pred_check
      _
    $region7: #{lenet5_forward.1} parent=1 // pred_check_branch
      %24 = sbr.rel (0) target = $region9
    $region8: #{lenet5_forward.1} parent=1 // pred_region
      _
    $region9: #{lenet5_forward.1} parent=1 // pred_fallthru
      _
    // Predicated region
    $region10: #{lenet5_forward.1} parent=1 // pred_check
      _
    $region11: #{lenet5_forward.1} parent=1 // pred_check_branch
      %26 = sbr.rel (0) target = $region13
    $region12: #{lenet5_forward.1} parent=1 // pred_region
      _
    $region13: #{lenet5_forward.1} parent=1 // pred_fallthru
      _
    // Predicated region
    $region14: #{lenet5_forward.1} parent=1 // pred_check
      _
    $region15: #{lenet5_forward.1} parent=1 // pred_check_branch
      %28 = sbr.rel (0) target = $region17
    $region16: #{lenet5_forward.1} parent=1 // pred_region
      _
    $region17: #{lenet5_forward.1} parent=1 // pred_fallthru
      _
    // Predicated region
    $region18: #{lenet5_forward.1} parent=1 // pred_check
      _
    $region19: #{lenet5_forward.1} parent=1 // pred_check_branch
      %30 = sbr.rel (0) target = $region21
    $region20: #{lenet5_forward.1} parent=1 // pred_region
      _
    $region21: #{lenet5_forward.1} parent=1 // pred_fallthru
      _
    // Predicated region
    $region22: #{lenet5_forward.1} parent=1 // pred_check
      _
    $region23: #{lenet5_forward.1} parent=1 // pred_check_branch
      %32 = sbr.rel (0) target = $region25
    $region24: #{lenet5_forward.1} parent=1 // pred_region
      _
    $region25: #{lenet5_forward.1} parent=1 // pred_fallthru
      _
    // Predicated region
    $region26: #{lenet5_forward.1} parent=1 // pred_check
      _
    $region27: #{lenet5_forward.1} parent=1 // pred_check_branch
      %34 = sbr.rel (0) target = $region29
    $region28: #{lenet5_forward.1} parent=1 // pred_region
      _
    $region29: #{lenet5_forward.1} parent=1 // pred_fallthru
      _
    // Predicated region
    $region30: #{lenet5_forward.1} parent=1 // pred_check
      _
    $region31: #{lenet5_forward.1} parent=1 // pred_check_branch
      %36 = sbr.rel (0) target = $region33
    $region32: #{lenet5_forward.1} parent=1 // pred_region
      _
    $region33: #{lenet5_forward.1} parent=1 // pred_fallthru
      _
    // Predicated region
    $region34: #{lenet5_forward.1} parent=1 // pred_check
      _
    $region35: #{lenet5_forward.1} parent=1 // pred_check_branch
      %38 = sbr.rel (0) target = $region37
    $region36: #{lenet5_forward.1} parent=1 // pred_region
      _
    $region37: #{lenet5_forward.1} parent=1 // pred_fallthru
      _
    // Predicated region
    $region38: #{lenet5_forward.1} parent=1 // pred_check
      _
    $region39: #{lenet5_forward.1} parent=1 // pred_check_branch
      %40 = sbr.rel (0) target = $region41
    $region40: #{lenet5_forward.1} parent=1 // pred_region
      _
    $region41: #{lenet5_forward.1} parent=1 // pred_fallthru
      _
    // Predicated region
    $region42: #{lenet5_forward.1} parent=1 // pred_check
      _
    $region43: #{lenet5_forward.1} parent=1 // pred_check_branch
      %42 = sbr.rel (0) target = $region45
    $region44: #{lenet5_forward.1} parent=1 // pred_region
      _
    $region45: #{lenet5_forward.1} parent=1 // pred_fallthru
      _
    // Predicated region
    $region46: #{lenet5_forward.1} parent=1 // pred_check
      _
    $region47: #{lenet5_forward.1} parent=1 // pred_check_branch
      %44 = sbr.rel (0) target = $region49
    $region48: #{lenet5_forward.1} parent=1 // pred_region
      _
    $region49: #{lenet5_forward.1} parent=1 // pred_fallthru
      _
    // Predicated region
    $region50: #{lenet5_forward.1} parent=1 // pred_check
      _
    $region51: #{lenet5_forward.1} parent=1 // pred_check_branch
      %46 = sbr.rel (0) target = $region53
    $region52: #{lenet5_forward.1} parent=1 // pred_region
      _
    $region53: #{lenet5_forward.1} parent=1 // pred_fallthru
      _
    // Predicated region
    $region54: #{lenet5_forward.1} parent=1 // pred_check
      _
    $region55: #{lenet5_forward.1} parent=1 // pred_check_branch
      %48 = sbr.rel (0) target = $region57
    $region56: #{lenet5_forward.1} parent=1 // pred_region
      _
    $region57: #{lenet5_forward.1} parent=1 // pred_fallthru
      _
    // Predicated region
    $region58: #{lenet5_forward.1} parent=1 // pred_check
      _
    $region59: #{lenet5_forward.1} parent=1 // pred_check_branch
      %50 = sbr.rel (0) target = $region61
    $region60: #{lenet5_forward.1} parent=1 // pred_region
      _
    $region61: #{lenet5_forward.1} parent=1 // pred_fallthru
      _
    %v51 = vld [vmem:[%s2] sm:$0x3]
    %v52 = vld [vmem:[%s6] sm:$0x3]
    %v53 = vld [vmem:[%s10] sm:$0x1]
    %v54 = vld [vmem:[%s12] sm:$0x1]
    %v55 = vld [vmem:[%s14] sm:$0x1]
    %v56 = vld [vmem:[%s11] sm:$0xff]
    %v57 = vld [vmem:[%s11 + $0x8] sm:$0xff]
    %v58 = vld [vmem:[%s11 + $0x10] sm:$0xff]
    %v59 = vld [vmem:[%s11 + $0x18] sm:$0xff]
    %v60 = vld [vmem:[%s11 + $0x20] sm:$0xff]
    %v61 = vld [vmem:[%s11 + $0x28] sm:$0xff]
    %v62 = vld [vmem:[%s11 + $0x30] sm:$0xff]
    %v63 = vld [vmem:[%s11 + $0x38] sm:$0xff]
    %v64 = vld [vmem:[%s11 + $0x40] sm:$0xff]
    %v65 = vld [vmem:[%s11 + $0x48] sm:$0xff]
    %v66 = vld [vmem:[%s11 + $0x50] sm:$0xff]
    %v67 = vld [vmem:[%s11 + $0x58] sm:$0xff]
    %v68 = vld [vmem:[%s11 + $0x60] sm:$0xff]
    %v69 = vld [vmem:[%s11 + $0x68] sm:$0xff]
    %v70 = vld [vmem:[%s11 + $0x70] sm:$0xff]
    %v71 = vld [vmem:[%s13] sm:$0xff]
    %v72 = vld [vmem:[%s13 + $0x8] sm:$0xff]
    %v73 = vld [vmem:[%s13 + $0x10] sm:$0xff]
    %v74 = vld [vmem:[%s13 + $0x18] sm:$0xff]
    %v75 = vld [vmem:[%s13 + $0x20] sm:$0xff]
    %v76 = vld [vmem:[%s13 + $0x28] sm:$0xff]
    %v77 = vld [vmem:[%s13 + $0x30] sm:$0xff]
    %v78 = vld [vmem:[%s13 + $0x38] sm:$0xff]
    %v79 = vld [vmem:[%s13 + $0x40] sm:$0xff]
    %v80 = vld [vmem:[%s13 + $0x48] sm:$0xff]
    %v81 = vld [vmem:[%s13 + $0x50] sm:$0xf]
    %v82 = vld [vmem:[%s0] sm:$0xff]
    %v83 = vld [vmem:[%s0 + $0x8] sm:$0xff]
    %v84 = vld [vmem:[%s0 + $0x10] sm:$0xff]
    %v85 = vld [vmem:[%s0 + $0x18] sm:$0xf]
    %v86 = vld [vmem:[%s1] sm:$0xff]
    %v87 = vld [vmem:[%s1 + $0x8] sm:$0xff]
    %v88 = vld [vmem:[%s1 + $0x10] sm:$0xff]
    %v89 = vld [vmem:[%s1 + $0x18] sm:$0xff]
    %v90 = vld [vmem:[%s1 + $0x20] sm:$0xff]
    %v91 = vld [vmem:[%s1 + $0x28] sm:$0xff]
    %v92 = vld [vmem:[%s1 + $0x30] sm:$0xff]
    %v93 = vld [vmem:[%s1 + $0x38] sm:$0xff]
    %v94 = vld [vmem:[%s1 + $0x40] sm:$0xff]
    %v95 = vld [vmem:[%s1 + $0x48] sm:$0xff]
    %v96 = vld [vmem:[%s1 + $0x50] sm:$0xff]
    %v97 = vld [vmem:[%s1 + $0x58] sm:$0xff]
    %v98 = vld [vmem:[%s1 + $0x60] sm:$0xff]
    %v99 = vld [vmem:[%s1 + $0x68] sm:$0xff]
    %v100 = vld [vmem:[%s1 + $0x70] sm:$0xff]
    %v101 = vld [vmem:[%s1 + $0x78] sm:$0xff]
    %v102 = vld [vmem:[%s1 + $0x80] sm:$0xff]
    %v103 = vld [vmem:[%s1 + $0x88] sm:$0xff]
    %v104 = vld [vmem:[%s1 + $0x90] sm:$0xff]
    %v105 = vld [vmem:[%s1 + $0x98] sm:$0xff]
    %v106 = vld [vmem:[%s1 + $0xa0] sm:$0xff]
    %v107 = vld [vmem:[%s1 + $0xa8] sm:$0xff]
    %v108 = vld [vmem:[%s1 + $0xb0] sm:$0xff]
    %v109 = vld [vmem:[%s1 + $0xb8] sm:$0xff]
    %v110 = vld [vmem:[%s0 + $0x1] sm:$0xff]
    %v111 = vld [vmem:[%s0 + $0x9] sm:$0xff]
    %v112 = vld [vmem:[%s0 + $0x11] sm:$0xff]
    %v113 = vld [vmem:[%s0 + $0x19] sm:$0xf]
    %s114 = scalar_lea.vmem %s1, 192
    %v115 = vld [vmem:[%s114] sm:$0xff]
    %v116 = vld [vmem:[%s114 + $0x8] sm:$0xff]
    %v117 = vld [vmem:[%s114 + $0x10] sm:$0xff]
    %v118 = vld [vmem:[%s114 + $0x18] sm:$0xff]
    %v119 = vld [vmem:[%s114 + $0x20] sm:$0xff]
    %v120 = vld [vmem:[%s114 + $0x28] sm:$0xff]
    %v121 = vld [vmem:[%s114 + $0x30] sm:$0xff]
    %v122 = vld [vmem:[%s114 + $0x38] sm:$0xff]
    %v123 = vld [vmem:[%s114 + $0x40] sm:$0xff]
    %v124 = vld [vmem:[%s114 + $0x48] sm:$0xff]
    %v125 = vld [vmem:[%s114 + $0x50] sm:$0xff]
    %v126 = vld [vmem:[%s114 + $0x58] sm:$0xff]
    %v127 = vld [vmem:[%s114 + $0x60] sm:$0xff]
    %v128 = vld [vmem:[%s114 + $0x68] sm:$0xff]
    %v129 = vld [vmem:[%s114 + $0x70] sm:$0xff]
    %v130 = vld [vmem:[%s114 + $0x78] sm:$0xff]
    %v131 = vld [vmem:[%s114 + $0x80] sm:$0xff]
    %v132 = vld [vmem:[%s114 + $0x88] sm:$0xff]
    %v133 = vld [vmem:[%s114 + $0x90] sm:$0xff]
    %v134 = vld [vmem:[%s114 + $0x98] sm:$0xff]
    %v135 = vld [vmem:[%s114 + $0xa0] sm:$0xff]
    %v136 = vld [vmem:[%s114 + $0xa8] sm:$0xff]
    %v137 = vld [vmem:[%s114 + $0xb0] sm:$0xff]
    %v138 = vld [vmem:[%s114 + $0xb8] sm:$0xff]
    %vm139 = vcmask 785408
    %v141 = vsel %vm139, %v110, 0
    %v144 = vsel %vm139, %v111, 0
    %v147 = vsel %vm139, %v112, 0
    %v150 = vsel %vm139, %v113, 0
    %152 = vmatpush.msra.mxu0 0.0
    %153 = vmatpush.msra.mxu0 0.0
    %154 = vmatpush.msra.mxu0 0.0
    %155 = vmatpush.msra.mxu0 0.0
    %156 = vmatpush.msra.mxu0 %v137
    %157 = vmatpush.msra.mxu0 %v135
    %158 = vmatpush.msra.mxu0 %v133
    %159 = vmatpush.msra.mxu0 %v131
    %160 = vmatpush.msra.mxu0 %v129
    %161 = vmatpush.msra.mxu0 %v127
    %162 = vmatpush.msra.mxu0 %v125
    %163 = vmatpush.msra.mxu0 %v123
    %164 = vmatpush.msra.mxu0 %v121
    %165 = vmatpush.msra.mxu0 %v119
    %166 = vmatpush.msra.mxu0 %v117
    %167 = vmatpush.msra.mxu0 %v115
    %168 = vmatmul.f32.gmra.mxu0 %v141
    %v169 = vpop.f32.mrf.mxu0
    %v170 = vadd.f32 0.0, %v169
    %171 = vmatmul.f32.gmra.mxu0 %v144
    %v172 = vpop.f32.mrf.mxu0
    %v173 = vadd.f32 0.0, %v172
    %174 = vmatmul.f32.gmra.mxu0 %v147
    %v175 = vpop.f32.mrf.mxu0
    %v176 = vadd.f32 0.0, %v175
    %177 = vmatmul.f32.gmra.mxu0 %v150
    %v178 = vpop.f32.mrf.mxu0
    %v179 = vadd.f32 0.0, %v178
    %180 = vdwg.mxu0
    %181 = vmatpush.msra.mxu0 0.0
    %182 = vmatpush.msra.mxu0 0.0
    %183 = vmatpush.msra.mxu0 0.0
    %184 = vmatpush.msra.mxu0 0.0
    %185 = vmatpush.msra.mxu0 %v138
    %186 = vmatpush.msra.mxu0 %v136
    %187 = vmatpush.msra.mxu0 %v134
    %188 = vmatpush.msra.mxu0 %v132
    %189 = vmatpush.msra.mxu0 %v130
    %190 = vmatpush.msra.mxu0 %v128
    %191 = vmatpush.msra.mxu0 %v126
    %192 = vmatpush.msra.mxu0 %v124
    %193 = vmatpush.msra.mxu0 %v122
    %194 = vmatpush.msra.mxu0 %v120
    %195 = vmatpush.msra.mxu0 %v118
    %196 = vmatpush.msra.mxu0 %v116
    %197 = vmatmul.f32.gmra.mxu0 %v141
    %v198 = vpop.f32.mrf.mxu0
    %v199 = vadd.f32 0.0, %v198
    %200 = vmatmul.f32.gmra.mxu0 %v144
    %v201 = vpop.f32.mrf.mxu0
    %v202 = vadd.f32 0.0, %v201
    %203 = vmatmul.f32.gmra.mxu0 %v147
    %v204 = vpop.f32.mrf.mxu0
    %v205 = vadd.f32 0.0, %v204
    %206 = vmatmul.f32.gmra.mxu0 %v150
    %v207 = vpop.f32.mrf.mxu0
    %v208 = vadd.f32 0.0, %v207
    %209 = vdwg.mxu0
    %v211 = vsel %vm139, %v82, 0
    %v214 = vsel %vm139, %v83, 0
    %v217 = vsel %vm139, %v84, 0
    %v220 = vsel %vm139, %v85, 0
    %222 = vmatpush.msra.mxu0 0.0
    %223 = vmatpush.msra.mxu0 0.0
    %224 = vmatpush.msra.mxu0 0.0
    %225 = vmatpush.msra.mxu0 0.0
    %226 = vmatpush.msra.mxu0 %v108
    %227 = vmatpush.msra.mxu0 %v106
    %228 = vmatpush.msra.mxu0 %v104
    %229 = vmatpush.msra.mxu0 %v102
    %230 = vmatpush.msra.mxu0 %v100
    %231 = vmatpush.msra.mxu0 %v98
    %232 = vmatpush.msra.mxu0 %v96
    %233 = vmatpush.msra.mxu0 %v94
    %234 = vmatpush.msra.mxu0 %v92
    %235 = vmatpush.msra.mxu0 %v90
    %236 = vmatpush.msra.mxu0 %v88
    %237 = vmatpush.msra.mxu0 %v86
    %238 = vmatmul.f32.gmra.mxu0 %v211
    %v239 = vpop.f32.mrf.mxu0
    %v240 = vadd.f32 %v170, %v239
    %241 = vmatmul.f32.gmra.mxu0 %v214
    %v242 = vpop.f32.mrf.mxu0
    %v243 = vadd.f32 %v173, %v242
    %244 = vmatmul.f32.gmra.mxu0 %v217
    %v245 = vpop.f32.mrf.mxu0
    %v246 = vadd.f32 %v176, %v245
    %247 = vmatmul.f32.gmra.mxu0 %v220
    %v248 = vpop.f32.mrf.mxu0
    %v249 = vadd.f32 %v179, %v248
    %250 = vdwg.mxu0
    %251 = vmatpush.msra.mxu0 0.0
    %252 = vmatpush.msra.mxu0 0.0
    %253 = vmatpush.msra.mxu0 0.0
    %254 = vmatpush.msra.mxu0 0.0
    %255 = vmatpush.msra.mxu0 %v109
    %256 = vmatpush.msra.mxu0 %v107
    %257 = vmatpush.msra.mxu0 %v105
    %258 = vmatpush.msra.mxu0 %v103
    %259 = vmatpush.msra.mxu0 %v101
    %260 = vmatpush.msra.mxu0 %v99
    %261 = vmatpush.msra.mxu0 %v97
    %262 = vmatpush.msra.mxu0 %v95
    %263 = vmatpush.msra.mxu0 %v93
    %264 = vmatpush.msra.mxu0 %v91
    %265 = vmatpush.msra.mxu0 %v89
    %266 = vmatpush.msra.mxu0 %v87
    %267 = vmatmul.f32.gmra.mxu0 %v211
    %v268 = vpop.f32.mrf.mxu0
    %v269 = vadd.f32 %v199, %v268
    %270 = vmatmul.f32.gmra.mxu0 %v214
    %v271 = vpop.f32.mrf.mxu0
    %v272 = vadd.f32 %v202, %v271
    %273 = vmatmul.f32.gmra.mxu0 %v217
    %v274 = vpop.f32.mrf.mxu0
    %v275 = vadd.f32 %v205, %v274
    %276 = vmatmul.f32.gmra.mxu0 %v220
    %v277 = vpop.f32.mrf.mxu0
    %v278 = vadd.f32 %v208, %v277
    %279 = vdwg.mxu0
    %v280 = vld [vmem:[%s0 + $0x2] sm:$0xff]
    %v281 = vld [vmem:[%s0 + $0xa] sm:$0xff]
    %v282 = vld [vmem:[%s0 + $0x12] sm:$0xff]
    %v283 = vld [vmem:[%s0 + $0x1a] sm:$0xf]
    %s284 = scalar_lea.vmem %s1, 384
    %v285 = vld [vmem:[%s284] sm:$0xff]
    %v286 = vld [vmem:[%s284 + $0x8] sm:$0xff]
    %v287 = vld [vmem:[%s284 + $0x10] sm:$0xff]
    %v288 = vld [vmem:[%s284 + $0x18] sm:$0xff]
    %v289 = vld [vmem:[%s284 + $0x20] sm:$0xff]
    %v290 = vld [vmem:[%s284 + $0x28] sm:$0xff]
    %v291 = vld [vmem:[%s284 + $0x30] sm:$0xff]
    %v292 = vld [vmem:[%s284 + $0x38] sm:$0xff]
    %v293 = vld [vmem:[%s284 + $0x40] sm:$0xff]
    %v294 = vld [vmem:[%s284 + $0x48] sm:$0xff]
    %v295 = vld [vmem:[%s284 + $0x50] sm:$0xff]
    %v296 = vld [vmem:[%s284 + $0x58] sm:$0xff]
    %v297 = vld [vmem:[%s284 + $0x60] sm:$0xff]
    %v298 = vld [vmem:[%s284 + $0x68] sm:$0xff]
    %v299 = vld [vmem:[%s284 + $0x70] sm:$0xff]
    %v300 = vld [vmem:[%s284 + $0x78] sm:$0xff]
    %v301 = vld [vmem:[%s284 + $0x80] sm:$0xff]
    %v302 = vld [vmem:[%s284 + $0x88] sm:$0xff]
    %v303 = vld [vmem:[%s284 + $0x90] sm:$0xff]
    %v304 = vld [vmem:[%s284 + $0x98] sm:$0xff]
    %v305 = vld [vmem:[%s284 + $0xa0] sm:$0xff]
    %v306 = vld [vmem:[%s284 + $0xa8] sm:$0xff]
    %v307 = vld [vmem:[%s284 + $0xb0] sm:$0xff]
    %v308 = vld [vmem:[%s284 + $0xb8] sm:$0xff]
    %v310 = vsel %vm139, %v280, 0
    %v313 = vsel %vm139, %v281, 0
    %v316 = vsel %vm139, %v282, 0
    %v319 = vsel %vm139, %v283, 0
    %321 = vmatpush.msra.mxu0 0.0
    %322 = vmatpush.msra.mxu0 0.0
    %323 = vmatpush.msra.mxu0 0.0
    %324 = vmatpush.msra.mxu0 0.0
    %325 = vmatpush.msra.mxu0 %v307
    %326 = vmatpush.msra.mxu0 %v305
    %327 = vmatpush.msra.mxu0 %v303
    %328 = vmatpush.msra.mxu0 %v301
    %329 = vmatpush.msra.mxu0 %v299
    %330 = vmatpush.msra.mxu0 %v297
    %331 = vmatpush.msra.mxu0 %v295
    %332 = vmatpush.msra.mxu0 %v293
    %333 = vmatpush.msra.mxu0 %v291
    %334 = vmatpush.msra.mxu0 %v289
    %335 = vmatpush.msra.mxu0 %v287
    %336 = vmatpush.msra.mxu0 %v285
    %337 = vmatmul.f32.gmra.mxu0 %v310
    %v338 = vpop.f32.mrf.mxu0
    %v339 = vadd.f32 0.0, %v338
    %340 = vmatmul.f32.gmra.mxu0 %v313
    %v341 = vpop.f32.mrf.mxu0
    %v342 = vadd.f32 0.0, %v341
    %343 = vmatmul.f32.gmra.mxu0 %v316
    %v344 = vpop.f32.mrf.mxu0
    %v345 = vadd.f32 0.0, %v344
    %346 = vmatmul.f32.gmra.mxu0 %v319
    %v347 = vpop.f32.mrf.mxu0
    %v348 = vadd.f32 0.0, %v347
    %349 = vdwg.mxu0
    %350 = vmatpush.msra.mxu0 0.0
    %351 = vmatpush.msra.mxu0 0.0
    %352 = vmatpush.msra.mxu0 0.0
    %353 = vmatpush.msra.mxu0 0.0
    %354 = vmatpush.msra.mxu0 %v308
    %355 = vmatpush.msra.mxu0 %v306
    %356 = vmatpush.msra.mxu0 %v304
    %357 = vmatpush.msra.mxu0 %v302
    %358 = vmatpush.msra.mxu0 %v300
    %359 = vmatpush.msra.mxu0 %v298
    %360 = vmatpush.msra.mxu0 %v296
    %361 = vmatpush.msra.mxu0 %v294
    %362 = vmatpush.msra.mxu0 %v292
    %363 = vmatpush.msra.mxu0 %v290
    %364 = vmatpush.msra.mxu0 %v288
    %365 = vmatpush.msra.mxu0 %v286
    %366 = vmatmul.f32.gmra.mxu0 %v310
    %v367 = vpop.f32.mrf.mxu0
    %v368 = vadd.f32 0.0, %v367
    %369 = vmatmul.f32.gmra.mxu0 %v313
    %v370 = vpop.f32.mrf.mxu0
    %v371 = vadd.f32 0.0, %v370
    %372 = vmatmul.f32.gmra.mxu0 %v316
    %v373 = vpop.f32.mrf.mxu0
    %v374 = vadd.f32 0.0, %v373
    %375 = vmatmul.f32.gmra.mxu0 %v319
    %v376 = vpop.f32.mrf.mxu0
    %v377 = vadd.f32 0.0, %v376
    %378 = vdwg.mxu0
    %v379 = vadd.f32 %v240, %v339
    %v380 = vadd.f32 %v269, %v368
    %v381 = vadd.f32 %v243, %v342
    %v382 = vadd.f32 %v272, %v371
    %v383 = vadd.f32 %v246, %v345
    %v384 = vadd.f32 %v275, %v374
    %v385 = vadd.f32 %v249, %v348
    %v386 = vadd.f32 %v278, %v377
    %v387 = vld [vmem:[%s0 + $0x3] sm:$0xff]
    %v388 = vld [vmem:[%s0 + $0xb] sm:$0xff]
    %v389 = vld [vmem:[%s0 + $0x13] sm:$0xff]
    %v390 = vld [vmem:[%s0 + $0x1b] sm:$0xf]
    %s391 = scalar_lea.vmem %s1, 576
    %v392 = vld [vmem:[%s391] sm:$0xff]
    %v393 = vld [vmem:[%s391 + $0x8] sm:$0xff]
    %v394 = vld [vmem:[%s391 + $0x10] sm:$0xff]
    %v395 = vld [vmem:[%s391 + $0x18] sm:$0xff]
    %v396 = vld [vmem:[%s391 + $0x20] sm:$0xff]
    %v397 = vld [vmem:[%s391 + $0x28] sm:$0xff]
    %v398 = vld [vmem:[%s391 + $0x30] sm:$0xff]
    %v399 = vld [vmem:[%s391 + $0x38] sm:$0xff]
    %v400 = vld [vmem:[%s391 + $0x40] sm:$0xff]
    %v401 = vld [vmem:[%s391 + $0x48] sm:$0xff]
    %v402 = vld [vmem:[%s391 + $0x50] sm:$0xff]
    %v403 = vld [vmem:[%s391 + $0x58] sm:$0xff]
    %v404 = vld [vmem:[%s391 + $0x60] sm:$0xff]
    %v405 = vld [vmem:[%s391 + $0x68] sm:$0xff]
    %v406 = vld [vmem:[%s391 + $0x70] sm:$0xff]
    %v407 = vld [vmem:[%s391 + $0x78] sm:$0xff]
    %v408 = vld [vmem:[%s391 + $0x80] sm:$0xff]
    %v409 = vld [vmem:[%s391 + $0x88] sm:$0xff]
    %v410 = vld [vmem:[%s391 + $0x90] sm:$0xff]
    %v411 = vld [vmem:[%s391 + $0x98] sm:$0xff]
    %v412 = vld [vmem:[%s391 + $0xa0] sm:$0xff]
    %v413 = vld [vmem:[%s391 + $0xa8] sm:$0xff]
    %v414 = vld [vmem:[%s391 + $0xb0] sm:$0xff]
    %v415 = vld [vmem:[%s391 + $0xb8] sm:$0xff]
    %v417 = vsel %vm139, %v387, 0
    %v420 = vsel %vm139, %v388, 0
    %v423 = vsel %vm139, %v389, 0
    %v426 = vsel %vm139, %v390, 0
    %428 = vmatpush.msra.mxu0 0.0
    %429 = vmatpush.msra.mxu0 0.0
    %430 = vmatpush.msra.mxu0 0.0
    %431 = vmatpush.msra.mxu0 0.0
    %432 = vmatpush.msra.mxu0 %v414
    %433 = vmatpush.msra.mxu0 %v412
    %434 = vmatpush.msra.mxu0 %v410
    %435 = vmatpush.msra.mxu0 %v408
    %436 = vmatpush.msra.mxu0 %v406
    %437 = vmatpush.msra.mxu0 %v404
    %438 = vmatpush.msra.mxu0 %v402
    %439 = vmatpush.msra.mxu0 %v400
    %440 = vmatpush.msra.mxu0 %v398
    %441 = vmatpush.msra.mxu0 %v396
    %442 = vmatpush.msra.mxu0 %v394
    %443 = vmatpush.msra.mxu0 %v392
    %444 = vmatmul.f32.gmra.mxu0 %v417
    %v445 = vpop.f32.mrf.mxu0
    %v446 = vadd.f32 0.0, %v445
    %447 = vmatmul.f32.gmra.mxu0 %v420
    %v448 = vpop.f32.mrf.mxu0
    %v449 = vadd.f32 0.0, %v448
    %450 = vmatmul.f32.gmra.mxu0 %v423
    %v451 = vpop.f32.mrf.mxu0
    %v452 = vadd.f32 0.0, %v451
    %453 = vmatmul.f32.gmra.mxu0 %v426
    %v454 = vpop.f32.mrf.mxu0
    %v455 = vadd.f32 0.0, %v454
    %456 = vdwg.mxu0
    %457 = vmatpush.msra.mxu0 0.0
    %458 = vmatpush.msra.mxu0 0.0
    %459 = vmatpush.msra.mxu0 0.0
    %460 = vmatpush.msra.mxu0 0.0
    %461 = vmatpush.msra.mxu0 %v415
    %462 = vmatpush.msra.mxu0 %v413
    %463 = vmatpush.msra.mxu0 %v411
    %464 = vmatpush.msra.mxu0 %v409
    %465 = vmatpush.msra.mxu0 %v407
    %466 = vmatpush.msra.mxu0 %v405
    %467 = vmatpush.msra.mxu0 %v403
    %468 = vmatpush.msra.mxu0 %v401
    %469 = vmatpush.msra.mxu0 %v399
    %470 = vmatpush.msra.mxu0 %v397
    %471 = vmatpush.msra.mxu0 %v395
    %472 = vmatpush.msra.mxu0 %v393
    %473 = vmatmul.f32.gmra.mxu0 %v417
    %v474 = vpop.f32.mrf.mxu0
    %v475 = vadd.f32 0.0, %v474
    %476 = vmatmul.f32.gmra.mxu0 %v420
    %v477 = vpop.f32.mrf.mxu0
    %v478 = vadd.f32 0.0, %v477
    %479 = vmatmul.f32.gmra.mxu0 %v423
    %v480 = vpop.f32.mrf.mxu0
    %v481 = vadd.f32 0.0, %v480
    %482 = vmatmul.f32.gmra.mxu0 %v426
    %v483 = vpop.f32.mrf.mxu0
    %v484 = vadd.f32 0.0, %v483
    %485 = vdwg.mxu0
    %v486 = vadd.f32 %v379, %v446
    %v487 = vadd.f32 %v380, %v475
    %v488 = vadd.f32 %v381, %v449
    %v489 = vadd.f32 %v382, %v478
    %v490 = vadd.f32 %v383, %v452
    %v491 = vadd.f32 %v384, %v481
    %v492 = vadd.f32 %v385, %v455
    %v493 = vadd.f32 %v386, %v484
    %v494 = vld [vmem:[%s0 + $0x4] sm:$0xff]
    %v495 = vld [vmem:[%s0 + $0xc] sm:$0xff]
    %v496 = vld [vmem:[%s0 + $0x14] sm:$0xff]
    %v497 = vld [vmem:[%s0 + $0x1c] sm:$0xf]
    %s498 = scalar_lea.vmem %s1, 768
    %v499 = vld [vmem:[%s498] sm:$0xff]
    %v500 = vld [vmem:[%s498 + $0x8] sm:$0xff]
    %v501 = vld [vmem:[%s498 + $0x10] sm:$0xff]
    %v502 = vld [vmem:[%s498 + $0x18] sm:$0xff]
    %v503 = vld [vmem:[%s498 + $0x20] sm:$0xff]
    %v504 = vld [vmem:[%s498 + $0x28] sm:$0xff]
    %v505 = vld [vmem:[%s498 + $0x30] sm:$0xff]
    %v506 = vld [vmem:[%s498 + $0x38] sm:$0xff]
    %v507 = vld [vmem:[%s498 + $0x40] sm:$0xff]
    %v508 = vld [vmem:[%s498 + $0x48] sm:$0xff]
    %v509 = vld [vmem:[%s498 + $0x50] sm:$0xff]
    %v510 = vld [vmem:[%s498 + $0x58] sm:$0xff]
    %v511 = vld [vmem:[%s498 + $0x60] sm:$0xff]
    %v512 = vld [vmem:[%s498 + $0x68] sm:$0xff]
    %v513 = vld [vmem:[%s498 + $0x70] sm:$0xff]
    %v514 = vld [vmem:[%s498 + $0x78] sm:$0xff]
    %v515 = vld [vmem:[%s498 + $0x80] sm:$0xff]
    %v516 = vld [vmem:[%s498 + $0x88] sm:$0xff]
    %v517 = vld [vmem:[%s498 + $0x90] sm:$0xff]
    %v518 = vld [vmem:[%s498 + $0x98] sm:$0xff]
    %v519 = vld [vmem:[%s498 + $0xa0] sm:$0xff]
    %v520 = vld [vmem:[%s498 + $0xa8] sm:$0xff]
    %v521 = vld [vmem:[%s498 + $0xb0] sm:$0xff]
    %v522 = vld [vmem:[%s498 + $0xb8] sm:$0xff]
    %v524 = vsel %vm139, %v494, 0
    %v527 = vsel %vm139, %v495, 0
    %v530 = vsel %vm139, %v496, 0
    %v533 = vsel %vm139, %v497, 0
    %535 = vmatpush.msra.mxu0 0.0
    %536 = vmatpush.msra.mxu0 0.0
    %537 = vmatpush.msra.mxu0 0.0
    %538 = vmatpush.msra.mxu0 0.0
    %539 = vmatpush.msra.mxu0 %v521
    %540 = vmatpush.msra.mxu0 %v519
    %541 = vmatpush.msra.mxu0 %v517
    %542 = vmatpush.msra.mxu0 %v515
    %543 = vmatpush.msra.mxu0 %v513
    %544 = vmatpush.msra.mxu0 %v511
    %545 = vmatpush.msra.mxu0 %v509
    %546 = vmatpush.msra.mxu0 %v507
    %547 = vmatpush.msra.mxu0 %v505
    %548 = vmatpush.msra.mxu0 %v503
    %549 = vmatpush.msra.mxu0 %v501
    %550 = vmatpush.msra.mxu0 %v499
    %551 = vmatmul.f32.gmra.mxu0 %v524
    %v552 = vpop.f32.mrf.mxu0
    %v553 = vadd.f32 0.0, %v552
    %554 = vmatmul.f32.gmra.mxu0 %v527
    %v555 = vpop.f32.mrf.mxu0
    %v556 = vadd.f32 0.0, %v555
    %557 = vmatmul.f32.gmra.mxu0 %v530
    %v558 = vpop.f32.mrf.mxu0
    %v559 = vadd.f32 0.0, %v558
    %560 = vmatmul.f32.gmra.mxu0 %v533
    %v561 = vpop.f32.mrf.mxu0
    %v562 = vadd.f32 0.0, %v561
    %563 = vdwg.mxu0
    %564 = vmatpush.msra.mxu0 0.0
    %565 = vmatpush.msra.mxu0 0.0
    %566 = vmatpush.msra.mxu0 0.0
    %567 = vmatpush.msra.mxu0 0.0
    %568 = vmatpush.msra.mxu0 %v522
    %569 = vmatpush.msra.mxu0 %v520
    %570 = vmatpush.msra.mxu0 %v518
    %571 = vmatpush.msra.mxu0 %v516
    %572 = vmatpush.msra.mxu0 %v514
    %573 = vmatpush.msra.mxu0 %v512
    %574 = vmatpush.msra.mxu0 %v510
    %575 = vmatpush.msra.mxu0 %v508
    %576 = vmatpush.msra.mxu0 %v506
    %577 = vmatpush.msra.mxu0 %v504
    %578 = vmatpush.msra.mxu0 %v502
    %579 = vmatpush.msra.mxu0 %v500
    %580 = vmatmul.f32.gmra.mxu0 %v524
    %v581 = vpop.f32.mrf.mxu0
    %v582 = vadd.f32 0.0, %v581
    %583 = vmatmul.f32.gmra.mxu0 %v527
    %v584 = vpop.f32.mrf.mxu0
    %v585 = vadd.f32 0.0, %v584
    %586 = vmatmul.f32.gmra.mxu0 %v530
    %v587 = vpop.f32.mrf.mxu0
    %v588 = vadd.f32 0.0, %v587
    %589 = vmatmul.f32.gmra.mxu0 %v533
    %v590 = vpop.f32.mrf.mxu0
    %v591 = vadd.f32 0.0, %v590
    %592 = vdwg.mxu0
    %v593 = vadd.f32 %v486, %v553
    %v594 = vadd.f32 %v487, %v582
    %v595 = vadd.f32 %v488, %v556
    %v596 = vadd.f32 %v489, %v585
    %v597 = vadd.f32 %v490, %v559
    %v598 = vadd.f32 %v491, %v588
    %v599 = vadd.f32 %v492, %v562
    %v600 = vadd.f32 %v493, %v591
    %v602 = vperm.slane %v51, 0
    %v603 = vperm.slane %v51, 1
    %v606 = vadd.f32 %v593, %v602
    %v607 = vadd.f32 %v594, %v603
    %v608 = vadd.f32 %v595, %v602
    %v609 = vadd.f32 %v596, %v603
    %v610 = vadd.f32 %v597, %v602
    %v611 = vadd.f32 %v598, %v603
    %v612 = vadd.f32 %v599, %v602
    %v613 = vadd.f32 %v600, %v603
    %v614 = vmax.f32 %v606, 0.0
    %v615 = vmax.f32 %v607, 0.0
    %v616 = vmax.f32 %v608, 0.0
    %v617 = vmax.f32 %v609, 0.0
    %v618 = vmax.f32 %v610, 0.0
    %v619 = vmax.f32 %v611, 0.0
    %v620 = vmax.f32 %v612, 0.0
    %v621 = vmax.f32 %v613, 0.0
    %v622 = vld [vmem:[%s3] sm:$0xff]
    %v623 = vld [vmem:[%s3 + $0x8] sm:$0x3f]
    %vm624 = vcmask 228352
    %v626 = vsel %vm624, %v622, 0
    %v629 = vsel %vm624, %v623, 0
    %vm631 = vcmask 1043456
    %v633 = vsel %vm631, %v620, 0
    %v636 = vsel %vm631, %v621, 0
    %638 = vmatpush.msra.mxu0 0.0
    %639 = vmatpush.msra.mxu0 0.0
    %640 = vmatpush.msra.mxu0 0.0
    %641 = vmatpush.msra.mxu0 0.0
    %642 = vmatpush.msra.mxu0 0.0
    %643 = vmatpush.msra.mxu0 0.0
    %644 = vmatpush.msra.mxu0 0.0
    %645 = vmatpush.msra.mxu0 0.0
    %646 = vmatpush.msra.mxu0 0.0
    %647 = vmatpush.msra.mxu0 0.0
    %648 = vmatpush.msra.mxu0 0.0
    %649 = vmatpush.msra.mxu0 0.0
    %650 = vmatpush.msra.mxu0 %v633
    %651 = vmatpush.msra.mxu0 %v618
    %652 = vmatpush.msra.mxu0 %v616
    %653 = vmatpush.msra.mxu0 %v614
    %654 = vmatmul.f32.gmra.mxu0 %v626
    %v655 = vpop.f32.mrf.mxu0
    %v656 = vadd.f32 0.0, %v655
    %657 = vmatmul.f32.gmra.mxu0 %v629
    %v658 = vpop.f32.mrf.mxu0
    %v659 = vadd.f32 0.0, %v658
    %660 = vdwg.mxu0
    %661 = vmatpush.msra.mxu0 0.0
    %662 = vmatpush.msra.mxu0 0.0
    %663 = vmatpush.msra.mxu0 0.0
    %664 = vmatpush.msra.mxu0 0.0
    %665 = vmatpush.msra.mxu0 0.0
    %666 = vmatpush.msra.mxu0 0.0
    %667 = vmatpush.msra.mxu0 0.0
    %668 = vmatpush.msra.mxu0 0.0
    %669 = vmatpush.msra.mxu0 0.0
    %670 = vmatpush.msra.mxu0 0.0
    %671 = vmatpush.msra.mxu0 0.0
    %672 = vmatpush.msra.mxu0 0.0
    %673 = vmatpush.msra.mxu0 %v636
    %674 = vmatpush.msra.mxu0 %v619
    %675 = vmatpush.msra.mxu0 %v617
    %676 = vmatpush.msra.mxu0 %v615
    %677 = vmatmul.f32.gmra.mxu0 %v626
    %v678 = vpop.f32.mrf.mxu0
    %v679 = vadd.f32 0.0, %v678
    %680 = vmatmul.f32.gmra.mxu0 %v629
    %v681 = vpop.f32.mrf.mxu0
    %v682 = vadd.f32 0.0, %v681
    %683 = vdwg.mxu0
    %s684 = scalar_lea.vmem %s3, 16
    %v685 = vld [vmem:[%s684] sm:$0xff]
    %v686 = vld [vmem:[%s684 + $0x8] sm:$0x3f]
    %v688 = vsel %vm624, %v685, 0
    %v691 = vsel %vm624, %v686, 0
    %693 = vmatpush.msra.mxu0 0.0
    %694 = vmatpush.msra.mxu0 0.0
    %695 = vmatpush.msra.mxu0 0.0
    %696 = vmatpush.msra.mxu0 0.0
    %697 = vmatpush.msra.mxu0 0.0
    %698 = vmatpush.msra.mxu0 0.0
    %699 = vmatpush.msra.mxu0 0.0
    %700 = vmatpush.msra.mxu0 0.0
    %701 = vmatpush.msra.mxu0 0.0
    %702 = vmatpush.msra.mxu0 0.0
    %703 = vmatpush.msra.mxu0 0.0
    %704 = vmatpush.msra.mxu0 0.0
    %705 = vmatpush.msra.mxu0 %v633
    %706 = vmatpush.msra.mxu0 %v618
    %707 = vmatpush.msra.mxu0 %v616
    %708 = vmatpush.msra.mxu0 %v614
    %709 = vmatmul.f32.gmra.mxu0 %v688
    %v710 = vpop.f32.mrf.mxu0
    %v711 = vadd.f32 0.0, %v710
    %712 = vmatmul.f32.gmra.mxu0 %v691
    %v713 = vpop.f32.mrf.mxu0
    %v714 = vadd.f32 0.0, %v713
    %715 = vdwg.mxu0
    %716 = vmatpush.msra.mxu0 0.0
    %717 = vmatpush.msra.mxu0 0.0
    %718 = vmatpush.msra.mxu0 0.0
    %719 = vmatpush.msra.mxu0 0.0
    %720 = vmatpush.msra.mxu0 0.0
    %721 = vmatpush.msra.mxu0 0.0
    %722 = vmatpush.msra.mxu0 0.0
    %723 = vmatpush.msra.mxu0 0.0
    %724 = vmatpush.msra.mxu0 0.0
    %725 = vmatpush.msra.mxu0 0.0
    %726 = vmatpush.msra.mxu0 0.0
    %727 = vmatpush.msra.mxu0 0.0
    %728 = vmatpush.msra.mxu0 %v636
    %729 = vmatpush.msra.mxu0 %v619
    %730 = vmatpush.msra.mxu0 %v617
    %731 = vmatpush.msra.mxu0 %v615
    %732 = vmatmul.f32.gmra.mxu0 %v688
    %v733 = vpop.f32.mrf.mxu0
    %v734 = vadd.f32 0.0, %v733
    %735 = vmatmul.f32.gmra.mxu0 %v691
    %v736 = vpop.f32.mrf.mxu0
    %v737 = vadd.f32 0.0, %v736
    %738 = vdwg.mxu0
    %v739 = vmax.f32 %v656, %v711
    %v740 = vmax.f32 %v679, %v734
    %v741 = vmax.f32 %v659, %v714
    %v742 = vmax.f32 %v682, %v737
    %v743 = vld [vmem:[%s4] sm:$0xff]
    %v744 = vld [vmem:[%s4 + $0x8] sm:$0xff]
    %v745 = vld [vmem:[%s4 + $0x10] sm:$0xff]
    %v746 = vld [vmem:[%s4 + $0x18] sm:$0xff]
    %v747 = vld [vmem:[%s4 + $0x20] sm:$0xff]
    %v748 = vld [vmem:[%s4 + $0x28] sm:$0xff]
    %v749 = vld [vmem:[%s4 + $0x30] sm:$0xff]
    %v750 = vld [vmem:[%s4 + $0x38] sm:$0xff]
    %v751 = vld [vmem:[%s4 + $0x40] sm:$0xff]
    %v752 = vld [vmem:[%s4 + $0x48] sm:$0xff]
    %v753 = vld [vmem:[%s4 + $0x50] sm:$0xff]
    %v754 = vld [vmem:[%s4 + $0x58] sm:$0xff]
    %v755 = vld [vmem:[%s4 + $0x60] sm:$0xff]
    %v756 = vld [vmem:[%s4 + $0x68] sm:$0xff]
    %v757 = vld [vmem:[%s4 + $0x70] sm:$0xff]
    %v758 = vld [vmem:[%s4 + $0x78] sm:$0xff]
    %v759 = vld [vmem:[%s4 + $0x80] sm:$0xff]
    %v760 = vld [vmem:[%s4 + $0x88] sm:$0xff]
    %v761 = vld [vmem:[%s4 + $0x90] sm:$0xff]
    %v762 = vld [vmem:[%s4 + $0x98] sm:$0xff]
    %v763 = vld [vmem:[%s4 + $0xa0] sm:$0xff]
    %vm764 = vcmask 326656
    %v766 = vsel %vm764, %v740, 0
    %v769 = vsel %vm764, %v742, 0
    %771 = vmatpush.msra.mxu0 %v758
    %772 = vmatpush.msra.mxu0 %v757
    %773 = vmatpush.msra.mxu0 %v756
    %774 = vmatpush.msra.mxu0 %v755
    %775 = vmatpush.msra.mxu0 %v754
    %776 = vmatpush.msra.mxu0 %v753
    %777 = vmatpush.msra.mxu0 %v752
    %778 = vmatpush.msra.mxu0 %v751
    %779 = vmatpush.msra.mxu0 %v750
    %780 = vmatpush.msra.mxu0 %v749
    %781 = vmatpush.msra.mxu0 %v748
    %782 = vmatpush.msra.mxu0 %v747
    %783 = vmatpush.msra.mxu0 %v746
    %784 = vmatpush.msra.mxu0 %v745
    %785 = vmatpush.msra.mxu0 %v744
    %786 = vmatpush.msra.mxu0 %v743
    %787 = vmatmul.f32.gmra.mxu0 %v739
    %v788 = vpop.f32.mrf.mxu0
    %v789 = vadd.f32 0.0, %v788
    %790 = vmatmul.f32.gmra.mxu0 %v741
    %v791 = vpop.f32.mrf.mxu0
    %v792 = vadd.f32 0.0, %v791
    %793 = vdwg.mxu0
    %794 = vmatpush.msra.mxu0 0.0
    %795 = vmatpush.msra.mxu0 0.0
    %796 = vmatpush.msra.mxu0 0.0
    %797 = vmatpush.msra.mxu0 0.0
    %798 = vmatpush.msra.mxu0 0.0
    %799 = vmatpush.msra.mxu0 0.0
    %800 = vmatpush.msra.mxu0 0.0
    %801 = vmatpush.msra.mxu0 0.0
    %802 = vmatpush.msra.mxu0 0.0
    %803 = vmatpush.msra.mxu0 0.0
    %804 = vmatpush.msra.mxu0 0.0
    %805 = vmatpush.msra.mxu0 %v763
    %806 = vmatpush.msra.mxu0 %v762
    %807 = vmatpush.msra.mxu0 %v761
    %808 = vmatpush.msra.mxu0 %v760
    %809 = vmatpush.msra.mxu0 %v759
    %810 = vmatmul.f32.gmra.mxu0 %v766
    %v811 = vpop.f32.mrf.mxu0
    %v812 = vadd.f32 %v789, %v811
    %813 = vmatmul.f32.gmra.mxu0 %v769
    %v814 = vpop.f32.mrf.mxu0
    %v815 = vadd.f32 %v792, %v814
    %816 = vdwg.mxu0
    %s817 = scalar_lea.vmem %s4, 168
    %v818 = vld [vmem:[%s817] sm:$0xff]
    %v819 = vld [vmem:[%s817 + $0x8] sm:$0xff]
    %v820 = vld [vmem:[%s817 + $0x10] sm:$0xff]
    %v821 = vld [vmem:[%s817 + $0x18] sm:$0xff]
    %v822 = vld [vmem:[%s817 + $0x20] sm:$0xff]
    %v823 = vld [vmem:[%s817 + $0x28] sm:$0xff]
    %v824 = vld [vmem:[%s817 + $0x30] sm:$0xff]
    %v825 = vld [vmem:[%s817 + $0x38] sm:$0xff]
    %v826 = vld [vmem:[%s817 + $0x40] sm:$0xff]
    %v827 = vld [vmem:[%s817 + $0x48] sm:$0xff]
    %v828 = vld [vmem:[%s817 + $0x50] sm:$0xff]
    %v829 = vld [vmem:[%s817 + $0x58] sm:$0xff]
    %v830 = vld [vmem:[%s817 + $0x60] sm:$0xff]
    %v831 = vld [vmem:[%s817 + $0x68] sm:$0xff]
    %v832 = vld [vmem:[%s817 + $0x70] sm:$0xff]
    %v833 = vld [vmem:[%s817 + $0x78] sm:$0xff]
    %v834 = vld [vmem:[%s817 + $0x80] sm:$0xff]
    %v835 = vld [vmem:[%s817 + $0x88] sm:$0xff]
    %v836 = vld [vmem:[%s817 + $0x90] sm:$0xff]
    %v837 = vld [vmem:[%s817 + $0x98] sm:$0xff]
    %v838 = vld [vmem:[%s817 + $0xa0] sm:$0xff]
    %839 = vmatpush.msra.mxu0 %v833
    %840 = vmatpush.msra.mxu0 %v832
    %841 = vmatpush.msra.mxu0 %v831
    %842 = vmatpush.msra.mxu0 %v830
    %843 = vmatpush.msra.mxu0 %v829
    %844 = vmatpush.msra.mxu0 %v828
    %845 = vmatpush.msra.mxu0 %v827
    %846 = vmatpush.msra.mxu0 %v826
    %847 = vmatpush.msra.mxu0 %v825
    %848 = vmatpush.msra.mxu0 %v824
    %849 = vmatpush.msra.mxu0 %v823
    %850 = vmatpush.msra.mxu0 %v822
    %851 = vmatpush.msra.mxu0 %v821
    %852 = vmatpush.msra.mxu0 %v820
    %853 = vmatpush.msra.mxu0 %v819
    %854 = vmatpush.msra.mxu0 %v818
    %855 = vmatmul.f32.gmra.mxu0 %v739
    %v856 = vpop.f32.mrf.mxu0
    %v857 = vadd.f32 0.0, %v856
    %858 = vmatmul.f32.gmra.mxu0 %v741
    %v859 = vpop.f32.mrf.mxu0
    %v860 = vadd.f32 0.0, %v859
    %861 = vdwg.mxu0
    %862 = vmatpush.msra.mxu0 0.0
    %863 = vmatpush.msra.mxu0 0.0
    %864 = vmatpush.msra.mxu0 0.0
    %865 = vmatpush.msra.mxu0 0.0
    %866 = vmatpush.msra.mxu0 0.0
    %867 = vmatpush.msra.mxu0 0.0
    %868 = vmatpush.msra.mxu0 0.0
    %869 = vmatpush.msra.mxu0 0.0
    %870 = vmatpush.msra.mxu0 0.0
    %871 = vmatpush.msra.mxu0 0.0
    %872 = vmatpush.msra.mxu0 0.0
    %873 = vmatpush.msra.mxu0 %v838
    %874 = vmatpush.msra.mxu0 %v837
    %875 = vmatpush.msra.mxu0 %v836
    %876 = vmatpush.msra.mxu0 %v835
    %877 = vmatpush.msra.mxu0 %v834
    %878 = vmatmul.f32.gmra.mxu0 %v766
    %v879 = vpop.f32.mrf.mxu0
    %v880 = vadd.f32 %v857, %v879
    %881 = vmatmul.f32.gmra.mxu0 %v769
    %v882 = vpop.f32.mrf.mxu0
    %v883 = vadd.f32 %v860, %v882
    %884 = vdwg.mxu0
    %v885 = vmax.f32 %v812, %v880
    %v886 = vmax.f32 %v815, %v883
    %vm887 = vcmask 687104
    %888 = vst.msk [vmem:[#allocation2] sm:$0xff] %vm887, %v885
    %vm889 = vcmask 685056
    %890 = vst.msk [vmem:[#allocation2 + $0x8] sm:$0x3f] %vm889, %v886
    %v891 = vld [vmem:[#allocation2] sm:$0xff]
    %v892 = vld [vmem:[#allocation2 + $0x8] sm:$0x3]
    %v893 = vld [vmem:[%s5] sm:$0xff]
    %v894 = vld [vmem:[%s5 + $0x8] sm:$0xff]
    %v895 = vld [vmem:[%s5 + $0x10] sm:$0xff]
    %v896 = vld [vmem:[%s5 + $0x18] sm:$0xff]
    %v897 = vld [vmem:[%s5 + $0x20] sm:$0xff]
    %v898 = vld [vmem:[%s5 + $0x28] sm:$0xff]
    %v899 = vld [vmem:[%s5 + $0x30] sm:$0xff]
    %v900 = vld [vmem:[%s5 + $0x38] sm:$0xff]
    %v901 = vld [vmem:[%s5 + $0x40] sm:$0xff]
    %v902 = vld [vmem:[%s5 + $0x48] sm:$0xff]
    %v903 = vld [vmem:[%s5 + $0x50] sm:$0xff]
    %v904 = vld [vmem:[%s5 + $0x58] sm:$0xff]
    %v905 = vld [vmem:[%s5 + $0x60] sm:$0xff]
    %v906 = vld [vmem:[%s5 + $0x68] sm:$0xff]
    %v907 = vld [vmem:[%s5 + $0x70] sm:$0xff]
    %v908 = vld [vmem:[%s5 + $0x78] sm:$0xff]
    %v909 = vld [vmem:[%s5 + $0x80] sm:$0xff]
    %v910 = vld [vmem:[%s5 + $0x88] sm:$0xff]
    %v911 = vld [vmem:[%s5 + $0x90] sm:$0xff]
    %v912 = vld [vmem:[%s5 + $0x98] sm:$0xff]
    %v913 = vld [vmem:[%s5 + $0xa0] sm:$0xf]
    %v914 = vld [vmem:[%s5 + $0xa8] sm:$0xf]
    %v915 = vld [vmem:[#allocation2 + $0x1] sm:$0xff]
    %v916 = vld [vmem:[#allocation2 + $0x9] sm:$0x3]
    %s917 = scalar_lea.vmem %s5, 176
    %v918 = vld [vmem:[%s917] sm:$0xff]
    %v919 = vld [vmem:[%s917 + $0x8] sm:$0xff]
    %v920 = vld [vmem:[%s917 + $0x10] sm:$0xff]
    %v921 = vld [vmem:[%s917 + $0x18] sm:$0xff]
    %v922 = vld [vmem:[%s917 + $0x20] sm:$0xff]
    %v923 = vld [vmem:[%s917 + $0x28] sm:$0xff]
    %v924 = vld [vmem:[%s917 + $0x30] sm:$0xff]
    %v925 = vld [vmem:[%s917 + $0x38] sm:$0xff]
    %v926 = vld [vmem:[%s917 + $0x40] sm:$0xff]
    %v927 = vld [vmem:[%s917 + $0x48] sm:$0xff]
    %v928 = vld [vmem:[%s917 + $0x50] sm:$0xff]
    %v929 = vld [vmem:[%s917 + $0x58] sm:$0xff]
    %v930 = vld [vmem:[%s917 + $0x60] sm:$0xff]
    %v931 = vld [vmem:[%s917 + $0x68] sm:$0xff]
    %v932 = vld [vmem:[%s917 + $0x70] sm:$0xff]
    %v933 = vld [vmem:[%s917 + $0x78] sm:$0xff]
    %v934 = vld [vmem:[%s917 + $0x80] sm:$0xff]
    %v935 = vld [vmem:[%s917 + $0x88] sm:$0xff]
    %v936 = vld [vmem:[%s917 + $0x90] sm:$0xff]
    %v937 = vld [vmem:[%s917 + $0x98] sm:$0xff]
    %v938 = vld [vmem:[%s917 + $0xa0] sm:$0xf]
    %v939 = vld [vmem:[%s917 + $0xa8] sm:$0xf]
    %v941 = vsel %vm887, %v915, 0
    %v944 = vsel %vm887, %v916, 0
    %v947 = vsel %vm631, %v938, 0
    %v950 = vsel %vm631, %v939, 0
    %952 = vmatpush.msra.mxu0 0.0
    %953 = vmatpush.msra.mxu0 0.0
    %954 = vmatpush.msra.mxu0 0.0
    %955 = vmatpush.msra.mxu0 0.0
    %956 = vmatpush.msra.mxu0 0.0
    %957 = vmatpush.msra.mxu0 %v947
    %958 = vmatpush.msra.mxu0 %v936
    %959 = vmatpush.msra.mxu0 %v934
    %960 = vmatpush.msra.mxu0 %v932
    %961 = vmatpush.msra.mxu0 %v930
    %962 = vmatpush.msra.mxu0 %v928
    %963 = vmatpush.msra.mxu0 %v926
    %964 = vmatpush.msra.mxu0 %v924
    %965 = vmatpush.msra.mxu0 %v922
    %966 = vmatpush.msra.mxu0 %v920
    %967 = vmatpush.msra.mxu0 %v918
    %968 = vmatmul.f32.gmra.mxu0 %v941
    %v969 = vpop.f32.mrf.mxu0
    %v970 = vadd.f32 0.0, %v969
    %971 = vmatmul.f32.gmra.mxu0 %v944
    %v972 = vpop.f32.mrf.mxu0
    %v973 = vadd.f32 0.0, %v972
    %974 = vdwg.mxu0
    %975 = vmatpush.msra.mxu0 0.0
    %976 = vmatpush.msra.mxu0 0.0
    %977 = vmatpush.msra.mxu0 0.0
    %978 = vmatpush.msra.mxu0 0.0
    %979 = vmatpush.msra.mxu0 0.0
    %980 = vmatpush.msra.mxu0 %v950
    %981 = vmatpush.msra.mxu0 %v937
    %982 = vmatpush.msra.mxu0 %v935
    %983 = vmatpush.msra.mxu0 %v933
    %984 = vmatpush.msra.mxu0 %v931
    %985 = vmatpush.msra.mxu0 %v929
    %986 = vmatpush.msra.mxu0 %v927
    %987 = vmatpush.msra.mxu0 %v925
    %988 = vmatpush.msra.mxu0 %v923
    %989 = vmatpush.msra.mxu0 %v921
    %990 = vmatpush.msra.mxu0 %v919
    %991 = vmatmul.f32.gmra.mxu0 %v941
    %v992 = vpop.f32.mrf.mxu0
    %v993 = vadd.f32 0.0, %v992
    %994 = vmatmul.f32.gmra.mxu0 %v944
    %v995 = vpop.f32.mrf.mxu0
    %v996 = vadd.f32 0.0, %v995
    %997 = vdwg.mxu0
    %v999 = vsel %vm887, %v891, 0
    %v1002 = vsel %vm887, %v892, 0
    %v1005 = vsel %vm631, %v913, 0
    %v1008 = vsel %vm631, %v914, 0
    %1010 = vmatpush.msra.mxu0 0.0
    %1011 = vmatpush.msra.mxu0 0.0
    %1012 = vmatpush.msra.mxu0 0.0
    %1013 = vmatpush.msra.mxu0 0.0
    %1014 = vmatpush.msra.mxu0 0.0
    %1015 = vmatpush.msra.mxu0 %v1005
    %1016 = vmatpush.msra.mxu0 %v911
    %1017 = vmatpush.msra.mxu0 %v909
    %1018 = vmatpush.msra.mxu0 %v907
    %1019 = vmatpush.msra.mxu0 %v905
    %1020 = vmatpush.msra.mxu0 %v903
    %1021 = vmatpush.msra.mxu0 %v901
    %1022 = vmatpush.msra.mxu0 %v899
    %1023 = vmatpush.msra.mxu0 %v897
    %1024 = vmatpush.msra.mxu0 %v895
    %1025 = vmatpush.msra.mxu0 %v893
    %1026 = vmatmul.f32.gmra.mxu0 %v999
    %v1027 = vpop.f32.mrf.mxu0
    %v1028 = vadd.f32 %v970, %v1027
    %1029 = vmatmul.f32.gmra.mxu0 %v1002
    %v1030 = vpop.f32.mrf.mxu0
    %v1031 = vadd.f32 %v973, %v1030
    %1032 = vdwg.mxu0
    %1033 = vmatpush.msra.mxu0 0.0
    %1034 = vmatpush.msra.mxu0 0.0
    %1035 = vmatpush.msra.mxu0 0.0
    %1036 = vmatpush.msra.mxu0 0.0
    %1037 = vmatpush.msra.mxu0 0.0
    %1038 = vmatpush.msra.mxu0 %v1008
    %1039 = vmatpush.msra.mxu0 %v912
    %1040 = vmatpush.msra.mxu0 %v910
    %1041 = vmatpush.msra.mxu0 %v908
    %1042 = vmatpush.msra.mxu0 %v906
    %1043 = vmatpush.msra.mxu0 %v904
    %1044 = vmatpush.msra.mxu0 %v902
    %1045 = vmatpush.msra.mxu0 %v900
    %1046 = vmatpush.msra.mxu0 %v898
    %1047 = vmatpush.msra.mxu0 %v896
    %1048 = vmatpush.msra.mxu0 %v894
    %1049 = vmatmul.f32.gmra.mxu0 %v999
    %v1050 = vpop.f32.mrf.mxu0
    %v1051 = vadd.f32 %v993, %v1050
    %1052 = vmatmul.f32.gmra.mxu0 %v1002
    %v1053 = vpop.f32.mrf.mxu0
    %v1054 = vadd.f32 %v996, %v1053
    %1055 = vdwg.mxu0
    %v1056 = vld [vmem:[#allocation2 + $0x2] sm:$0xff]
    %v1057 = vld [vmem:[#allocation2 + $0xa] sm:$0x3]
    %s1058 = scalar_lea.vmem %s5, 352
    %v1059 = vld [vmem:[%s1058] sm:$0xff]
    %v1060 = vld [vmem:[%s1058 + $0x8] sm:$0xff]
    %v1061 = vld [vmem:[%s1058 + $0x10] sm:$0xff]
    %v1062 = vld [vmem:[%s1058 + $0x18] sm:$0xff]
    %v1063 = vld [vmem:[%s1058 + $0x20] sm:$0xff]
    %v1064 = vld [vmem:[%s1058 + $0x28] sm:$0xff]
    %v1065 = vld [vmem:[%s1058 + $0x30] sm:$0xff]
    %v1066 = vld [vmem:[%s1058 + $0x38] sm:$0xff]
    %v1067 = vld [vmem:[%s1058 + $0x40] sm:$0xff]
    %v1068 = vld [vmem:[%s1058 + $0x48] sm:$0xff]
    %v1069 = vld [vmem:[%s1058 + $0x50] sm:$0xff]
    %v1070 = vld [vmem:[%s1058 + $0x58] sm:$0xff]
    %v1071 = vld [vmem:[%s1058 + $0x60] sm:$0xff]
    %v1072 = vld [vmem:[%s1058 + $0x68] sm:$0xff]
    %v1073 = vld [vmem:[%s1058 + $0x70] sm:$0xff]
    %v1074 = vld [vmem:[%s1058 + $0x78] sm:$0xff]
    %v1075 = vld [vmem:[%s1058 + $0x80] sm:$0xff]
    %v1076 = vld [vmem:[%s1058 + $0x88] sm:$0xff]
    %v1077 = vld [vmem:[%s1058 + $0x90] sm:$0xff]
    %v1078 = vld [vmem:[%s1058 + $0x98] sm:$0xff]
    %v1079 = vld [vmem:[%s1058 + $0xa0] sm:$0xf]
    %v1080 = vld [vmem:[%s1058 + $0xa8] sm:$0xf]
    %v1082 = vsel %vm887, %v1056, 0
    %v1085 = vsel %vm887, %v1057, 0
    %v1088 = vsel %vm631, %v1079, 0
    %v1091 = vsel %vm631, %v1080, 0
    %1093 = vmatpush.msra.mxu0 0.0
    %1094 = vmatpush.msra.mxu0 0.0
    %1095 = vmatpush.msra.mxu0 0.0
    %1096 = vmatpush.msra.mxu0 0.0
    %1097 = vmatpush.msra.mxu0 0.0
    %1098 = vmatpush.msra.mxu0 %v1088
    %1099 = vmatpush.msra.mxu0 %v1077
    %1100 = vmatpush.msra.mxu0 %v1075
    %1101 = vmatpush.msra.mxu0 %v1073
    %1102 = vmatpush.msra.mxu0 %v1071
    %1103 = vmatpush.msra.mxu0 %v1069
    %1104 = vmatpush.msra.mxu0 %v1067
    %1105 = vmatpush.msra.mxu0 %v1065
    %1106 = vmatpush.msra.mxu0 %v1063
    %1107 = vmatpush.msra.mxu0 %v1061
    %1108 = vmatpush.msra.mxu0 %v1059
    %1109 = vmatmul.f32.gmra.mxu0 %v1082
    %v1110 = vpop.f32.mrf.mxu0
    %v1111 = vadd.f32 0.0, %v1110
    %1112 = vmatmul.f32.gmra.mxu0 %v1085
    %v1113 = vpop.f32.mrf.mxu0
    %v1114 = vadd.f32 0.0, %v1113
    %1115 = vdwg.mxu0
    %1116 = vmatpush.msra.mxu0 0.0
    %1117 = vmatpush.msra.mxu0 0.0
    %1118 = vmatpush.msra.mxu0 0.0
    %1119 = vmatpush.msra.mxu0 0.0
    %1120 = vmatpush.msra.mxu0 0.0
    %1121 = vmatpush.msra.mxu0 %v1091
    %1122 = vmatpush.msra.mxu0 %v1078
    %1123 = vmatpush.msra.mxu0 %v1076
    %1124 = vmatpush.msra.mxu0 %v1074
    %1125 = vmatpush.msra.mxu0 %v1072
    %1126 = vmatpush.msra.mxu0 %v1070
    %1127 = vmatpush.msra.mxu0 %v1068
    %1128 = vmatpush.msra.mxu0 %v1066
    %1129 = vmatpush.msra.mxu0 %v1064
    %1130 = vmatpush.msra.mxu0 %v1062
    %1131 = vmatpush.msra.mxu0 %v1060
    %1132 = vmatmul.f32.gmra.mxu0 %v1082
    %v1133 = vpop.f32.mrf.mxu0
    %v1134 = vadd.f32 0.0, %v1133
    %1135 = vmatmul.f32.gmra.mxu0 %v1085
    %v1136 = vpop.f32.mrf.mxu0
    %v1137 = vadd.f32 0.0, %v1136
    %1138 = vdwg.mxu0
    %v1139 = vadd.f32 %v1028, %v1111
    %v1140 = vadd.f32 %v1051, %v1134
    %v1141 = vadd.f32 %v1031, %v1114
    %v1142 = vadd.f32 %v1054, %v1137
    %v1143 = vld [vmem:[#allocation2 + $0x3] sm:$0xff]
    %v1144 = vld [vmem:[#allocation2 + $0xb] sm:$0x3]
    %s1145 = scalar_lea.vmem %s5, 528
    %v1146 = vld [vmem:[%s1145] sm:$0xff]
    %v1147 = vld [vmem:[%s1145 + $0x8] sm:$0xff]
    %v1148 = vld [vmem:[%s1145 + $0x10] sm:$0xff]
    %v1149 = vld [vmem:[%s1145 + $0x18] sm:$0xff]
    %v1150 = vld [vmem:[%s1145 + $0x20] sm:$0xff]
    %v1151 = vld [vmem:[%s1145 + $0x28] sm:$0xff]
    %v1152 = vld [vmem:[%s1145 + $0x30] sm:$0xff]
    %v1153 = vld [vmem:[%s1145 + $0x38] sm:$0xff]
    %v1154 = vld [vmem:[%s1145 + $0x40] sm:$0xff]
    %v1155 = vld [vmem:[%s1145 + $0x48] sm:$0xff]
    %v1156 = vld [vmem:[%s1145 + $0x50] sm:$0xff]
    %v1157 = vld [vmem:[%s1145 + $0x58] sm:$0xff]
    %v1158 = vld [vmem:[%s1145 + $0x60] sm:$0xff]
    %v1159 = vld [vmem:[%s1145 + $0x68] sm:$0xff]
    %v1160 = vld [vmem:[%s1145 + $0x70] sm:$0xff]
    %v1161 = vld [vmem:[%s1145 + $0x78] sm:$0xff]
    %v1162 = vld [vmem:[%s1145 + $0x80] sm:$0xff]
    %v1163 = vld [vmem:[%s1145 + $0x88] sm:$0xff]
    %v1164 = vld [vmem:[%s1145 + $0x90] sm:$0xff]
    %v1165 = vld [vmem:[%s1145 + $0x98] sm:$0xff]
    %v1166 = vld [vmem:[%s1145 + $0xa0] sm:$0xf]
    %v1167 = vld [vmem:[%s1145 + $0xa8] sm:$0xf]
    %v1169 = vsel %vm887, %v1143, 0
    %v1172 = vsel %vm887, %v1144, 0
    %v1175 = vsel %vm631, %v1166, 0
    %v1178 = vsel %vm631, %v1167, 0
    %1180 = vmatpush.msra.mxu0 0.0
    %1181 = vmatpush.msra.mxu0 0.0
    %1182 = vmatpush.msra.mxu0 0.0
    %1183 = vmatpush.msra.mxu0 0.0
    %1184 = vmatpush.msra.mxu0 0.0
    %1185 = vmatpush.msra.mxu0 %v1175
    %1186 = vmatpush.msra.mxu0 %v1164
    %1187 = vmatpush.msra.mxu0 %v1162
    %1188 = vmatpush.msra.mxu0 %v1160
    %1189 = vmatpush.msra.mxu0 %v1158
    %1190 = vmatpush.msra.mxu0 %v1156
    %1191 = vmatpush.msra.mxu0 %v1154
    %1192 = vmatpush.msra.mxu0 %v1152
    %1193 = vmatpush.msra.mxu0 %v1150
    %1194 = vmatpush.msra.mxu0 %v1148
    %1195 = vmatpush.msra.mxu0 %v1146
    %1196 = vmatmul.f32.gmra.mxu0 %v1169
    %v1197 = vpop.f32.mrf.mxu0
    %v1198 = vadd.f32 0.0, %v1197
    %1199 = vmatmul.f32.gmra.mxu0 %v1172
    %v1200 = vpop.f32.mrf.mxu0
    %v1201 = vadd.f32 0.0, %v1200
    %1202 = vdwg.mxu0
    %1203 = vmatpush.msra.mxu0 0.0
    %1204 = vmatpush.msra.mxu0 0.0
    %1205 = vmatpush.msra.mxu0 0.0
    %1206 = vmatpush.msra.mxu0 0.0
    %1207 = vmatpush.msra.mxu0 0.0
    %1208 = vmatpush.msra.mxu0 %v1178
    %1209 = vmatpush.msra.mxu0 %v1165
    %1210 = vmatpush.msra.mxu0 %v1163
    %1211 = vmatpush.msra.mxu0 %v1161
    %1212 = vmatpush.msra.mxu0 %v1159
    %1213 = vmatpush.msra.mxu0 %v1157
    %1214 = vmatpush.msra.mxu0 %v1155
    %1215 = vmatpush.msra.mxu0 %v1153
    %1216 = vmatpush.msra.mxu0 %v1151
    %1217 = vmatpush.msra.mxu0 %v1149
    %1218 = vmatpush.msra.mxu0 %v1147
    %1219 = vmatmul.f32.gmra.mxu0 %v1169
    %v1220 = vpop.f32.mrf.mxu0
    %v1221 = vadd.f32 0.0, %v1220
    %1222 = vmatmul.f32.gmra.mxu0 %v1172
    %v1223 = vpop.f32.mrf.mxu0
    %v1224 = vadd.f32 0.0, %v1223
    %1225 = vdwg.mxu0
    %v1226 = vadd.f32 %v1139, %v1198
    %v1227 = vadd.f32 %v1140, %v1221
    %v1228 = vadd.f32 %v1141, %v1201
    %v1229 = vadd.f32 %v1142, %v1224
    %v1230 = vld [vmem:[#allocation2 + $0x4] sm:$0xff]
    %v1231 = vld [vmem:[#allocation2 + $0xc] sm:$0x3]
    %s1232 = scalar_lea.vmem %s5, 704
    %v1233 = vld [vmem:[%s1232] sm:$0xff]
    %v1234 = vld [vmem:[%s1232 + $0x8] sm:$0xff]
    %v1235 = vld [vmem:[%s1232 + $0x10] sm:$0xff]
    %v1236 = vld [vmem:[%s1232 + $0x18] sm:$0xff]
    %v1237 = vld [vmem:[%s1232 + $0x20] sm:$0xff]
    %v1238 = vld [vmem:[%s1232 + $0x28] sm:$0xff]
    %v1239 = vld [vmem:[%s1232 + $0x30] sm:$0xff]
    %v1240 = vld [vmem:[%s1232 + $0x38] sm:$0xff]
    %v1241 = vld [vmem:[%s1232 + $0x40] sm:$0xff]
    %v1242 = vld [vmem:[%s1232 + $0x48] sm:$0xff]
    %v1243 = vld [vmem:[%s1232 + $0x50] sm:$0xff]
    %v1244 = vld [vmem:[%s1232 + $0x58] sm:$0xff]
    %v1245 = vld [vmem:[%s1232 + $0x60] sm:$0xff]
    %v1246 = vld [vmem:[%s1232 + $0x68] sm:$0xff]
    %v1247 = vld [vmem:[%s1232 + $0x70] sm:$0xff]
    %v1248 = vld [vmem:[%s1232 + $0x78] sm:$0xff]
    %v1249 = vld [vmem:[%s1232 + $0x80] sm:$0xff]
    %v1250 = vld [vmem:[%s1232 + $0x88] sm:$0xff]
    %v1251 = vld [vmem:[%s1232 + $0x90] sm:$0xff]
    %v1252 = vld [vmem:[%s1232 + $0x98] sm:$0xff]
    %v1253 = vld [vmem:[%s1232 + $0xa0] sm:$0xf]
    %v1254 = vld [vmem:[%s1232 + $0xa8] sm:$0xf]
    %v1256 = vsel %vm887, %v1230, 0
    %v1259 = vsel %vm887, %v1231, 0
    %v1262 = vsel %vm631, %v1253, 0
    %v1265 = vsel %vm631, %v1254, 0
    %1267 = vmatpush.msra.mxu0 0.0
    %1268 = vmatpush.msra.mxu0 0.0
    %1269 = vmatpush.msra.mxu0 0.0
    %1270 = vmatpush.msra.mxu0 0.0
    %1271 = vmatpush.msra.mxu0 0.0
    %1272 = vmatpush.msra.mxu0 %v1262
    %1273 = vmatpush.msra.mxu0 %v1251
    %1274 = vmatpush.msra.mxu0 %v1249
    %1275 = vmatpush.msra.mxu0 %v1247
    %1276 = vmatpush.msra.mxu0 %v1245
    %1277 = vmatpush.msra.mxu0 %v1243
    %1278 = vmatpush.msra.mxu0 %v1241
    %1279 = vmatpush.msra.mxu0 %v1239
    %1280 = vmatpush.msra.mxu0 %v1237
    %1281 = vmatpush.msra.mxu0 %v1235
    %1282 = vmatpush.msra.mxu0 %v1233
    %1283 = vmatmul.f32.gmra.mxu0 %v1256
    %v1284 = vpop.f32.mrf.mxu0
    %v1285 = vadd.f32 0.0, %v1284
    %1286 = vmatmul.f32.gmra.mxu0 %v1259
    %v1287 = vpop.f32.mrf.mxu0
    %v1288 = vadd.f32 0.0, %v1287
    %1289 = vdwg.mxu0
    %1290 = vmatpush.msra.mxu0 0.0
    %1291 = vmatpush.msra.mxu0 0.0
    %1292 = vmatpush.msra.mxu0 0.0
    %1293 = vmatpush.msra.mxu0 0.0
    %1294 = vmatpush.msra.mxu0 0.0
    %1295 = vmatpush.msra.mxu0 %v1265
    %1296 = vmatpush.msra.mxu0 %v1252
    %1297 = vmatpush.msra.mxu0 %v1250
    %1298 = vmatpush.msra.mxu0 %v1248
    %1299 = vmatpush.msra.mxu0 %v1246
    %1300 = vmatpush.msra.mxu0 %v1244
    %1301 = vmatpush.msra.mxu0 %v1242
    %1302 = vmatpush.msra.mxu0 %v1240
    %1303 = vmatpush.msra.mxu0 %v1238
    %1304 = vmatpush.msra.mxu0 %v1236
    %1305 = vmatpush.msra.mxu0 %v1234
    %1306 = vmatmul.f32.gmra.mxu0 %v1256
    %v1307 = vpop.f32.mrf.mxu0
    %v1308 = vadd.f32 0.0, %v1307
    %1309 = vmatmul.f32.gmra.mxu0 %v1259
    %v1310 = vpop.f32.mrf.mxu0
    %v1311 = vadd.f32 0.0, %v1310
    %1312 = vdwg.mxu0
    %v1313 = vadd.f32 %v1226, %v1285
    %v1314 = vadd.f32 %v1227, %v1308
    %v1315 = vadd.f32 %v1228, %v1288
    %v1316 = vadd.f32 %v1229, %v1311
    %v1318 = vperm.slane %v52, 0
    %v1319 = vperm.slane %v52, 1
    %v1322 = vadd.f32 %v1313, %v1318
    %v1323 = vadd.f32 %v1314, %v1319
    %v1324 = vadd.f32 %v1315, %v1318
    %v1325 = vadd.f32 %v1316, %v1319
    %v1326 = vmax.f32 %v1322, 0.0
    %v1327 = vmax.f32 %v1323, 0.0
    %v1328 = vmax.f32 %v1324, 0.0
    %v1329 = vmax.f32 %v1325, 0.0
    %v1330 = vld [vmem:[%s7] sm:$0x1f]
    %vm1331 = vcmask 80896
    %v1333 = vsel %vm1331, %v1330, 0
    %vm1335 = vcmask 1041408
    %v1337 = vsel %vm1335, %v1328, 0
    %v1340 = vsel %vm1335, %v1329, 0
    %1342 = vmatpush.msra.mxu0 0.0
    %1343 = vmatpush.msra.mxu0 0.0
    %1344 = vmatpush.msra.mxu0 0.0
    %1345 = vmatpush.msra.mxu0 0.0
    %1346 = vmatpush.msra.mxu0 0.0
    %1347 = vmatpush.msra.mxu0 0.0
    %1348 = vmatpush.msra.mxu0 0.0
    %1349 = vmatpush.msra.mxu0 0.0
    %1350 = vmatpush.msra.mxu0 0.0
    %1351 = vmatpush.msra.mxu0 0.0
    %1352 = vmatpush.msra.mxu0 0.0
    %1353 = vmatpush.msra.mxu0 0.0
    %1354 = vmatpush.msra.mxu0 0.0
    %1355 = vmatpush.msra.mxu0 0.0
    %1356 = vmatpush.msra.mxu0 %v1337
    %1357 = vmatpush.msra.mxu0 %v1326
    %1358 = vmatmul.f32.gmra.mxu0 %v1333
    %v1359 = vpop.f32.mrf.mxu0
    %v1360 = vadd.f32 0.0, %v1359
    %1361 = vdwg.mxu0
    %1362 = vmatpush.msra.mxu0 0.0
    %1363 = vmatpush.msra.mxu0 0.0
    %1364 = vmatpush.msra.mxu0 0.0
    %1365 = vmatpush.msra.mxu0 0.0
    %1366 = vmatpush.msra.mxu0 0.0
    %1367 = vmatpush.msra.mxu0 0.0
    %1368 = vmatpush.msra.mxu0 0.0
    %1369 = vmatpush.msra.mxu0 0.0
    %1370 = vmatpush.msra.mxu0 0.0
    %1371 = vmatpush.msra.mxu0 0.0
    %1372 = vmatpush.msra.mxu0 0.0
    %1373 = vmatpush.msra.mxu0 0.0
    %1374 = vmatpush.msra.mxu0 0.0
    %1375 = vmatpush.msra.mxu0 0.0
    %1376 = vmatpush.msra.mxu0 %v1340
    %1377 = vmatpush.msra.mxu0 %v1327
    %1378 = vmatmul.f32.gmra.mxu0 %v1333
    %v1379 = vpop.f32.mrf.mxu0
    %v1380 = vadd.f32 0.0, %v1379
    %1381 = vdwg.mxu0
    %s1382 = scalar_lea.vmem %s7, 8
    %v1383 = vld [vmem:[%s1382] sm:$0x1f]
    %v1385 = vsel %vm1331, %v1383, 0
    %1387 = vmatpush.msra.mxu0 0.0
    %1388 = vmatpush.msra.mxu0 0.0
    %1389 = vmatpush.msra.mxu0 0.0
    %1390 = vmatpush.msra.mxu0 0.0
    %1391 = vmatpush.msra.mxu0 0.0
    %1392 = vmatpush.msra.mxu0 0.0
    %1393 = vmatpush.msra.mxu0 0.0
    %1394 = vmatpush.msra.mxu0 0.0
    %1395 = vmatpush.msra.mxu0 0.0
    %1396 = vmatpush.msra.mxu0 0.0
    %1397 = vmatpush.msra.mxu0 0.0
    %1398 = vmatpush.msra.mxu0 0.0
    %1399 = vmatpush.msra.mxu0 0.0
    %1400 = vmatpush.msra.mxu0 0.0
    %1401 = vmatpush.msra.mxu0 %v1337
    %1402 = vmatpush.msra.mxu0 %v1326
    %1403 = vmatmul.f32.gmra.mxu0 %v1385
    %v1404 = vpop.f32.mrf.mxu0
    %v1405 = vadd.f32 0.0, %v1404
    %1406 = vdwg.mxu0
    %1407 = vmatpush.msra.mxu0 0.0
    %1408 = vmatpush.msra.mxu0 0.0
    %1409 = vmatpush.msra.mxu0 0.0
    %1410 = vmatpush.msra.mxu0 0.0
    %1411 = vmatpush.msra.mxu0 0.0
    %1412 = vmatpush.msra.mxu0 0.0
    %1413 = vmatpush.msra.mxu0 0.0
    %1414 = vmatpush.msra.mxu0 0.0
    %1415 = vmatpush.msra.mxu0 0.0
    %1416 = vmatpush.msra.mxu0 0.0
    %1417 = vmatpush.msra.mxu0 0.0
    %1418 = vmatpush.msra.mxu0 0.0
    %1419 = vmatpush.msra.mxu0 0.0
    %1420 = vmatpush.msra.mxu0 0.0
    %1421 = vmatpush.msra.mxu0 %v1340
    %1422 = vmatpush.msra.mxu0 %v1327
    %1423 = vmatmul.f32.gmra.mxu0 %v1385
    %v1424 = vpop.f32.mrf.mxu0
    %v1425 = vadd.f32 0.0, %v1424
    %1426 = vdwg.mxu0
    %v1427 = vmax.f32 %v1360, %v1405
    %v1428 = vmax.f32 %v1380, %v1425
    %v1429 = vld [vmem:[%s8] sm:$0xff]
    %v1430 = vld [vmem:[%s8 + $0x8] sm:$0xff]
    %v1431 = vld [vmem:[%s8 + $0x10] sm:$0xff]
    %v1432 = vld [vmem:[%s8 + $0x18] sm:$0xff]
    %v1433 = vld [vmem:[%s8 + $0x20] sm:$0xff]
    %v1434 = vld [vmem:[%s8 + $0x28] sm:$0xff]
    %v1435 = vld [vmem:[%s8 + $0x30] sm:$0xff]
    %v1436 = vld [vmem:[%s8 + $0x38] sm:$0xff]
    %v1437 = vld [vmem:[%s8 + $0x40] sm:$0xff]
    %v1438 = vld [vmem:[%s8 + $0x48] sm:$0xff]
    %v1439 = vld [vmem:[%s8 + $0x50] sm:$0xff]
    %v1440 = vld [vmem:[%s8 + $0x58] sm:$0xff]
    %v1441 = vld [vmem:[%s8 + $0x60] sm:$0xff]
    %v1442 = vld [vmem:[%s8 + $0x68] sm:$0xff]
    %v1443 = vld [vmem:[%s8 + $0x70] sm:$0xff]
    %v1444 = vld [vmem:[%s8 + $0x78] sm:$0xff]
    %v1445 = vld [vmem:[%s8 + $0x80] sm:$0xff]
    %v1446 = vld [vmem:[%s8 + $0x88] sm:$0xff]
    %v1447 = vld [vmem:[%s8 + $0x90] sm:$0xff]
    %v1448 = vld [vmem:[%s8 + $0x98] sm:$0xff]
    %vm1449 = vcmask 261120
    %v1451 = vsel %vm1449, %v1428, 0
    %1453 = vmatpush.msra.mxu0 %v1444
    %1454 = vmatpush.msra.mxu0 %v1443
    %1455 = vmatpush.msra.mxu0 %v1442
    %1456 = vmatpush.msra.mxu0 %v1441
    %1457 = vmatpush.msra.mxu0 %v1440
    %1458 = vmatpush.msra.mxu0 %v1439
    %1459 = vmatpush.msra.mxu0 %v1438
    %1460 = vmatpush.msra.mxu0 %v1437
    %1461 = vmatpush.msra.mxu0 %v1436
    %1462 = vmatpush.msra.mxu0 %v1435
    %1463 = vmatpush.msra.mxu0 %v1434
    %1464 = vmatpush.msra.mxu0 %v1433
    %1465 = vmatpush.msra.mxu0 %v1432
    %1466 = vmatpush.msra.mxu0 %v1431
    %1467 = vmatpush.msra.mxu0 %v1430
    %1468 = vmatpush.msra.mxu0 %v1429
    %1469 = vmatmul.f32.gmra.mxu0 %v1427
    %v1470 = vpop.f32.mrf.mxu0
    %v1471 = vadd.f32 0.0, %v1470
    %1472 = vdwg.mxu0
    %1473 = vmatpush.msra.mxu0 0.0
    %1474 = vmatpush.msra.mxu0 0.0
    %1475 = vmatpush.msra.mxu0 0.0
    %1476 = vmatpush.msra.mxu0 0.0
    %1477 = vmatpush.msra.mxu0 0.0
    %1478 = vmatpush.msra.mxu0 0.0
    %1479 = vmatpush.msra.mxu0 0.0
    %1480 = vmatpush.msra.mxu0 0.0
    %1481 = vmatpush.msra.mxu0 0.0
    %1482 = vmatpush.msra.mxu0 0.0
    %1483 = vmatpush.msra.mxu0 0.0
    %1484 = vmatpush.msra.mxu0 0.0
    %1485 = vmatpush.msra.mxu0 %v1448
    %1486 = vmatpush.msra.mxu0 %v1447
    %1487 = vmatpush.msra.mxu0 %v1446
    %1488 = vmatpush.msra.mxu0 %v1445
    %1489 = vmatmul.f32.gmra.mxu0 %v1451
    %v1490 = vpop.f32.mrf.mxu0
    %v1491 = vadd.f32 %v1471, %v1490
    %1492 = vdwg.mxu0
    %s1493 = scalar_lea.vmem %s8, 160
    %v1494 = vld [vmem:[%s1493] sm:$0xff]
    %v1495 = vld [vmem:[%s1493 + $0x8] sm:$0xff]
    %v1496 = vld [vmem:[%s1493 + $0x10] sm:$0xff]
    %v1497 = vld [vmem:[%s1493 + $0x18] sm:$0xff]
    %v1498 = vld [vmem:[%s1493 + $0x20] sm:$0xff]
    %v1499 = vld [vmem:[%s1493 + $0x28] sm:$0xff]
    %v1500 = vld [vmem:[%s1493 + $0x30] sm:$0xff]
    %v1501 = vld [vmem:[%s1493 + $0x38] sm:$0xff]
    %v1502 = vld [vmem:[%s1493 + $0x40] sm:$0xff]
    %v1503 = vld [vmem:[%s1493 + $0x48] sm:$0xff]
    %v1504 = vld [vmem:[%s1493 + $0x50] sm:$0xff]
    %v1505 = vld [vmem:[%s1493 + $0x58] sm:$0xff]
    %v1506 = vld [vmem:[%s1493 + $0x60] sm:$0xff]
    %v1507 = vld [vmem:[%s1493 + $0x68] sm:$0xff]
    %v1508 = vld [vmem:[%s1493 + $0x70] sm:$0xff]
    %v1509 = vld [vmem:[%s1493 + $0x78] sm:$0xff]
    %v1510 = vld [vmem:[%s1493 + $0x80] sm:$0xff]
    %v1511 = vld [vmem:[%s1493 + $0x88] sm:$0xff]
    %v1512 = vld [vmem:[%s1493 + $0x90] sm:$0xff]
    %v1513 = vld [vmem:[%s1493 + $0x98] sm:$0xff]
    %1514 = vmatpush.msra.mxu0 %v1509
    %1515 = vmatpush.msra.mxu0 %v1508
    %1516 = vmatpush.msra.mxu0 %v1507
    %1517 = vmatpush.msra.mxu0 %v1506
    %1518 = vmatpush.msra.mxu0 %v1505
    %1519 = vmatpush.msra.mxu0 %v1504
    %1520 = vmatpush.msra.mxu0 %v1503
    %1521 = vmatpush.msra.mxu0 %v1502
    %1522 = vmatpush.msra.mxu0 %v1501
    %1523 = vmatpush.msra.mxu0 %v1500
    %1524 = vmatpush.msra.mxu0 %v1499
    %1525 = vmatpush.msra.mxu0 %v1498
    %1526 = vmatpush.msra.mxu0 %v1497
    %1527 = vmatpush.msra.mxu0 %v1496
    %1528 = vmatpush.msra.mxu0 %v1495
    %1529 = vmatpush.msra.mxu0 %v1494
    %1530 = vmatmul.f32.gmra.mxu0 %v1427
    %v1531 = vpop.f32.mrf.mxu0
    %v1532 = vadd.f32 0.0, %v1531
    %1533 = vdwg.mxu0
    %1534 = vmatpush.msra.mxu0 0.0
    %1535 = vmatpush.msra.mxu0 0.0
    %1536 = vmatpush.msra.mxu0 0.0
    %1537 = vmatpush.msra.mxu0 0.0
    %1538 = vmatpush.msra.mxu0 0.0
    %1539 = vmatpush.msra.mxu0 0.0
    %1540 = vmatpush.msra.mxu0 0.0
    %1541 = vmatpush.msra.mxu0 0.0
    %1542 = vmatpush.msra.mxu0 0.0
    %1543 = vmatpush.msra.mxu0 0.0
    %1544 = vmatpush.msra.mxu0 0.0
    %1545 = vmatpush.msra.mxu0 0.0
    %1546 = vmatpush.msra.mxu0 %v1513
    %1547 = vmatpush.msra.mxu0 %v1512
    %1548 = vmatpush.msra.mxu0 %v1511
    %1549 = vmatpush.msra.mxu0 %v1510
    %1550 = vmatmul.f32.gmra.mxu0 %v1451
    %v1551 = vpop.f32.mrf.mxu0
    %v1552 = vadd.f32 %v1532, %v1551
    %1553 = vdwg.mxu0
    %v1554 = vmax.f32 %v1491, %v1552
    %vm1555 = vcmask 651264
    %1556 = vst.msk [vmem:[#allocation3] sm:$0x1f] %vm1555, %v1554
    %v1557 = vld [vmem:[#allocation3] sm:$0x1]
    %v1558 = vld [vmem:[%s9] sm:$0xff]
    %v1559 = vld [vmem:[%s9 + $0x8] sm:$0xff]
    %v1560 = vld [vmem:[%s9 + $0x10] sm:$0xff]
    %v1561 = vld [vmem:[%s9 + $0x18] sm:$0xff]
    %v1562 = vld [vmem:[%s9 + $0x20] sm:$0xff]
    %v1563 = vld [vmem:[%s9 + $0x28] sm:$0xff]
    %v1564 = vld [vmem:[%s9 + $0x30] sm:$0xff]
    %v1565 = vld [vmem:[%s9 + $0x38] sm:$0xff]
    %v1566 = vld [vmem:[%s9 + $0x40] sm:$0xff]
    %v1567 = vld [vmem:[%s9 + $0x48] sm:$0xff]
    %vm1568 = vcmask 654336
    %v1570 = vsel %vm1568, %v1557, 0
    %1572 = vmatpush.msra.mxu0 0.0
    %1573 = vmatpush.msra.mxu0 0.0
    %1574 = vmatpush.msra.mxu0 0.0
    %1575 = vmatpush.msra.mxu0 0.0
    %1576 = vmatpush.msra.mxu0 0.0
    %1577 = vmatpush.msra.mxu0 0.0
    %1578 = vmatpush.msra.mxu0 %v1567
    %1579 = vmatpush.msra.mxu0 %v1566
    %1580 = vmatpush.msra.mxu0 %v1565
    %1581 = vmatpush.msra.mxu0 %v1564
    %1582 = vmatpush.msra.mxu0 %v1563
    %1583 = vmatpush.msra.mxu0 %v1562
    %1584 = vmatpush.msra.mxu0 %v1561
    %1585 = vmatpush.msra.mxu0 %v1560
    %1586 = vmatpush.msra.mxu0 %v1559
    %1587 = vmatpush.msra.mxu0 %v1558
    %1588 = vmatmul.f32.gmra.mxu0 %v1570
    %v1589 = vpop.f32.mrf.mxu0
    %v1590 = vadd.f32 0.0, %v1589
    %1591 = vdwg.mxu0
    %v1592 = vadd.f32 %v53, %v1590
    %v1593 = vld [vmem:[#allocation3 + $0x1] sm:$0x1]
    %s1594 = scalar_lea.vmem %s9, 80
    %v1595 = vld [vmem:[%s1594] sm:$0xff]
    %v1596 = vld [vmem:[%s1594 + $0x8] sm:$0xff]
    %v1597 = vld [vmem:[%s1594 + $0x10] sm:$0xff]
    %v1598 = vld [vmem:[%s1594 + $0x18] sm:$0xff]
    %v1599 = vld [vmem:[%s1594 + $0x20] sm:$0xff]
    %v1600 = vld [vmem:[%s1594 + $0x28] sm:$0xff]
    %v1601 = vld [vmem:[%s1594 + $0x30] sm:$0xff]
    %v1602 = vld [vmem:[%s1594 + $0x38] sm:$0xff]
    %v1603 = vld [vmem:[%s1594 + $0x40] sm:$0xff]
    %v1604 = vld [vmem:[%s1594 + $0x48] sm:$0xff]
    %v1606 = vsel %vm1568, %v1593, 0
    %1608 = vmatpush.msra.mxu0 0.0
    %1609 = vmatpush.msra.mxu0 0.0
    %1610 = vmatpush.msra.mxu0 0.0
    %1611 = vmatpush.msra.mxu0 0.0
    %1612 = vmatpush.msra.mxu0 0.0
    %1613 = vmatpush.msra.mxu0 0.0
    %1614 = vmatpush.msra.mxu0 %v1604
    %1615 = vmatpush.msra.mxu0 %v1603
    %1616 = vmatpush.msra.mxu0 %v1602
    %1617 = vmatpush.msra.mxu0 %v1601
    %1618 = vmatpush.msra.mxu0 %v1600
    %1619 = vmatpush.msra.mxu0 %v1599
    %1620 = vmatpush.msra.mxu0 %v1598
    %1621 = vmatpush.msra.mxu0 %v1597
    %1622 = vmatpush.msra.mxu0 %v1596
    %1623 = vmatpush.msra.mxu0 %v1595
    %1624 = vmatmul.f32.gmra.mxu0 %v1606
    %v1625 = vpop.f32.mrf.mxu0
    %v1626 = vadd.f32 0.0, %v1625
    %1627 = vdwg.mxu0
    %v1628 = vadd.f32 %v1592, %v1626
    %v1629 = vld [vmem:[#allocation3 + $0x2] sm:$0x1]
    %s1630 = scalar_lea.vmem %s9, 160
    %v1631 = vld [vmem:[%s1630] sm:$0xff]
    %v1632 = vld [vmem:[%s1630 + $0x8] sm:$0xff]
    %v1633 = vld [vmem:[%s1630 + $0x10] sm:$0xff]
    %v1634 = vld [vmem:[%s1630 + $0x18] sm:$0xff]
    %v1635 = vld [vmem:[%s1630 + $0x20] sm:$0xff]
    %v1636 = vld [vmem:[%s1630 + $0x28] sm:$0xff]
    %v1637 = vld [vmem:[%s1630 + $0x30] sm:$0xff]
    %v1638 = vld [vmem:[%s1630 + $0x38] sm:$0xff]
    %v1639 = vld [vmem:[%s1630 + $0x40] sm:$0xff]
    %v1640 = vld [vmem:[%s1630 + $0x48] sm:$0xff]
    %v1642 = vsel %vm1568, %v1629, 0
    %1644 = vmatpush.msra.mxu0 0.0
    %1645 = vmatpush.msra.mxu0 0.0
    %1646 = vmatpush.msra.mxu0 0.0
    %1647 = vmatpush.msra.mxu0 0.0
    %1648 = vmatpush.msra.mxu0 0.0
    %1649 = vmatpush.msra.mxu0 0.0
    %1650 = vmatpush.msra.mxu0 %v1640
    %1651 = vmatpush.msra.mxu0 %v1639
    %1652 = vmatpush.msra.mxu0 %v1638
    %1653 = vmatpush.msra.mxu0 %v1637
    %1654 = vmatpush.msra.mxu0 %v1636
    %1655 = vmatpush.msra.mxu0 %v1635
    %1656 = vmatpush.msra.mxu0 %v1634
    %1657 = vmatpush.msra.mxu0 %v1633
    %1658 = vmatpush.msra.mxu0 %v1632
    %1659 = vmatpush.msra.mxu0 %v1631
    %1660 = vmatmul.f32.gmra.mxu0 %v1642
    %v1661 = vpop.f32.mrf.mxu0
    %v1662 = vadd.f32 0.0, %v1661
    %1663 = vdwg.mxu0
    %v1664 = vadd.f32 %v1628, %v1662
    %v1665 = vld [vmem:[#allocation3 + $0x3] sm:$0x1]
    %s1666 = scalar_lea.vmem %s9, 240
    %v1667 = vld [vmem:[%s1666] sm:$0xff]
    %v1668 = vld [vmem:[%s1666 + $0x8] sm:$0xff]
    %v1669 = vld [vmem:[%s1666 + $0x10] sm:$0xff]
    %v1670 = vld [vmem:[%s1666 + $0x18] sm:$0xff]
    %v1671 = vld [vmem:[%s1666 + $0x20] sm:$0xff]
    %v1672 = vld [vmem:[%s1666 + $0x28] sm:$0xff]
    %v1673 = vld [vmem:[%s1666 + $0x30] sm:$0xff]
    %v1674 = vld [vmem:[%s1666 + $0x38] sm:$0xff]
    %v1675 = vld [vmem:[%s1666 + $0x40] sm:$0xff]
    %v1676 = vld [vmem:[%s1666 + $0x48] sm:$0xff]
    %v1678 = vsel %vm1568, %v1665, 0
    %1680 = vmatpush.msra.mxu0 0.0
    %1681 = vmatpush.msra.mxu0 0.0
    %1682 = vmatpush.msra.mxu0 0.0
    %1683 = vmatpush.msra.mxu0 0.0
    %1684 = vmatpush.msra.mxu0 0.0
    %1685 = vmatpush.msra.mxu0 0.0
    %1686 = vmatpush.msra.mxu0 %v1676
    %1687 = vmatpush.msra.mxu0 %v1675
    %1688 = vmatpush.msra.mxu0 %v1674
    %1689 = vmatpush.msra.mxu0 %v1673
    %1690 = vmatpush.msra.mxu0 %v1672
    %1691 = vmatpush.msra.mxu0 %v1671
    %1692 = vmatpush.msra.mxu0 %v1670
    %1693 = vmatpush.msra.mxu0 %v1669
    %1694 = vmatpush.msra.mxu0 %v1668
    %1695 = vmatpush.msra.mxu0 %v1667
    %1696 = vmatmul.f32.gmra.mxu0 %v1678
    %v1697 = vpop.f32.mrf.mxu0
    %v1698 = vadd.f32 0.0, %v1697
    %1699 = vdwg.mxu0
    %v1700 = vadd.f32 %v1664, %v1698
    %v1701 = vld [vmem:[#allocation3 + $0x4] sm:$0x1]
    %s1702 = scalar_lea.vmem %s9, 320
    %v1703 = vld [vmem:[%s1702] sm:$0xff]
    %v1704 = vld [vmem:[%s1702 + $0x8] sm:$0xff]
    %v1705 = vld [vmem:[%s1702 + $0x10] sm:$0xff]
    %v1706 = vld [vmem:[%s1702 + $0x18] sm:$0xff]
    %v1707 = vld [vmem:[%s1702 + $0x20] sm:$0xff]
    %v1708 = vld [vmem:[%s1702 + $0x28] sm:$0xff]
    %v1709 = vld [vmem:[%s1702 + $0x30] sm:$0xff]
    %v1710 = vld [vmem:[%s1702 + $0x38] sm:$0xff]
    %v1711 = vld [vmem:[%s1702 + $0x40] sm:$0xff]
    %v1712 = vld [vmem:[%s1702 + $0x48] sm:$0xff]
    %v1714 = vsel %vm1568, %v1701, 0
    %1716 = vmatpush.msra.mxu0 0.0
    %1717 = vmatpush.msra.mxu0 0.0
    %1718 = vmatpush.msra.mxu0 0.0
    %1719 = vmatpush.msra.mxu0 0.0
    %1720 = vmatpush.msra.mxu0 0.0
    %1721 = vmatpush.msra.mxu0 0.0
    %1722 = vmatpush.msra.mxu0 %v1712
    %1723 = vmatpush.msra.mxu0 %v1711
    %1724 = vmatpush.msra.mxu0 %v1710
    %1725 = vmatpush.msra.mxu0 %v1709
    %1726 = vmatpush.msra.mxu0 %v1708
    %1727 = vmatpush.msra.mxu0 %v1707
    %1728 = vmatpush.msra.mxu0 %v1706
    %1729 = vmatpush.msra.mxu0 %v1705
    %1730 = vmatpush.msra.mxu0 %v1704
    %1731 = vmatpush.msra.mxu0 %v1703
    %1732 = vmatmul.f32.gmra.mxu0 %v1714
    %v1733 = vpop.f32.mrf.mxu0
    %v1734 = vadd.f32 0.0, %v1733
    %1735 = vdwg.mxu0
    %v1736 = vadd.f32 %v1700, %v1734
    %v1737 = vmax.f32 %v1736, 0.0
    %vm1738 = vcmask 982016
    %v1740 = vsel %vm1738, %v1737, 0
    %1742 = vmatpush.msra.mxu0 0.0
    %1743 = vmatpush.msra.mxu0 %v70
    %1744 = vmatpush.msra.mxu0 %v69
    %1745 = vmatpush.msra.mxu0 %v68
    %1746 = vmatpush.msra.mxu0 %v67
    %1747 = vmatpush.msra.mxu0 %v66
    %1748 = vmatpush.msra.mxu0 %v65
    %1749 = vmatpush.msra.mxu0 %v64
    %1750 = vmatpush.msra.mxu0 %v63
    %1751 = vmatpush.msra.mxu0 %v62
    %1752 = vmatpush.msra.mxu0 %v61
    %1753 = vmatpush.msra.mxu0 %v60
    %1754 = vmatpush.msra.mxu0 %v59
    %1755 = vmatpush.msra.mxu0 %v58
    %1756 = vmatpush.msra.mxu0 %v57
    %1757 = vmatpush.msra.mxu0 %v56
    %1758 = vmatmul.f32.gmra.mxu0 %v1740
    %v1759 = vpop.f32.mrf.mxu0
    %v1760 = vadd.f32 %v54, %v1759
    %1761 = vdwg.mxu0
    %v1762 = vmax.f32 %v1760, 0.0
    %v1764 = vsel %vm887, %v1762, 0
    %v1767 = vsel %vm631, %v81, 0
    %1769 = vmatpush.msra.mxu0 0.0
    %1770 = vmatpush.msra.mxu0 0.0
    %1771 = vmatpush.msra.mxu0 0.0
    %1772 = vmatpush.msra.mxu0 0.0
    %1773 = vmatpush.msra.mxu0 0.0
    %1774 = vmatpush.msra.mxu0 %v1767
    %1775 = vmatpush.msra.mxu0 %v80
    %1776 = vmatpush.msra.mxu0 %v79
    %1777 = vmatpush.msra.mxu0 %v78
    %1778 = vmatpush.msra.mxu0 %v77
    %1779 = vmatpush.msra.mxu0 %v76
    %1780 = vmatpush.msra.mxu0 %v75
    %1781 = vmatpush.msra.mxu0 %v74
    %1782 = vmatpush.msra.mxu0 %v73
    %1783 = vmatpush.msra.mxu0 %v72
    %1784 = vmatpush.msra.mxu0 %v71
    %1785 = vmatmul.f32.gmra.mxu0 %v1764
    %v1786 = vpop.f32.mrf.mxu0
    %v1787 = vadd.f32 %v55, %v1786
    %1788 = vdwg.mxu0
    %1789 = vst [vmem:[#allocation4] sm:$0x1] %v1787
    %s1790 = scalar_lea.vmem %s0, 32
    %v1791 = vld [vmem:[%s1790] sm:$0xff]
    %v1792 = vld [vmem:[%s1790 + $0x8] sm:$0xff]
    %v1793 = vld [vmem:[%s1790 + $0x10] sm:$0xff]
    %v1794 = vld [vmem:[%s1790 + $0x18] sm:$0xf]
    %v1795 = vld [vmem:[%s1] sm:$0xff]
    %v1796 = vld [vmem:[%s1 + $0x8] sm:$0xff]
    %v1797 = vld [vmem:[%s1 + $0x10] sm:$0xff]
    %v1798 = vld [vmem:[%s1 + $0x18] sm:$0xff]
    %v1799 = vld [vmem:[%s1 + $0x20] sm:$0xff]
    %v1800 = vld [vmem:[%s1 + $0x28] sm:$0xff]
    %v1801 = vld [vmem:[%s1 + $0x30] sm:$0xff]
    %v1802 = vld [vmem:[%s1 + $0x38] sm:$0xff]
    %v1803 = vld [vmem:[%s1 + $0x40] sm:$0xff]
    %v1804 = vld [vmem:[%s1 + $0x48] sm:$0xff]
    %v1805 = vld [vmem:[%s1 + $0x50] sm:$0xff]
    %v1806 = vld [vmem:[%s1 + $0x58] sm:$0xff]
    %v1807 = vld [vmem:[%s1 + $0x60] sm:$0xff]
    %v1808 = vld [vmem:[%s1 + $0x68] sm:$0xff]
    %v1809 = vld [vmem:[%s1 + $0x70] sm:$0xff]
    %v1810 = vld [vmem:[%s1 + $0x78] sm:$0xff]
    %v1811 = vld [vmem:[%s1 + $0x80] sm:$0xff]
    %v1812 = vld [vmem:[%s1 + $0x88] sm:$0xff]
    %v1813 = vld [vmem:[%s1 + $0x90] sm:$0xff]
    %v1814 = vld [vmem:[%s1 + $0x98] sm:$0xff]
    %v1815 = vld [vmem:[%s1 + $0xa0] sm:$0xff]
    %v1816 = vld [vmem:[%s1 + $0xa8] sm:$0xff]
    %v1817 = vld [vmem:[%s1 + $0xb0] sm:$0xff]
    %v1818 = vld [vmem:[%s1 + $0xb8] sm:$0xff]
    %v1819 = vld [vmem:[%s1790 + $0x1] sm:$0xff]
    %v1820 = vld [vmem:[%s1790 + $0x9] sm:$0xff]
    %v1821 = vld [vmem:[%s1790 + $0x11] sm:$0xff]
    %v1822 = vld [vmem:[%s1790 + $0x19] sm:$0xf]
    %v1823 = vld [vmem:[%s114] sm:$0xff]
    %v1824 = vld [vmem:[%s114 + $0x8] sm:$0xff]
    %v1825 = vld [vmem:[%s114 + $0x10] sm:$0xff]
    %v1826 = vld [vmem:[%s114 + $0x18] sm:$0xff]
    %v1827 = vld [vmem:[%s114 + $0x20] sm:$0xff]
    %v1828 = vld [vmem:[%s114 + $0x28] sm:$0xff]
    %v1829 = vld [vmem:[%s114 + $0x30] sm:$0xff]
    %v1830 = vld [vmem:[%s114 + $0x38] sm:$0xff]
    %v1831 = vld [vmem:[%s114 + $0x40] sm:$0xff]
    %v1832 = vld [vmem:[%s114 + $0x48] sm:$0xff]
    %v1833 = vld [vmem:[%s114 + $0x50] sm:$0xff]
    %v1834 = vld [vmem:[%s114 + $0x58] sm:$0xff]
    %v1835 = vld [vmem:[%s114 + $0x60] sm:$0xff]
    %v1836 = vld [vmem:[%s114 + $0x68] sm:$0xff]
    %v1837 = vld [vmem:[%s114 + $0x70] sm:$0xff]
    %v1838 = vld [vmem:[%s114 + $0x78] sm:$0xff]
    %v1839 = vld [vmem:[%s114 + $0x80] sm:$0xff]
    %v1840 = vld [vmem:[%s114 + $0x88] sm:$0xff]
    %v1841 = vld [vmem:[%s114 + $0x90] sm:$0xff]
    %v1842 = vld [vmem:[%s114 + $0x98] sm:$0xff]
    %v1843 = vld [vmem:[%s114 + $0xa0] sm:$0xff]
    %v1844 = vld [vmem:[%s114 + $0xa8] sm:$0xff]
    %v1845 = vld [vmem:[%s114 + $0xb0] sm:$0xff]
    %v1846 = vld [vmem:[%s114 + $0xb8] sm:$0xff]
    %v1848 = vsel %vm139, %v1819, 0
    %v1851 = vsel %vm139, %v1820, 0
    %v1854 = vsel %vm139, %v1821, 0
    %v1857 = vsel %vm139, %v1822, 0
    %1859 = vmatpush.msra.mxu0 0.0
    %1860 = vmatpush.msra.mxu0 0.0
    %1861 = vmatpush.msra.mxu0 0.0
    %1862 = vmatpush.msra.mxu0 0.0
    %1863 = vmatpush.msra.mxu0 %v1845
    %1864 = vmatpush.msra.mxu0 %v1843
    %1865 = vmatpush.msra.mxu0 %v1841
    %1866 = vmatpush.msra.mxu0 %v1839
    %1867 = vmatpush.msra.mxu0 %v1837
    %1868 = vmatpush.msra.mxu0 %v1835
    %1869 = vmatpush.msra.mxu0 %v1833
    %1870 = vmatpush.msra.mxu0 %v1831
    %1871 = vmatpush.msra.mxu0 %v1829
    %1872 = vmatpush.msra.mxu0 %v1827
    %1873 = vmatpush.msra.mxu0 %v1825
    %1874 = vmatpush.msra.mxu0 %v1823
    %1875 = vmatmul.f32.gmra.mxu0 %v1848
    %v1876 = vpop.f32.mrf.mxu0
    %v1877 = vadd.f32 0.0, %v1876
    %1878 = vmatmul.f32.gmra.mxu0 %v1851
    %v1879 = vpop.f32.mrf.mxu0
    %v1880 = vadd.f32 0.0, %v1879
    %1881 = vmatmul.f32.gmra.mxu0 %v1854
    %v1882 = vpop.f32.mrf.mxu0
    %v1883 = vadd.f32 0.0, %v1882
    %1884 = vmatmul.f32.gmra.mxu0 %v1857
    %v1885 = vpop.f32.mrf.mxu0
    %v1886 = vadd.f32 0.0, %v1885
    %1887 = vdwg.mxu0
    %1888 = vmatpush.msra.mxu0 0.0
    %1889 = vmatpush.msra.mxu0 0.0
    %1890 = vmatpush.msra.mxu0 0.0
    %1891 = vmatpush.msra.mxu0 0.0
    %1892 = vmatpush.msra.mxu0 %v1846
    %1893 = vmatpush.msra.mxu0 %v1844
    %1894 = vmatpush.msra.mxu0 %v1842
    %1895 = vmatpush.msra.mxu0 %v1840
    %1896 = vmatpush.msra.mxu0 %v1838
    %1897 = vmatpush.msra.mxu0 %v1836
    %1898 = vmatpush.msra.mxu0 %v1834
    %1899 = vmatpush.msra.mxu0 %v1832
    %1900 = vmatpush.msra.mxu0 %v1830
    %1901 = vmatpush.msra.mxu0 %v1828
    %1902 = vmatpush.msra.mxu0 %v1826
    %1903 = vmatpush.msra.mxu0 %v1824
    %1904 = vmatmul.f32.gmra.mxu0 %v1848
    %v1905 = vpop.f32.mrf.mxu0
    %v1906 = vadd.f32 0.0, %v1905
    %1907 = vmatmul.f32.gmra.mxu0 %v1851
    %v1908 = vpop.f32.mrf.mxu0
    %v1909 = vadd.f32 0.0, %v1908
    %1910 = vmatmul.f32.gmra.mxu0 %v1854
    %v1911 = vpop.f32.mrf.mxu0
    %v1912 = vadd.f32 0.0, %v1911
    %1913 = vmatmul.f32.gmra.mxu0 %v1857
    %v1914 = vpop.f32.mrf.mxu0
    %v1915 = vadd.f32 0.0, %v1914
    %1916 = vdwg.mxu0
    %v1918 = vsel %vm139, %v1791, 0
    %v1921 = vsel %vm139, %v1792, 0
    %v1924 = vsel %vm139, %v1793, 0
    %v1927 = vsel %vm139, %v1794, 0
    %1929 = vmatpush.msra.mxu0 0.0
    %1930 = vmatpush.msra.mxu0 0.0
    %1931 = vmatpush.msra.mxu0 0.0
    %1932 = vmatpush.msra.mxu0 0.0
    %1933 = vmatpush.msra.mxu0 %v1817
    %1934 = vmatpush.msra.mxu0 %v1815
    %1935 = vmatpush.msra.mxu0 %v1813
    %1936 = vmatpush.msra.mxu0 %v1811
    %1937 = vmatpush.msra.mxu0 %v1809
    %1938 = vmatpush.msra.mxu0 %v1807
    %1939 = vmatpush.msra.mxu0 %v1805
    %1940 = vmatpush.msra.mxu0 %v1803
    %1941 = vmatpush.msra.mxu0 %v1801
    %1942 = vmatpush.msra.mxu0 %v1799
    %1943 = vmatpush.msra.mxu0 %v1797
    %1944 = vmatpush.msra.mxu0 %v1795
    %1945 = vmatmul.f32.gmra.mxu0 %v1918
    %v1946 = vpop.f32.mrf.mxu0
    %v1947 = vadd.f32 %v1877, %v1946
    %1948 = vmatmul.f32.gmra.mxu0 %v1921
    %v1949 = vpop.f32.mrf.mxu0
    %v1950 = vadd.f32 %v1880, %v1949
    %1951 = vmatmul.f32.gmra.mxu0 %v1924
    %v1952 = vpop.f32.mrf.mxu0
    %v1953 = vadd.f32 %v1883, %v1952
    %1954 = vmatmul.f32.gmra.mxu0 %v1927
    %v1955 = vpop.f32.mrf.mxu0
    %v1956 = vadd.f32 %v1886, %v1955
    %1957 = vdwg.mxu0
    %1958 = vmatpush.msra.mxu0 0.0
    %1959 = vmatpush.msra.mxu0 0.0
    %1960 = vmatpush.msra.mxu0 0.0
    %1961 = vmatpush.msra.mxu0 0.0
    %1962 = vmatpush.msra.mxu0 %v1818
    %1963 = vmatpush.msra.mxu0 %v1816
    %1964 = vmatpush.msra.mxu0 %v1814
    %1965 = vmatpush.msra.mxu0 %v1812
    %1966 = vmatpush.msra.mxu0 %v1810
    %1967 = vmatpush.msra.mxu0 %v1808
    %1968 = vmatpush.msra.mxu0 %v1806
    %1969 = vmatpush.msra.mxu0 %v1804
    %1970 = vmatpush.msra.mxu0 %v1802
    %1971 = vmatpush.msra.mxu0 %v1800
    %1972 = vmatpush.msra.mxu0 %v1798
    %1973 = vmatpush.msra.mxu0 %v1796
    %1974 = vmatmul.f32.gmra.mxu0 %v1918
    %v1975 = vpop.f32.mrf.mxu0
    %v1976 = vadd.f32 %v1906, %v1975
    %1977 = vmatmul.f32.gmra.mxu0 %v1921
    %v1978 = vpop.f32.mrf.mxu0
    %v1979 = vadd.f32 %v1909, %v1978
    %1980 = vmatmul.f32.gmra.mxu0 %v1924
    %v1981 = vpop.f32.mrf.mxu0
    %v1982 = vadd.f32 %v1912, %v1981
    %1983 = vmatmul.f32.gmra.mxu0 %v1927
    %v1984 = vpop.f32.mrf.mxu0
    %v1985 = vadd.f32 %v1915, %v1984
    %1986 = vdwg.mxu0
    %v1987 = vld [vmem:[%s1790 + $0x2] sm:$0xff]
    %v1988 = vld [vmem:[%s1790 + $0xa] sm:$0xff]
    %v1989 = vld [vmem:[%s1790 + $0x12] sm:$0xff]
    %v1990 = vld [vmem:[%s1790 + $0x1a] sm:$0xf]
    %v1991 = vld [vmem:[%s284] sm:$0xff]
    %v1992 = vld [vmem:[%s284 + $0x8] sm:$0xff]
    %v1993 = vld [vmem:[%s284 + $0x10] sm:$0xff]
    %v1994 = vld [vmem:[%s284 + $0x18] sm:$0xff]
    %v1995 = vld [vmem:[%s284 + $0x20] sm:$0xff]
    %v1996 = vld [vmem:[%s284 + $0x28] sm:$0xff]
    %v1997 = vld [vmem:[%s284 + $0x30] sm:$0xff]
    %v1998 = vld [vmem:[%s284 + $0x38] sm:$0xff]
    %v1999 = vld [vmem:[%s284 + $0x40] sm:$0xff]
    %v2000 = vld [vmem:[%s284 + $0x48] sm:$0xff]
    %v2001 = vld [vmem:[%s284 + $0x50] sm:$0xff]
    %v2002 = vld [vmem:[%s284 + $0x58] sm:$0xff]
    %v2003 = vld [vmem:[%s284 + $0x60] sm:$0xff]
    %v2004 = vld [vmem:[%s284 + $0x68] sm:$0xff]
    %v2005 = vld [vmem:[%s284 + $0x70] sm:$0xff]
    %v2006 = vld [vmem:[%s284 + $0x78] sm:$0xff]
    %v2007 = vld [vmem:[%s284 + $0x80] sm:$0xff]
    %v2008 = vld [vmem:[%s284 + $0x88] sm:$0xff]
    %v2009 = vld [vmem:[%s284 + $0x90] sm:$0xff]
    %v2010 = vld [vmem:[%s284 + $0x98] sm:$0xff]
    %v2011 = vld [vmem:[%s284 + $0xa0] sm:$0xff]
    %v2012 = vld [vmem:[%s284 + $0xa8] sm:$0xff]
    %v2013 = vld [vmem:[%s284 + $0xb0] sm:$0xff]
    %v2014 = vld [vmem:[%s284 + $0xb8] sm:$0xff]
    %v2016 = vsel %vm139, %v1987, 0
    %v2019 = vsel %vm139, %v1988, 0
    %v2022 = vsel %vm139, %v1989, 0
    %v2025 = vsel %vm139, %v1990, 0
    %2027 = vmatpush.msra.mxu0 0.0
    %2028 = vmatpush.msra.mxu0 0.0
    %2029 = vmatpush.msra.mxu0 0.0
    %2030 = vmatpush.msra.mxu0 0.0
    %2031 = vmatpush.msra.mxu0 %v2013
    %2032 = vmatpush.msra.mxu0 %v2011
    %2033 = vmatpush.msra.mxu0 %v2009
    %2034 = vmatpush.msra.mxu0 %v2007
    %2035 = vmatpush.msra.mxu0 %v2005
    %2036 = vmatpush.msra.mxu0 %v2003
    %2037 = vmatpush.msra.mxu0 %v2001
    %2038 = vmatpush.msra.mxu0 %v1999
    %2039 = vmatpush.msra.mxu0 %v1997
    %2040 = vmatpush.msra.mxu0 %v1995
    %2041 = vmatpush.msra.mxu0 %v1993
    %2042 = vmatpush.msra.mxu0 %v1991
    %2043 = vmatmul.f32.gmra.mxu0 %v2016
    %v2044 = vpop.f32.mrf.mxu0
    %v2045 = vadd.f32 0.0, %v2044
    %2046 = vmatmul.f32.gmra.mxu0 %v2019
    %v2047 = vpop.f32.mrf.mxu0
    %v2048 = vadd.f32 0.0, %v2047
    %2049 = vmatmul.f32.gmra.mxu0 %v2022
    %v2050 = vpop.f32.mrf.mxu0
    %v2051 = vadd.f32 0.0, %v2050
    %2052 = vmatmul.f32.gmra.mxu0 %v2025
    %v2053 = vpop.f32.mrf.mxu0
    %v2054 = vadd.f32 0.0, %v2053
    %2055 = vdwg.mxu0
    %2056 = vmatpush.msra.mxu0 0.0
    %2057 = vmatpush.msra.mxu0 0.0
    %2058 = vmatpush.msra.mxu0 0.0
    %2059 = vmatpush.msra.mxu0 0.0
    %2060 = vmatpush.msra.mxu0 %v2014
    %2061 = vmatpush.msra.mxu0 %v2012
    %2062 = vmatpush.msra.mxu0 %v2010
    %2063 = vmatpush.msra.mxu0 %v2008
    %2064 = vmatpush.msra.mxu0 %v2006
    %2065 = vmatpush.msra.mxu0 %v2004
    %2066 = vmatpush.msra.mxu0 %v2002
    %2067 = vmatpush.msra.mxu0 %v2000
    %2068 = vmatpush.msra.mxu0 %v1998
    %2069 = vmatpush.msra.mxu0 %v1996
    %2070 = vmatpush.msra.mxu0 %v1994
    %2071 = vmatpush.msra.mxu0 %v1992
    %2072 = vmatmul.f32.gmra.mxu0 %v2016
    %v2073 = vpop.f32.mrf.mxu0
    %v2074 = vadd.f32 0.0, %v2073
    %2075 = vmatmul.f32.gmra.mxu0 %v2019
    %v2076 = vpop.f32.mrf.mxu0
    %v2077 = vadd.f32 0.0, %v2076
    %2078 = vmatmul.f32.gmra.mxu0 %v2022
    %v2079 = vpop.f32.mrf.mxu0
    %v2080 = vadd.f32 0.0, %v2079
    %2081 = vmatmul.f32.gmra.mxu0 %v2025
    %v2082 = vpop.f32.mrf.mxu0
    %v2083 = vadd.f32 0.0, %v2082
    %2084 = vdwg.mxu0
    %v2085 = vadd.f32 %v1947, %v2045
    %v2086 = vadd.f32 %v1976, %v2074
    %v2087 = vadd.f32 %v1950, %v2048
    %v2088 = vadd.f32 %v1979, %v2077
    %v2089 = vadd.f32 %v1953, %v2051
    %v2090 = vadd.f32 %v1982, %v2080
    %v2091 = vadd.f32 %v1956, %v2054
    %v2092 = vadd.f32 %v1985, %v2083
    %v2093 = vld [vmem:[%s1790 + $0x3] sm:$0xff]
    %v2094 = vld [vmem:[%s1790 + $0xb] sm:$0xff]
    %v2095 = vld [vmem:[%s1790 + $0x13] sm:$0xff]
    %v2096 = vld [vmem:[%s1790 + $0x1b] sm:$0xf]
    %v2097 = vld [vmem:[%s391] sm:$0xff]
    %v2098 = vld [vmem:[%s391 + $0x8] sm:$0xff]
    %v2099 = vld [vmem:[%s391 + $0x10] sm:$0xff]
    %v2100 = vld [vmem:[%s391 + $0x18] sm:$0xff]
    %v2101 = vld [vmem:[%s391 + $0x20] sm:$0xff]
    %v2102 = vld [vmem:[%s391 + $0x28] sm:$0xff]
    %v2103 = vld [vmem:[%s391 + $0x30] sm:$0xff]
    %v2104 = vld [vmem:[%s391 + $0x38] sm:$0xff]
    %v2105 = vld [vmem:[%s391 + $0x40] sm:$0xff]
    %v2106 = vld [vmem:[%s391 + $0x48] sm:$0xff]
    %v2107 = vld [vmem:[%s391 + $0x50] sm:$0xff]
    %v2108 = vld [vmem:[%s391 + $0x58] sm:$0xff]
    %v2109 = vld [vmem:[%s391 + $0x60] sm:$0xff]
    %v2110 = vld [vmem:[%s391 + $0x68] sm:$0xff]
    %v2111 = vld [vmem:[%s391 + $0x70] sm:$0xff]
    %v2112 = vld [vmem:[%s391 + $0x78] sm:$0xff]
    %v2113 = vld [vmem:[%s391 + $0x80] sm:$0xff]
    %v2114 = vld [vmem:[%s391 + $0x88] sm:$0xff]
    %v2115 = vld [vmem:[%s391 + $0x90] sm:$0xff]
    %v2116 = vld [vmem:[%s391 + $0x98] sm:$0xff]
    %v2117 = vld [vmem:[%s391 + $0xa0] sm:$0xff]
    %v2118 = vld [vmem:[%s391 + $0xa8] sm:$0xff]
    %v2119 = vld [vmem:[%s391 + $0xb0] sm:$0xff]
    %v2120 = vld [vmem:[%s391 + $0xb8] sm:$0xff]
    %v2122 = vsel %vm139, %v2093, 0
    %v2125 = vsel %vm139, %v2094, 0
    %v2128 = vsel %vm139, %v2095, 0
    %v2131 = vsel %vm139, %v2096, 0
    %2133 = vmatpush.msra.mxu0 0.0
    %2134 = vmatpush.msra.mxu0 0.0
    %2135 = vmatpush.msra.mxu0 0.0
    %2136 = vmatpush.msra.mxu0 0.0
    %2137 = vmatpush.msra.mxu0 %v2119
    %2138 = vmatpush.msra.mxu0 %v2117
    %2139 = vmatpush.msra.mxu0 %v2115
    %2140 = vmatpush.msra.mxu0 %v2113
    %2141 = vmatpush.msra.mxu0 %v2111
    %2142 = vmatpush.msra.mxu0 %v2109
    %2143 = vmatpush.msra.mxu0 %v2107
    %2144 = vmatpush.msra.mxu0 %v2105
    %2145 = vmatpush.msra.mxu0 %v2103
    %2146 = vmatpush.msra.mxu0 %v2101
    %2147 = vmatpush.msra.mxu0 %v2099
    %2148 = vmatpush.msra.mxu0 %v2097
    %2149 = vmatmul.f32.gmra.mxu0 %v2122
    %v2150 = vpop.f32.mrf.mxu0
    %v2151 = vadd.f32 0.0, %v2150
    %2152 = vmatmul.f32.gmra.mxu0 %v2125
    %v2153 = vpop.f32.mrf.mxu0
    %v2154 = vadd.f32 0.0, %v2153
    %2155 = vmatmul.f32.gmra.mxu0 %v2128
    %v2156 = vpop.f32.mrf.mxu0
    %v2157 = vadd.f32 0.0, %v2156
    %2158 = vmatmul.f32.gmra.mxu0 %v2131
    %v2159 = vpop.f32.mrf.mxu0
    %v2160 = vadd.f32 0.0, %v2159
    %2161 = vdwg.mxu0
    %2162 = vmatpush.msra.mxu0 0.0
    %2163 = vmatpush.msra.mxu0 0.0
    %2164 = vmatpush.msra.mxu0 0.0
    %2165 = vmatpush.msra.mxu0 0.0
    %2166 = vmatpush.msra.mxu0 %v2120
    %2167 = vmatpush.msra.mxu0 %v2118
    %2168 = vmatpush.msra.mxu0 %v2116
    %2169 = vmatpush.msra.mxu0 %v2114
    %2170 = vmatpush.msra.mxu0 %v2112
    %2171 = vmatpush.msra.mxu0 %v2110
    %2172 = vmatpush.msra.mxu0 %v2108
    %2173 = vmatpush.msra.mxu0 %v2106
    %2174 = vmatpush.msra.mxu0 %v2104
    %2175 = vmatpush.msra.mxu0 %v2102
    %2176 = vmatpush.msra.mxu0 %v2100
    %2177 = vmatpush.msra.mxu0 %v2098
    %2178 = vmatmul.f32.gmra.mxu0 %v2122
    %v2179 = vpop.f32.mrf.mxu0
    %v2180 = vadd.f32 0.0, %v2179
    %2181 = vmatmul.f32.gmra.mxu0 %v2125
    %v2182 = vpop.f32.mrf.mxu0
    %v2183 = vadd.f32 0.0, %v2182
    %2184 = vmatmul.f32.gmra.mxu0 %v2128
    %v2185 = vpop.f32.mrf.mxu0
    %v2186 = vadd.f32 0.0, %v2185
    %2187 = vmatmul.f32.gmra.mxu0 %v2131
    %v2188 = vpop.f32.mrf.mxu0
    %v2189 = vadd.f32 0.0, %v2188
    %2190 = vdwg.mxu0
    %v2191 = vadd.f32 %v2085, %v2151
    %v2192 = vadd.f32 %v2086, %v2180
    %v2193 = vadd.f32 %v2087, %v2154
    %v2194 = vadd.f32 %v2088, %v2183
    %v2195 = vadd.f32 %v2089, %v2157
    %v2196 = vadd.f32 %v2090, %v2186
    %v2197 = vadd.f32 %v2091, %v2160
    %v2198 = vadd.f32 %v2092, %v2189
    %v2199 = vld [vmem:[%s1790 + $0x4] sm:$0xff]
    %v2200 = vld [vmem:[%s1790 + $0xc] sm:$0xff]
    %v2201 = vld [vmem:[%s1790 + $0x14] sm:$0xff]
    %v2202 = vld [vmem:[%s1790 + $0x1c] sm:$0xf]
    %v2203 = vld [vmem:[%s498] sm:$0xff]
    %v2204 = vld [vmem:[%s498 + $0x8] sm:$0xff]
    %v2205 = vld [vmem:[%s498 + $0x10] sm:$0xff]
    %v2206 = vld [vmem:[%s498 + $0x18] sm:$0xff]
    %v2207 = vld [vmem:[%s498 + $0x20] sm:$0xff]
    %v2208 = vld [vmem:[%s498 + $0x28] sm:$0xff]
    %v2209 = vld [vmem:[%s498 + $0x30] sm:$0xff]
    %v2210 = vld [vmem:[%s498 + $0x38] sm:$0xff]
    %v2211 = vld [vmem:[%s498 + $0x40] sm:$0xff]
    %v2212 = vld [vmem:[%s498 + $0x48] sm:$0xff]
    %v2213 = vld [vmem:[%s498 + $0x50] sm:$0xff]
    %v2214 = vld [vmem:[%s498 + $0x58] sm:$0xff]
    %v2215 = vld [vmem:[%s498 + $0x60] sm:$0xff]
    %v2216 = vld [vmem:[%s498 + $0x68] sm:$0xff]
    %v2217 = vld [vmem:[%s498 + $0x70] sm:$0xff]
    %v2218 = vld [vmem:[%s498 + $0x78] sm:$0xff]
    %v2219 = vld [vmem:[%s498 + $0x80] sm:$0xff]
    %v2220 = vld [vmem:[%s498 + $0x88] sm:$0xff]
    %v2221 = vld [vmem:[%s498 + $0x90] sm:$0xff]
    %v2222 = vld [vmem:[%s498 + $0x98] sm:$0xff]
    %v2223 = vld [vmem:[%s498 + $0xa0] sm:$0xff]
    %v2224 = vld [vmem:[%s498 + $0xa8] sm:$0xff]
    %v2225 = vld [vmem:[%s498 + $0xb0] sm:$0xff]
    %v2226 = vld [vmem:[%s498 + $0xb8] sm:$0xff]
    %v2228 = vsel %vm139, %v2199, 0
    %v2231 = vsel %vm139, %v2200, 0
    %v2234 = vsel %vm139, %v2201, 0
    %v2237 = vsel %vm139, %v2202, 0
    %2239 = vmatpush.msra.mxu0 0.0
    %2240 = vmatpush.msra.mxu0 0.0
    %2241 = vmatpush.msra.mxu0 0.0
    %2242 = vmatpush.msra.mxu0 0.0
    %2243 = vmatpush.msra.mxu0 %v2225
    %2244 = vmatpush.msra.mxu0 %v2223
    %2245 = vmatpush.msra.mxu0 %v2221
    %2246 = vmatpush.msra.mxu0 %v2219
    %2247 = vmatpush.msra.mxu0 %v2217
    %2248 = vmatpush.msra.mxu0 %v2215
    %2249 = vmatpush.msra.mxu0 %v2213
    %2250 = vmatpush.msra.mxu0 %v2211
    %2251 = vmatpush.msra.mxu0 %v2209
    %2252 = vmatpush.msra.mxu0 %v2207
    %2253 = vmatpush.msra.mxu0 %v2205
    %2254 = vmatpush.msra.mxu0 %v2203
    %2255 = vmatmul.f32.gmra.mxu0 %v2228
    %v2256 = vpop.f32.mrf.mxu0
    %v2257 = vadd.f32 0.0, %v2256
    %2258 = vmatmul.f32.gmra.mxu0 %v2231
    %v2259 = vpop.f32.mrf.mxu0
    %v2260 = vadd.f32 0.0, %v2259
    %2261 = vmatmul.f32.gmra.mxu0 %v2234
    %v2262 = vpop.f32.mrf.mxu0
    %v2263 = vadd.f32 0.0, %v2262
    %2264 = vmatmul.f32.gmra.mxu0 %v2237
    %v2265 = vpop.f32.mrf.mxu0
    %v2266 = vadd.f32 0.0, %v2265
    %2267 = vdwg.mxu0
    %2268 = vmatpush.msra.mxu0 0.0
    %2269 = vmatpush.msra.mxu0 0.0
    %2270 = vmatpush.msra.mxu0 0.0
    %2271 = vmatpush.msra.mxu0 0.0
    %2272 = vmatpush.msra.mxu0 %v2226
    %2273 = vmatpush.msra.mxu0 %v2224
    %2274 = vmatpush.msra.mxu0 %v2222
    %2275 = vmatpush.msra.mxu0 %v2220
    %2276 = vmatpush.msra.mxu0 %v2218
    %2277 = vmatpush.msra.mxu0 %v2216
    %2278 = vmatpush.msra.mxu0 %v2214
    %2279 = vmatpush.msra.mxu0 %v2212
    %2280 = vmatpush.msra.mxu0 %v2210
    %2281 = vmatpush.msra.mxu0 %v2208
    %2282 = vmatpush.msra.mxu0 %v2206
    %2283 = vmatpush.msra.mxu0 %v2204
    %2284 = vmatmul.f32.gmra.mxu0 %v2228
    %v2285 = vpop.f32.mrf.mxu0
    %v2286 = vadd.f32 0.0, %v2285
    %2287 = vmatmul.f32.gmra.mxu0 %v2231
    %v2288 = vpop.f32.mrf.mxu0
    %v2289 = vadd.f32 0.0, %v2288
    %2290 = vmatmul.f32.gmra.mxu0 %v2234
    %v2291 = vpop.f32.mrf.mxu0
    %v2292 = vadd.f32 0.0, %v2291
    %2293 = vmatmul.f32.gmra.mxu0 %v2237
    %v2294 = vpop.f32.mrf.mxu0
    %v2295 = vadd.f32 0.0, %v2294
    %2296 = vdwg.mxu0
    %v2297 = vadd.f32 %v2191, %v2257
    %v2298 = vadd.f32 %v2192, %v2286
    %v2299 = vadd.f32 %v2193, %v2260
    %v2300 = vadd.f32 %v2194, %v2289
    %v2301 = vadd.f32 %v2195, %v2263
    %v2302 = vadd.f32 %v2196, %v2292
    %v2303 = vadd.f32 %v2197, %v2266
    %v2304 = vadd.f32 %v2198, %v2295
    %v2305 = vadd.f32 %v2297, %v602
    %v2306 = vadd.f32 %v2298, %v603
    %v2307 = vadd.f32 %v2299, %v602
    %v2308 = vadd.f32 %v2300, %v603
    %v2309 = vadd.f32 %v2301, %v602
    %v2310 = vadd.f32 %v2302, %v603
    %v2311 = vadd.f32 %v2303, %v602
    %v2312 = vadd.f32 %v2304, %v603
    %v2313 = vmax.f32 %v2305, 0.0
    %v2314 = vmax.f32 %v2306, 0.0
    %v2315 = vmax.f32 %v2307, 0.0
    %v2316 = vmax.f32 %v2308, 0.0
    %v2317 = vmax.f32 %v2309, 0.0
    %v2318 = vmax.f32 %v2310, 0.0
    %v2319 = vmax.f32 %v2311, 0.0
    %v2320 = vmax.f32 %v2312, 0.0
    %v2321 = vld [vmem:[%s3] sm:$0xff]
    %v2322 = vld [vmem:[%s3 + $0x8] sm:$0x3f]
    %v2324 = vsel %vm624, %v2321, 0
    %v2327 = vsel %vm624, %v2322, 0
    %v2330 = vsel %vm631, %v2319, 0
    %v2333 = vsel %vm631, %v2320, 0
    %2335 = vmatpush.msra.mxu0 0.0
    %2336 = vmatpush.msra.mxu0 0.0
    %2337 = vmatpush.msra.mxu0 0.0
    %2338 = vmatpush.msra.mxu0 0.0
    %2339 = vmatpush.msra.mxu0 0.0
    %2340 = vmatpush.msra.mxu0 0.0
    %2341 = vmatpush.msra.mxu0 0.0
    %2342 = vmatpush.msra.mxu0 0.0
    %2343 = vmatpush.msra.mxu0 0.0
    %2344 = vmatpush.msra.mxu0 0.0
    %2345 = vmatpush.msra.mxu0 0.0
    %2346 = vmatpush.msra.mxu0 0.0
    %2347 = vmatpush.msra.mxu0 %v2330
    %2348 = vmatpush.msra.mxu0 %v2317
    %2349 = vmatpush.msra.mxu0 %v2315
    %2350 = vmatpush.msra.mxu0 %v2313
    %2351 = vmatmul.f32.gmra.mxu0 %v2324
    %v2352 = vpop.f32.mrf.mxu0
    %v2353 = vadd.f32 0.0, %v2352
    %2354 = vmatmul.f32.gmra.mxu0 %v2327
    %v2355 = vpop.f32.mrf.mxu0
    %v2356 = vadd.f32 0.0, %v2355
    %2357 = vdwg.mxu0
    %2358 = vmatpush.msra.mxu0 0.0
    %2359 = vmatpush.msra.mxu0 0.0
    %2360 = vmatpush.msra.mxu0 0.0
    %2361 = vmatpush.msra.mxu0 0.0
    %2362 = vmatpush.msra.mxu0 0.0
    %2363 = vmatpush.msra.mxu0 0.0
    %2364 = vmatpush.msra.mxu0 0.0
    %2365 = vmatpush.msra.mxu0 0.0
    %2366 = vmatpush.msra.mxu0 0.0
    %2367 = vmatpush.msra.mxu0 0.0
    %2368 = vmatpush.msra.mxu0 0.0
    %2369 = vmatpush.msra.mxu0 0.0
    %2370 = vmatpush.msra.mxu0 %v2333
    %2371 = vmatpush.msra.mxu0 %v2318
    %2372 = vmatpush.msra.mxu0 %v2316
    %2373 = vmatpush.msra.mxu0 %v2314
    %2374 = vmatmul.f32.gmra.mxu0 %v2324
    %v2375 = vpop.f32.mrf.mxu0
    %v2376 = vadd.f32 0.0, %v2375
    %2377 = vmatmul.f32.gmra.mxu0 %v2327
    %v2378 = vpop.f32.mrf.mxu0
    %v2379 = vadd.f32 0.0, %v2378
    %2380 = vdwg.mxu0
    %v2381 = vld [vmem:[%s684] sm:$0xff]
    %v2382 = vld [vmem:[%s684 + $0x8] sm:$0x3f]
    %v2384 = vsel %vm624, %v2381, 0
    %v2387 = vsel %vm624, %v2382, 0
    %2389 = vmatpush.msra.mxu0 0.0
    %2390 = vmatpush.msra.mxu0 0.0
    %2391 = vmatpush.msra.mxu0 0.0
    %2392 = vmatpush.msra.mxu0 0.0
    %2393 = vmatpush.msra.mxu0 0.0
    %2394 = vmatpush.msra.mxu0 0.0
    %2395 = vmatpush.msra.mxu0 0.0
    %2396 = vmatpush.msra.mxu0 0.0
    %2397 = vmatpush.msra.mxu0 0.0
    %2398 = vmatpush.msra.mxu0 0.0
    %2399 = vmatpush.msra.mxu0 0.0
    %2400 = vmatpush.msra.mxu0 0.0
    %2401 = vmatpush.msra.mxu0 %v2330
    %2402 = vmatpush.msra.mxu0 %v2317
    %2403 = vmatpush.msra.mxu0 %v2315
    %2404 = vmatpush.msra.mxu0 %v2313
    %2405 = vmatmul.f32.gmra.mxu0 %v2384
    %v2406 = vpop.f32.mrf.mxu0
    %v2407 = vadd.f32 0.0, %v2406
    %2408 = vmatmul.f32.gmra.mxu0 %v2387
    %v2409 = vpop.f32.mrf.mxu0
    %v2410 = vadd.f32 0.0, %v2409
    %2411 = vdwg.mxu0
    %2412 = vmatpush.msra.mxu0 0.0
    %2413 = vmatpush.msra.mxu0 0.0
    %2414 = vmatpush.msra.mxu0 0.0
    %2415 = vmatpush.msra.mxu0 0.0
    %2416 = vmatpush.msra.mxu0 0.0
    %2417 = vmatpush.msra.mxu0 0.0
    %2418 = vmatpush.msra.mxu0 0.0
    %2419 = vmatpush.msra.mxu0 0.0
    %2420 = vmatpush.msra.mxu0 0.0
    %2421 = vmatpush.msra.mxu0 0.0
    %2422 = vmatpush.msra.mxu0 0.0
    %2423 = vmatpush.msra.mxu0 0.0
    %2424 = vmatpush.msra.mxu0 %v2333
    %2425 = vmatpush.msra.mxu0 %v2318
    %2426 = vmatpush.msra.mxu0 %v2316
    %2427 = vmatpush.msra.mxu0 %v2314
    %2428 = vmatmul.f32.gmra.mxu0 %v2384
    %v2429 = vpop.f32.mrf.mxu0
    %v2430 = vadd.f32 0.0, %v2429
    %2431 = vmatmul.f32.gmra.mxu0 %v2387
    %v2432 = vpop.f32.mrf.mxu0
    %v2433 = vadd.f32 0.0, %v2432
    %2434 = vdwg.mxu0
    %v2435 = vmax.f32 %v2353, %v2407
    %v2436 = vmax.f32 %v2376, %v2430
    %v2437 = vmax.f32 %v2356, %v2410
    %v2438 = vmax.f32 %v2379, %v2433
    %v2439 = vld [vmem:[%s4] sm:$0xff]
    %v2440 = vld [vmem:[%s4 + $0x8] sm:$0xff]
    %v2441 = vld [vmem:[%s4 + $0x10] sm:$0xff]
    %v2442 = vld [vmem:[%s4 + $0x18] sm:$0xff]
    %v2443 = vld [vmem:[%s4 + $0x20] sm:$0xff]
    %v2444 = vld [vmem:[%s4 + $0x28] sm:$0xff]
    %v2445 = vld [vmem:[%s4 + $0x30] sm:$0xff]
    %v2446 = vld [vmem:[%s4 + $0x38] sm:$0xff]
    %v2447 = vld [vmem:[%s4 + $0x40] sm:$0xff]
    %v2448 = vld [vmem:[%s4 + $0x48] sm:$0xff]
    %v2449 = vld [vmem:[%s4 + $0x50] sm:$0xff]
    %v2450 = vld [vmem:[%s4 + $0x58] sm:$0xff]
    %v2451 = vld [vmem:[%s4 + $0x60] sm:$0xff]
    %v2452 = vld [vmem:[%s4 + $0x68] sm:$0xff]
    %v2453 = vld [vmem:[%s4 + $0x70] sm:$0xff]
    %v2454 = vld [vmem:[%s4 + $0x78] sm:$0xff]
    %v2455 = vld [vmem:[%s4 + $0x80] sm:$0xff]
    %v2456 = vld [vmem:[%s4 + $0x88] sm:$0xff]
    %v2457 = vld [vmem:[%s4 + $0x90] sm:$0xff]
    %v2458 = vld [vmem:[%s4 + $0x98] sm:$0xff]
    %v2459 = vld [vmem:[%s4 + $0xa0] sm:$0xff]
    %v2461 = vsel %vm764, %v2436, 0
    %v2464 = vsel %vm764, %v2438, 0
    %2466 = vmatpush.msra.mxu0 %v2454
    %2467 = vmatpush.msra.mxu0 %v2453
    %2468 = vmatpush.msra.mxu0 %v2452
    %2469 = vmatpush.msra.mxu0 %v2451
    %2470 = vmatpush.msra.mxu0 %v2450
    %2471 = vmatpush.msra.mxu0 %v2449
    %2472 = vmatpush.msra.mxu0 %v2448
    %2473 = vmatpush.msra.mxu0 %v2447
    %2474 = vmatpush.msra.mxu0 %v2446
    %2475 = vmatpush.msra.mxu0 %v2445
    %2476 = vmatpush.msra.mxu0 %v2444
    %2477 = vmatpush.msra.mxu0 %v2443
    %2478 = vmatpush.msra.mxu0 %v2442
    %2479 = vmatpush.msra.mxu0 %v2441
    %2480 = vmatpush.msra.mxu0 %v2440
    %2481 = vmatpush.msra.mxu0 %v2439
    %2482 = vmatmul.f32.gmra.mxu0 %v2435
    %v2483 = vpop.f32.mrf.mxu0
    %v2484 = vadd.f32 0.0, %v2483
    %2485 = vmatmul.f32.gmra.mxu0 %v2437
    %v2486 = vpop.f32.mrf.mxu0
    %v2487 = vadd.f32 0.0, %v2486
    %2488 = vdwg.mxu0
    %2489 = vmatpush.msra.mxu0 0.0
    %2490 = vmatpush.msra.mxu0 0.0
    %2491 = vmatpush.msra.mxu0 0.0
    %2492 = vmatpush.msra.mxu0 0.0
    %2493 = vmatpush.msra.mxu0 0.0
    %2494 = vmatpush.msra.mxu0 0.0
    %2495 = vmatpush.msra.mxu0 0.0
    %2496 = vmatpush.msra.mxu0 0.0
    %2497 = vmatpush.msra.mxu0 0.0
    %2498 = vmatpush.msra.mxu0 0.0
    %2499 = vmatpush.msra.mxu0 0.0
    %2500 = vmatpush.msra.mxu0 %v2459
    %2501 = vmatpush.msra.mxu0 %v2458
    %2502 = vmatpush.msra.mxu0 %v2457
    %2503 = vmatpush.msra.mxu0 %v2456
    %2504 = vmatpush.msra.mxu0 %v2455
    %2505 = vmatmul.f32.gmra.mxu0 %v2461
    %v2506 = vpop.f32.mrf.mxu0
    %v2507 = vadd.f32 %v2484, %v2506
    %2508 = vmatmul.f32.gmra.mxu0 %v2464
    %v2509 = vpop.f32.mrf.mxu0
    %v2510 = vadd.f32 %v2487, %v2509
    %2511 = vdwg.mxu0
    %v2512 = vld [vmem:[%s817] sm:$0xff]
    %v2513 = vld [vmem:[%s817 + $0x8] sm:$0xff]
    %v2514 = vld [vmem:[%s817 + $0x10] sm:$0xff]
    %v2515 = vld [vmem:[%s817 + $0x18] sm:$0xff]
    %v2516 = vld [vmem:[%s817 + $0x20] sm:$0xff]
    %v2517 = vld [vmem:[%s817 + $0x28] sm:$0xff]
    %v2518 = vld [vmem:[%s817 + $0x30] sm:$0xff]
    %v2519 = vld [vmem:[%s817 + $0x38] sm:$0xff]
    %v2520 = vld [vmem:[%s817 + $0x40] sm:$0xff]
    %v2521 = vld [vmem:[%s817 + $0x48] sm:$0xff]
    %v2522 = vld [vmem:[%s817 + $0x50] sm:$0xff]
    %v2523 = vld [vmem:[%s817 + $0x58] sm:$0xff]
    %v2524 = vld [vmem:[%s817 + $0x60] sm:$0xff]
    %v2525 = vld [vmem:[%s817 + $0x68] sm:$0xff]
    %v2526 = vld [vmem:[%s817 + $0x70] sm:$0xff]
    %v2527 = vld [vmem:[%s817 + $0x78] sm:$0xff]
    %v2528 = vld [vmem:[%s817 + $0x80] sm:$0xff]
    %v2529 = vld [vmem:[%s817 + $0x88] sm:$0xff]
    %v2530 = vld [vmem:[%s817 + $0x90] sm:$0xff]
    %v2531 = vld [vmem:[%s817 + $0x98] sm:$0xff]
    %v2532 = vld [vmem:[%s817 + $0xa0] sm:$0xff]
    %2533 = vmatpush.msra.mxu0 %v2527
    %2534 = vmatpush.msra.mxu0 %v2526
    %2535 = vmatpush.msra.mxu0 %v2525
    %2536 = vmatpush.msra.mxu0 %v2524
    %2537 = vmatpush.msra.mxu0 %v2523
    %2538 = vmatpush.msra.mxu0 %v2522
    %2539 = vmatpush.msra.mxu0 %v2521
    %2540 = vmatpush.msra.mxu0 %v2520
    %2541 = vmatpush.msra.mxu0 %v2519
    %2542 = vmatpush.msra.mxu0 %v2518
    %2543 = vmatpush.msra.mxu0 %v2517
    %2544 = vmatpush.msra.mxu0 %v2516
    %2545 = vmatpush.msra.mxu0 %v2515
    %2546 = vmatpush.msra.mxu0 %v2514
    %2547 = vmatpush.msra.mxu0 %v2513
    %2548 = vmatpush.msra.mxu0 %v2512
    %2549 = vmatmul.f32.gmra.mxu0 %v2435
    %v2550 = vpop.f32.mrf.mxu0
    %v2551 = vadd.f32 0.0, %v2550
    %2552 = vmatmul.f32.gmra.mxu0 %v2437
    %v2553 = vpop.f32.mrf.mxu0
    %v2554 = vadd.f32 0.0, %v2553
    %2555 = vdwg.mxu0
    %2556 = vmatpush.msra.mxu0 0.0
    %2557 = vmatpush.msra.mxu0 0.0
    %2558 = vmatpush.msra.mxu0 0.0
    %2559 = vmatpush.msra.mxu0 0.0
    %2560 = vmatpush.msra.mxu0 0.0
    %2561 = vmatpush.msra.mxu0 0.0
    %2562 = vmatpush.msra.mxu0 0.0
    %2563 = vmatpush.msra.mxu0 0.0
    %2564 = vmatpush.msra.mxu0 0.0
    %2565 = vmatpush.msra.mxu0 0.0
    %2566 = vmatpush.msra.mxu0 0.0
    %2567 = vmatpush.msra.mxu0 %v2532
    %2568 = vmatpush.msra.mxu0 %v2531
    %2569 = vmatpush.msra.mxu0 %v2530
    %2570 = vmatpush.msra.mxu0 %v2529
    %2571 = vmatpush.msra.mxu0 %v2528
    %2572 = vmatmul.f32.gmra.mxu0 %v2461
    %v2573 = vpop.f32.mrf.mxu0
    %v2574 = vadd.f32 %v2551, %v2573
    %2575 = vmatmul.f32.gmra.mxu0 %v2464
    %v2576 = vpop.f32.mrf.mxu0
    %v2577 = vadd.f32 %v2554, %v2576
    %2578 = vdwg.mxu0
    %v2579 = vmax.f32 %v2507, %v2574
    %v2580 = vmax.f32 %v2510, %v2577
    %s2581 = scalar_lea.vmem [#allocation2], 16
    %2582 = vst.msk [vmem:[%s2581] sm:$0xff] %vm887, %v2579
    %2583 = vst.msk [vmem:[%s2581 + $0x8] sm:$0x3f] %vm889, %v2580
    %v2584 = vld [vmem:[%s2581] sm:$0xff]
    %v2585 = vld [vmem:[%s2581 + $0x8] sm:$0x3]
    %v2586 = vld [vmem:[%s5] sm:$0xff]
    %v2587 = vld [vmem:[%s5 + $0x8] sm:$0xff]
    %v2588 = vld [vmem:[%s5 + $0x10] sm:$0xff]
    %v2589 = vld [vmem:[%s5 + $0x18] sm:$0xff]
    %v2590 = vld [vmem:[%s5 + $0x20] sm:$0xff]
    %v2591 = vld [vmem:[%s5 + $0x28] sm:$0xff]
    %v2592 = vld [vmem:[%s5 + $0x30] sm:$0xff]
    %v2593 = vld [vmem:[%s5 + $0x38] sm:$0xff]
    %v2594 = vld [vmem:[%s5 + $0x40] sm:$0xff]
    %v2595 = vld [vmem:[%s5 + $0x48] sm:$0xff]
    %v2596 = vld [vmem:[%s5 + $0x50] sm:$0xff]
    %v2597 = vld [vmem:[%s5 + $0x58] sm:$0xff]
    %v2598 = vld [vmem:[%s5 + $0x60] sm:$0xff]
    %v2599 = vld [vmem:[%s5 + $0x68] sm:$0xff]
    %v2600 = vld [vmem:[%s5 + $0x70] sm:$0xff]
    %v2601 = vld [vmem:[%s5 + $0x78] sm:$0xff]
    %v2602 = vld [vmem:[%s5 + $0x80] sm:$0xff]
    %v2603 = vld [vmem:[%s5 + $0x88] sm:$0xff]
    %v2604 = vld [vmem:[%s5 + $0x90] sm:$0xff]
    %v2605 = vld [vmem:[%s5 + $0x98] sm:$0xff]
    %v2606 = vld [vmem:[%s5 + $0xa0] sm:$0xf]
    %v2607 = vld [vmem:[%s5 + $0xa8] sm:$0xf]
    %v2608 = vld [vmem:[%s2581 + $0x1] sm:$0xff]
    %v2609 = vld [vmem:[%s2581 + $0x9] sm:$0x3]
    %v2610 = vld [vmem:[%s917] sm:$0xff]
    %v2611 = vld [vmem:[%s917 + $0x8] sm:$0xff]
    %v2612 = vld [vmem:[%s917 + $0x10] sm:$0xff]
    %v2613 = vld [vmem:[%s917 + $0x18] sm:$0xff]
    %v2614 = vld [vmem:[%s917 + $0x20] sm:$0xff]
    %v2615 = vld [vmem:[%s917 + $0x28] sm:$0xff]
    %v2616 = vld [vmem:[%s917 + $0x30] sm:$0xff]
    %v2617 = vld [vmem:[%s917 + $0x38] sm:$0xff]
    %v2618 = vld [vmem:[%s917 + $0x40] sm:$0xff]
    %v2619 = vld [vmem:[%s917 + $0x48] sm:$0xff]
    %v2620 = vld [vmem:[%s917 + $0x50] sm:$0xff]
    %v2621 = vld [vmem:[%s917 + $0x58] sm:$0xff]
    %v2622 = vld [vmem:[%s917 + $0x60] sm:$0xff]
    %v2623 = vld [vmem:[%s917 + $0x68] sm:$0xff]
    %v2624 = vld [vmem:[%s917 + $0x70] sm:$0xff]
    %v2625 = vld [vmem:[%s917 + $0x78] sm:$0xff]
    %v2626 = vld [vmem:[%s917 + $0x80] sm:$0xff]
    %v2627 = vld [vmem:[%s917 + $0x88] sm:$0xff]
    %v2628 = vld [vmem:[%s917 + $0x90] sm:$0xff]
    %v2629 = vld [vmem:[%s917 + $0x98] sm:$0xff]
    %v2630 = vld [vmem:[%s917 + $0xa0] sm:$0xf]
    %v2631 = vld [vmem:[%s917 + $0xa8] sm:$0xf]
    %v2633 = vsel %vm887, %v2608, 0
    %v2636 = vsel %vm887, %v2609, 0
    %v2639 = vsel %vm631, %v2630, 0
    %v2642 = vsel %vm631, %v2631, 0
    %2644 = vmatpush.msra.mxu0 0.0
    %2645 = vmatpush.msra.mxu0 0.0
    %2646 = vmatpush.msra.mxu0 0.0
    %2647 = vmatpush.msra.mxu0 0.0
    %2648 = vmatpush.msra.mxu0 0.0
    %2649 = vmatpush.msra.mxu0 %v2639
    %2650 = vmatpush.msra.mxu0 %v2628
    %2651 = vmatpush.msra.mxu0 %v2626
    %2652 = vmatpush.msra.mxu0 %v2624
    %2653 = vmatpush.msra.mxu0 %v2622
    %2654 = vmatpush.msra.mxu0 %v2620
    %2655 = vmatpush.msra.mxu0 %v2618
    %2656 = vmatpush.msra.mxu0 %v2616
    %2657 = vmatpush.msra.mxu0 %v2614
    %2658 = vmatpush.msra.mxu0 %v2612
    %2659 = vmatpush.msra.mxu0 %v2610
    %2660 = vmatmul.f32.gmra.mxu0 %v2633
    %v2661 = vpop.f32.mrf.mxu0
    %v2662 = vadd.f32 0.0, %v2661
    %2663 = vmatmul.f32.gmra.mxu0 %v2636
    %v2664 = vpop.f32.mrf.mxu0
    %v2665 = vadd.f32 0.0, %v2664
    %2666 = vdwg.mxu0
    %2667 = vmatpush.msra.mxu0 0.0
    %2668 = vmatpush.msra.mxu0 0.0
    %2669 = vmatpush.msra.mxu0 0.0
    %2670 = vmatpush.msra.mxu0 0.0
    %2671 = vmatpush.msra.mxu0 0.0
    %2672 = vmatpush.msra.mxu0 %v2642
    %2673 = vmatpush.msra.mxu0 %v2629
    %2674 = vmatpush.msra.mxu0 %v2627
    %2675 = vmatpush.msra.mxu0 %v2625
    %2676 = vmatpush.msra.mxu0 %v2623
    %2677 = vmatpush.msra.mxu0 %v2621
    %2678 = vmatpush.msra.mxu0 %v2619
    %2679 = vmatpush.msra.mxu0 %v2617
    %2680 = vmatpush.msra.mxu0 %v2615
    %2681 = vmatpush.msra.mxu0 %v2613
    %2682 = vmatpush.msra.mxu0 %v2611
    %2683 = vmatmul.f32.gmra.mxu0 %v2633
    %v2684 = vpop.f32.mrf.mxu0
    %v2685 = vadd.f32 0.0, %v2684
    %2686 = vmatmul.f32.gmra.mxu0 %v2636
    %v2687 = vpop.f32.mrf.mxu0
    %v2688 = vadd.f32 0.0, %v2687
    %2689 = vdwg.mxu0
    %v2691 = vsel %vm887, %v2584, 0
    %v2694 = vsel %vm887, %v2585, 0
    %v2697 = vsel %vm631, %v2606, 0
    %v2700 = vsel %vm631, %v2607, 0
    %2702 = vmatpush.msra.mxu0 0.0
    %2703 = vmatpush.msra.mxu0 0.0
    %2704 = vmatpush.msra.mxu0 0.0
    %2705 = vmatpush.msra.mxu0 0.0
    %2706 = vmatpush.msra.mxu0 0.0
    %2707 = vmatpush.msra.mxu0 %v2697
    %2708 = vmatpush.msra.mxu0 %v2604
    %2709 = vmatpush.msra.mxu0 %v2602
    %2710 = vmatpush.msra.mxu0 %v2600
    %2711 = vmatpush.msra.mxu0 %v2598
    %2712 = vmatpush.msra.mxu0 %v2596
    %2713 = vmatpush.msra.mxu0 %v2594
    %2714 = vmatpush.msra.mxu0 %v2592
    %2715 = vmatpush.msra.mxu0 %v2590
    %2716 = vmatpush.msra.mxu0 %v2588
    %2717 = vmatpush.msra.mxu0 %v2586
    %2718 = vmatmul.f32.gmra.mxu0 %v2691
    %v2719 = vpop.f32.mrf.mxu0
    %v2720 = vadd.f32 %v2662, %v2719
    %2721 = vmatmul.f32.gmra.mxu0 %v2694
    %v2722 = vpop.f32.mrf.mxu0
    %v2723 = vadd.f32 %v2665, %v2722
    %2724 = vdwg.mxu0
    %2725 = vmatpush.msra.mxu0 0.0
    %2726 = vmatpush.msra.mxu0 0.0
    %2727 = vmatpush.msra.mxu0 0.0
    %2728 = vmatpush.msra.mxu0 0.0
    %2729 = vmatpush.msra.mxu0 0.0
    %2730 = vmatpush.msra.mxu0 %v2700
    %2731 = vmatpush.msra.mxu0 %v2605
    %2732 = vmatpush.msra.mxu0 %v2603
    %2733 = vmatpush.msra.mxu0 %v2601
    %2734 = vmatpush.msra.mxu0 %v2599
    %2735 = vmatpush.msra.mxu0 %v2597
    %2736 = vmatpush.msra.mxu0 %v2595
    %2737 = vmatpush.msra.mxu0 %v2593
    %2738 = vmatpush.msra.mxu0 %v2591
    %2739 = vmatpush.msra.mxu0 %v2589
    %2740 = vmatpush.msra.mxu0 %v2587
    %2741 = vmatmul.f32.gmra.mxu0 %v2691
    %v2742 = vpop.f32.mrf.mxu0
    %v2743 = vadd.f32 %v2685, %v2742
    %2744 = vmatmul.f32.gmra.mxu0 %v2694
    %v2745 = vpop.f32.mrf.mxu0
    %v2746 = vadd.f32 %v2688, %v2745
    %2747 = vdwg.mxu0
    %v2748 = vld [vmem:[%s2581 + $0x2] sm:$0xff]
    %v2749 = vld [vmem:[%s2581 + $0xa] sm:$0x3]
    %v2750 = vld [vmem:[%s1058] sm:$0xff]
    %v2751 = vld [vmem:[%s1058 + $0x8] sm:$0xff]
    %v2752 = vld [vmem:[%s1058 + $0x10] sm:$0xff]
    %v2753 = vld [vmem:[%s1058 + $0x18] sm:$0xff]
    %v2754 = vld [vmem:[%s1058 + $0x20] sm:$0xff]
    %v2755 = vld [vmem:[%s1058 + $0x28] sm:$0xff]
    %v2756 = vld [vmem:[%s1058 + $0x30] sm:$0xff]
    %v2757 = vld [vmem:[%s1058 + $0x38] sm:$0xff]
    %v2758 = vld [vmem:[%s1058 + $0x40] sm:$0xff]
    %v2759 = vld [vmem:[%s1058 + $0x48] sm:$0xff]
    %v2760 = vld [vmem:[%s1058 + $0x50] sm:$0xff]
    %v2761 = vld [vmem:[%s1058 + $0x58] sm:$0xff]
    %v2762 = vld [vmem:[%s1058 + $0x60] sm:$0xff]
    %v2763 = vld [vmem:[%s1058 + $0x68] sm:$0xff]
    %v2764 = vld [vmem:[%s1058 + $0x70] sm:$0xff]
    %v2765 = vld [vmem:[%s1058 + $0x78] sm:$0xff]
    %v2766 = vld [vmem:[%s1058 + $0x80] sm:$0xff]
    %v2767 = vld [vmem:[%s1058 + $0x88] sm:$0xff]
    %v2768 = vld [vmem:[%s1058 + $0x90] sm:$0xff]
    %v2769 = vld [vmem:[%s1058 + $0x98] sm:$0xff]
    %v2770 = vld [vmem:[%s1058 + $0xa0] sm:$0xf]
    %v2771 = vld [vmem:[%s1058 + $0xa8] sm:$0xf]
    %v2773 = vsel %vm887, %v2748, 0
    %v2776 = vsel %vm887, %v2749, 0
    %v2779 = vsel %vm631, %v2770, 0
    %v2782 = vsel %vm631, %v2771, 0
    %2784 = vmatpush.msra.mxu0 0.0
    %2785 = vmatpush.msra.mxu0 0.0
    %2786 = vmatpush.msra.mxu0 0.0
    %2787 = vmatpush.msra.mxu0 0.0
    %2788 = vmatpush.msra.mxu0 0.0
    %2789 = vmatpush.msra.mxu0 %v2779
    %2790 = vmatpush.msra.mxu0 %v2768
    %2791 = vmatpush.msra.mxu0 %v2766
    %2792 = vmatpush.msra.mxu0 %v2764
    %2793 = vmatpush.msra.mxu0 %v2762
    %2794 = vmatpush.msra.mxu0 %v2760
    %2795 = vmatpush.msra.mxu0 %v2758
    %2796 = vmatpush.msra.mxu0 %v2756
    %2797 = vmatpush.msra.mxu0 %v2754
    %2798 = vmatpush.msra.mxu0 %v2752
    %2799 = vmatpush.msra.mxu0 %v2750
    %2800 = vmatmul.f32.gmra.mxu0 %v2773
    %v2801 = vpop.f32.mrf.mxu0
    %v2802 = vadd.f32 0.0, %v2801
    %2803 = vmatmul.f32.gmra.mxu0 %v2776
    %v2804 = vpop.f32.mrf.mxu0
    %v2805 = vadd.f32 0.0, %v2804
    %2806 = vdwg.mxu0
    %2807 = vmatpush.msra.mxu0 0.0
    %2808 = vmatpush.msra.mxu0 0.0
    %2809 = vmatpush.msra.mxu0 0.0
    %2810 = vmatpush.msra.mxu0 0.0
    %2811 = vmatpush.msra.mxu0 0.0
    %2812 = vmatpush.msra.mxu0 %v2782
    %2813 = vmatpush.msra.mxu0 %v2769
    %2814 = vmatpush.msra.mxu0 %v2767
    %2815 = vmatpush.msra.mxu0 %v2765
    %2816 = vmatpush.msra.mxu0 %v2763
    %2817 = vmatpush.msra.mxu0 %v2761
    %2818 = vmatpush.msra.mxu0 %v2759
    %2819 = vmatpush.msra.mxu0 %v2757
    %2820 = vmatpush.msra.mxu0 %v2755
    %2821 = vmatpush.msra.mxu0 %v2753
    %2822 = vmatpush.msra.mxu0 %v2751
    %2823 = vmatmul.f32.gmra.mxu0 %v2773
    %v2824 = vpop.f32.mrf.mxu0
    %v2825 = vadd.f32 0.0, %v2824
    %2826 = vmatmul.f32.gmra.mxu0 %v2776
    %v2827 = vpop.f32.mrf.mxu0
    %v2828 = vadd.f32 0.0, %v2827
    %2829 = vdwg.mxu0
    %v2830 = vadd.f32 %v2720, %v2802
    %v2831 = vadd.f32 %v2743, %v2825
    %v2832 = vadd.f32 %v2723, %v2805
    %v2833 = vadd.f32 %v2746, %v2828
    %v2834 = vld [vmem:[%s2581 + $0x3] sm:$0xff]
    %v2835 = vld [vmem:[%s2581 + $0xb] sm:$0x3]
    %v2836 = vld [vmem:[%s1145] sm:$0xff]
    %v2837 = vld [vmem:[%s1145 + $0x8] sm:$0xff]
    %v2838 = vld [vmem:[%s1145 + $0x10] sm:$0xff]
    %v2839 = vld [vmem:[%s1145 + $0x18] sm:$0xff]
    %v2840 = vld [vmem:[%s1145 + $0x20] sm:$0xff]
    %v2841 = vld [vmem:[%s1145 + $0x28] sm:$0xff]
    %v2842 = vld [vmem:[%s1145 + $0x30] sm:$0xff]
    %v2843 = vld [vmem:[%s1145 + $0x38] sm:$0xff]
    %v2844 = vld [vmem:[%s1145 + $0x40] sm:$0xff]
    %v2845 = vld [vmem:[%s1145 + $0x48] sm:$0xff]
    %v2846 = vld [vmem:[%s1145 + $0x50] sm:$0xff]
    %v2847 = vld [vmem:[%s1145 + $0x58] sm:$0xff]
    %v2848 = vld [vmem:[%s1145 + $0x60] sm:$0xff]
    %v2849 = vld [vmem:[%s1145 + $0x68] sm:$0xff]
    %v2850 = vld [vmem:[%s1145 + $0x70] sm:$0xff]
    %v2851 = vld [vmem:[%s1145 + $0x78] sm:$0xff]
    %v2852 = vld [vmem:[%s1145 + $0x80] sm:$0xff]
    %v2853 = vld [vmem:[%s1145 + $0x88] sm:$0xff]
    %v2854 = vld [vmem:[%s1145 + $0x90] sm:$0xff]
    %v2855 = vld [vmem:[%s1145 + $0x98] sm:$0xff]
    %v2856 = vld [vmem:[%s1145 + $0xa0] sm:$0xf]
    %v2857 = vld [vmem:[%s1145 + $0xa8] sm:$0xf]
    %v2859 = vsel %vm887, %v2834, 0
    %v2862 = vsel %vm887, %v2835, 0
    %v2865 = vsel %vm631, %v2856, 0
    %v2868 = vsel %vm631, %v2857, 0
    %2870 = vmatpush.msra.mxu0 0.0
    %2871 = vmatpush.msra.mxu0 0.0
    %2872 = vmatpush.msra.mxu0 0.0
    %2873 = vmatpush.msra.mxu0 0.0
    %2874 = vmatpush.msra.mxu0 0.0
    %2875 = vmatpush.msra.mxu0 %v2865
    %2876 = vmatpush.msra.mxu0 %v2854
    %2877 = vmatpush.msra.mxu0 %v2852
    %2878 = vmatpush.msra.mxu0 %v2850
    %2879 = vmatpush.msra.mxu0 %v2848
    %2880 = vmatpush.msra.mxu0 %v2846
    %2881 = vmatpush.msra.mxu0 %v2844
    %2882 = vmatpush.msra.mxu0 %v2842
    %2883 = vmatpush.msra.mxu0 %v2840
    %2884 = vmatpush.msra.mxu0 %v2838
    %2885 = vmatpush.msra.mxu0 %v2836
    %2886 = vmatmul.f32.gmra.mxu0 %v2859
    %v2887 = vpop.f32.mrf.mxu0
    %v2888 = vadd.f32 0.0, %v2887
    %2889 = vmatmul.f32.gmra.mxu0 %v2862
    %v2890 = vpop.f32.mrf.mxu0
    %v2891 = vadd.f32 0.0, %v2890
    %2892 = vdwg.mxu0
    %2893 = vmatpush.msra.mxu0 0.0
    %2894 = vmatpush.msra.mxu0 0.0
    %2895 = vmatpush.msra.mxu0 0.0
    %2896 = vmatpush.msra.mxu0 0.0
    %2897 = vmatpush.msra.mxu0 0.0
    %2898 = vmatpush.msra.mxu0 %v2868
    %2899 = vmatpush.msra.mxu0 %v2855
    %2900 = vmatpush.msra.mxu0 %v2853
    %2901 = vmatpush.msra.mxu0 %v2851
    %2902 = vmatpush.msra.mxu0 %v2849
    %2903 = vmatpush.msra.mxu0 %v2847
    %2904 = vmatpush.msra.mxu0 %v2845
    %2905 = vmatpush.msra.mxu0 %v2843
    %2906 = vmatpush.msra.mxu0 %v2841
    %2907 = vmatpush.msra.mxu0 %v2839
    %2908 = vmatpush.msra.mxu0 %v2837
    %2909 = vmatmul.f32.gmra.mxu0 %v2859
    %v2910 = vpop.f32.mrf.mxu0
    %v2911 = vadd.f32 0.0, %v2910
    %2912 = vmatmul.f32.gmra.mxu0 %v2862
    %v2913 = vpop.f32.mrf.mxu0
    %v2914 = vadd.f32 0.0, %v2913
    %2915 = vdwg.mxu0
    %v2916 = vadd.f32 %v2830, %v2888
    %v2917 = vadd.f32 %v2831, %v2911
    %v2918 = vadd.f32 %v2832, %v2891
    %v2919 = vadd.f32 %v2833, %v2914
    %v2920 = vld [vmem:[%s2581 + $0x4] sm:$0xff]
    %v2921 = vld [vmem:[%s2581 + $0xc] sm:$0x3]
    %v2922 = vld [vmem:[%s1232] sm:$0xff]
    %v2923 = vld [vmem:[%s1232 + $0x8] sm:$0xff]
    %v2924 = vld [vmem:[%s1232 + $0x10] sm:$0xff]
    %v2925 = vld [vmem:[%s1232 + $0x18] sm:$0xff]
    %v2926 = vld [vmem:[%s1232 + $0x20] sm:$0xff]
    %v2927 = vld [vmem:[%s1232 + $0x28] sm:$0xff]
    %v2928 = vld [vmem:[%s1232 + $0x30] sm:$0xff]
    %v2929 = vld [vmem:[%s1232 + $0x38] sm:$0xff]
    %v2930 = vld [vmem:[%s1232 + $0x40] sm:$0xff]
    %v2931 = vld [vmem:[%s1232 + $0x48] sm:$0xff]
    %v2932 = vld [vmem:[%s1232 + $0x50] sm:$0xff]
    %v2933 = vld [vmem:[%s1232 + $0x58] sm:$0xff]
    %v2934 = vld [vmem:[%s1232 + $0x60] sm:$0xff]
    %v2935 = vld [vmem:[%s1232 + $0x68] sm:$0xff]
    %v2936 = vld [vmem:[%s1232 + $0x70] sm:$0xff]
    %v2937 = vld [vmem:[%s1232 + $0x78] sm:$0xff]
    %v2938 = vld [vmem:[%s1232 + $0x80] sm:$0xff]
    %v2939 = vld [vmem:[%s1232 + $0x88] sm:$0xff]
    %v2940 = vld [vmem:[%s1232 + $0x90] sm:$0xff]
    %v2941 = vld [vmem:[%s1232 + $0x98] sm:$0xff]
    %v2942 = vld [vmem:[%s1232 + $0xa0] sm:$0xf]
    %v2943 = vld [vmem:[%s1232 + $0xa8] sm:$0xf]
    %v2945 = vsel %vm887, %v2920, 0
    %v2948 = vsel %vm887, %v2921, 0
    %v2951 = vsel %vm631, %v2942, 0
    %v2954 = vsel %vm631, %v2943, 0
    %2956 = vmatpush.msra.mxu0 0.0
    %2957 = vmatpush.msra.mxu0 0.0
    %2958 = vmatpush.msra.mxu0 0.0
    %2959 = vmatpush.msra.mxu0 0.0
    %2960 = vmatpush.msra.mxu0 0.0
    %2961 = vmatpush.msra.mxu0 %v2951
    %2962 = vmatpush.msra.mxu0 %v2940
    %2963 = vmatpush.msra.mxu0 %v2938
    %2964 = vmatpush.msra.mxu0 %v2936
    %2965 = vmatpush.msra.mxu0 %v2934
    %2966 = vmatpush.msra.mxu0 %v2932
    %2967 = vmatpush.msra.mxu0 %v2930
    %2968 = vmatpush.msra.mxu0 %v2928
    %2969 = vmatpush.msra.mxu0 %v2926
    %2970 = vmatpush.msra.mxu0 %v2924
    %2971 = vmatpush.msra.mxu0 %v2922
    %2972 = vmatmul.f32.gmra.mxu0 %v2945
    %v2973 = vpop.f32.mrf.mxu0
    %v2974 = vadd.f32 0.0, %v2973
    %2975 = vmatmul.f32.gmra.mxu0 %v2948
    %v2976 = vpop.f32.mrf.mxu0
    %v2977 = vadd.f32 0.0, %v2976
    %2978 = vdwg.mxu0
    %2979 = vmatpush.msra.mxu0 0.0
    %2980 = vmatpush.msra.mxu0 0.0
    %2981 = vmatpush.msra.mxu0 0.0
    %2982 = vmatpush.msra.mxu0 0.0
    %2983 = vmatpush.msra.mxu0 0.0
    %2984 = vmatpush.msra.mxu0 %v2954
    %2985 = vmatpush.msra.mxu0 %v2941
    %2986 = vmatpush.msra.mxu0 %v2939
    %2987 = vmatpush.msra.mxu0 %v2937
    %2988 = vmatpush.msra.mxu0 %v2935
    %2989 = vmatpush.msra.mxu0 %v2933
    %2990 = vmatpush.msra.mxu0 %v2931
    %2991 = vmatpush.msra.mxu0 %v2929
    %2992 = vmatpush.msra.mxu0 %v2927
    %2993 = vmatpush.msra.mxu0 %v2925
    %2994 = vmatpush.msra.mxu0 %v2923
    %2995 = vmatmul.f32.gmra.mxu0 %v2945
    %v2996 = vpop.f32.mrf.mxu0
    %v2997 = vadd.f32 0.0, %v2996
    %2998 = vmatmul.f32.gmra.mxu0 %v2948
    %v2999 = vpop.f32.mrf.mxu0
    %v3000 = vadd.f32 0.0, %v2999
    %3001 = vdwg.mxu0
    %v3002 = vadd.f32 %v2916, %v2974
    %v3003 = vadd.f32 %v2917, %v2997
    %v3004 = vadd.f32 %v2918, %v2977
    %v3005 = vadd.f32 %v2919, %v3000
    %v3006 = vadd.f32 %v3002, %v1318
    %v3007 = vadd.f32 %v3003, %v1319
    %v3008 = vadd.f32 %v3004, %v1318
    %v3009 = vadd.f32 %v3005, %v1319
    %v3010 = vmax.f32 %v3006, 0.0
    %v3011 = vmax.f32 %v3007, 0.0
    %v3012 = vmax.f32 %v3008, 0.0
    %v3013 = vmax.f32 %v3009, 0.0
    %v3014 = vld [vmem:[%s7] sm:$0x1f]
    %v3016 = vsel %vm1331, %v3014, 0
    %v3019 = vsel %vm1335, %v3012, 0
    %v3022 = vsel %vm1335, %v3013, 0
    %3024 = vmatpush.msra.mxu0 0.0
    %3025 = vmatpush.msra.mxu0 0.0
    %3026 = vmatpush.msra.mxu0 0.0
    %3027 = vmatpush.msra.mxu0 0.0
    %3028 = vmatpush.msra.mxu0 0.0
    %3029 = vmatpush.msra.mxu0 0.0
    %3030 = vmatpush.msra.mxu0 0.0
    %3031 = vmatpush.msra.mxu0 0.0
    %3032 = vmatpush.msra.mxu0 0.0
    %3033 = vmatpush.msra.mxu0 0.0
    %3034 = vmatpush.msra.mxu0 0.0
    %3035 = vmatpush.msra.mxu0 0.0
    %3036 = vmatpush.msra.mxu0 0.0
    %3037 = vmatpush.msra.mxu0 0.0
    %3038 = vmatpush.msra.mxu0 %v3019
    %3039 = vmatpush.msra.mxu0 %v3010
    %3040 = vmatmul.f32.gmra.mxu0 %v3016
    %v3041 = vpop.f32.mrf.mxu0
    %v3042 = vadd.f32 0.0, %v3041
    %3043 = vdwg.mxu0
    %3044 = vmatpush.msra.mxu0 0.0
    %3045 = vmatpush.msra.mxu0 0.0
    %3046 = vmatpush.msra.mxu0 0.0
    %3047 = vmatpush.msra.mxu0 0.0
    %3048 = vmatpush.msra.mxu0 0.0
    %3049 = vmatpush.msra.mxu0 0.0
    %3050 = vmatpush.msra.mxu0 0.0
    %3051 = vmatpush.msra.mxu0 0.0
    %3052 = vmatpush.msra.mxu0 0.0
    %3053 = vmatpush.msra.mxu0 0.0
    %3054 = vmatpush.msra.mxu0 0.0
    %3055 = vmatpush.msra.mxu0 0.0
    %3056 = vmatpush.msra.mxu0 0.0
    %3057 = vmatpush.msra.mxu0 0.0
    %3058 = vmatpush.msra.mxu0 %v3022
    %3059 = vmatpush.msra.mxu0 %v3011
    %3060 = vmatmul.f32.gmra.mxu0 %v3016
    %v3061 = vpop.f32.mrf.mxu0
    %v3062 = vadd.f32 0.0, %v3061
    %3063 = vdwg.mxu0
    %v3064 = vld [vmem:[%s1382] sm:$0x1f]
    %v3066 = vsel %vm1331, %v3064, 0
    %3068 = vmatpush.msra.mxu0 0.0
    %3069 = vmatpush.msra.mxu0 0.0
    %3070 = vmatpush.msra.mxu0 0.0
    %3071 = vmatpush.msra.mxu0 0.0
    %3072 = vmatpush.msra.mxu0 0.0
    %3073 = vmatpush.msra.mxu0 0.0
    %3074 = vmatpush.msra.mxu0 0.0
    %3075 = vmatpush.msra.mxu0 0.0
    %3076 = vmatpush.msra.mxu0 0.0
    %3077 = vmatpush.msra.mxu0 0.0
    %3078 = vmatpush.msra.mxu0 0.0
    %3079 = vmatpush.msra.mxu0 0.0
    %3080 = vmatpush.msra.mxu0 0.0
    %3081 = vmatpush.msra.mxu0 0.0
    %3082 = vmatpush.msra.mxu0 %v3019
    %3083 = vmatpush.msra.mxu0 %v3010
    %3084 = vmatmul.f32.gmra.mxu0 %v3066
    %v3085 = vpop.f32.mrf.mxu0
    %v3086 = vadd.f32 0.0, %v3085
    %3087 = vdwg.mxu0
    %3088 = vmatpush.msra.mxu0 0.0
    %3089 = vmatpush.msra.mxu0 0.0
    %3090 = vmatpush.msra.mxu0 0.0
    %3091 = vmatpush.msra.mxu0 0.0
    %3092 = vmatpush.msra.mxu0 0.0
    %3093 = vmatpush.msra.mxu0 0.0
    %3094 = vmatpush.msra.mxu0 0.0
    %3095 = vmatpush.msra.mxu0 0.0
    %3096 = vmatpush.msra.mxu0 0.0
    %3097 = vmatpush.msra.mxu0 0.0
    %3098 = vmatpush.msra.mxu0 0.0
    %3099 = vmatpush.msra.mxu0 0.0
    %3100 = vmatpush.msra.mxu0 0.0
    %3101 = vmatpush.msra.mxu0 0.0
    %3102 = vmatpush.msra.mxu0 %v3022
    %3103 = vmatpush.msra.mxu0 %v3011
    %3104 = vmatmul.f32.gmra.mxu0 %v3066
    %v3105 = vpop.f32.mrf.mxu0
    %v3106 = vadd.f32 0.0, %v3105
    %3107 = vdwg.mxu0
    %v3108 = vmax.f32 %v3042, %v3086
    %v3109 = vmax.f32 %v3062, %v3106
    %v3110 = vld [vmem:[%s8] sm:$0xff]
    %v3111 = vld [vmem:[%s8 + $0x8] sm:$0xff]
    %v3112 = vld [vmem:[%s8 + $0x10] sm:$0xff]
    %v3113 = vld [vmem:[%s8 + $0x18] sm:$0xff]
    %v3114 = vld [vmem:[%s8 + $0x20] sm:$0xff]
    %v3115 = vld [vmem:[%s8 + $0x28] sm:$0xff]
    %v3116 = vld [vmem:[%s8 + $0x30] sm:$0xff]
    %v3117 = vld [vmem:[%s8 + $0x38] sm:$0xff]
    %v3118 = vld [vmem:[%s8 + $0x40] sm:$0xff]
    %v3119 = vld [vmem:[%s8 + $0x48] sm:$0xff]
    %v3120 = vld [vmem:[%s8 + $0x50] sm:$0xff]
    %v3121 = vld [vmem:[%s8 + $0x58] sm:$0xff]
    %v3122 = vld [vmem:[%s8 + $0x60] sm:$0xff]
    %v3123 = vld [vmem:[%s8 + $0x68] sm:$0xff]
    %v3124 = vld [vmem:[%s8 + $0x70] sm:$0xff]
    %v3125 = vld [vmem:[%s8 + $0x78] sm:$0xff]
    %v3126 = vld [vmem:[%s8 + $0x80] sm:$0xff]
    %v3127 = vld [vmem:[%s8 + $0x88] sm:$0xff]
    %v3128 = vld [vmem:[%s8 + $0x90] sm:$0xff]
    %v3129 = vld [vmem:[%s8 + $0x98] sm:$0xff]
    %v3131 = vsel %vm1449, %v3109, 0
    %3133 = vmatpush.msra.mxu0 %v3125
    %3134 = vmatpush.msra.mxu0 %v3124
    %3135 = vmatpush.msra.mxu0 %v3123
    %3136 = vmatpush.msra.mxu0 %v3122
    %3137 = vmatpush.msra.mxu0 %v3121
    %3138 = vmatpush.msra.mxu0 %v3120
    %3139 = vmatpush.msra.mxu0 %v3119
    %3140 = vmatpush.msra.mxu0 %v3118
    %3141 = vmatpush.msra.mxu0 %v3117
    %3142 = vmatpush.msra.mxu0 %v3116
    %3143 = vmatpush.msra.mxu0 %v3115
    %3144 = vmatpush.msra.mxu0 %v3114
    %3145 = vmatpush.msra.mxu0 %v3113
    %3146 = vmatpush.msra.mxu0 %v3112
    %3147 = vmatpush.msra.mxu0 %v3111
    %3148 = vmatpush.msra.mxu0 %v3110
    %3149 = vmatmul.f32.gmra.mxu0 %v3108
    %v3150 = vpop.f32.mrf.mxu0
    %v3151 = vadd.f32 0.0, %v3150
    %3152 = vdwg.mxu0
    %3153 = vmatpush.msra.mxu0 0.0
    %3154 = vmatpush.msra.mxu0 0.0
    %3155 = vmatpush.msra.mxu0 0.0
    %3156 = vmatpush.msra.mxu0 0.0
    %3157 = vmatpush.msra.mxu0 0.0
    %3158 = vmatpush.msra.mxu0 0.0
    %3159 = vmatpush.msra.mxu0 0.0
    %3160 = vmatpush.msra.mxu0 0.0
    %3161 = vmatpush.msra.mxu0 0.0
    %3162 = vmatpush.msra.mxu0 0.0
    %3163 = vmatpush.msra.mxu0 0.0
    %3164 = vmatpush.msra.mxu0 0.0
    %3165 = vmatpush.msra.mxu0 %v3129
    %3166 = vmatpush.msra.mxu0 %v3128
    %3167 = vmatpush.msra.mxu0 %v3127
    %3168 = vmatpush.msra.mxu0 %v3126
    %3169 = vmatmul.f32.gmra.mxu0 %v3131
    %v3170 = vpop.f32.mrf.mxu0
    %v3171 = vadd.f32 %v3151, %v3170
    %3172 = vdwg.mxu0
    %v3173 = vld [vmem:[%s1493] sm:$0xff]
    %v3174 = vld [vmem:[%s1493 + $0x8] sm:$0xff]
    %v3175 = vld [vmem:[%s1493 + $0x10] sm:$0xff]
    %v3176 = vld [vmem:[%s1493 + $0x18] sm:$0xff]
    %v3177 = vld [vmem:[%s1493 + $0x20] sm:$0xff]
    %v3178 = vld [vmem:[%s1493 + $0x28] sm:$0xff]
    %v3179 = vld [vmem:[%s1493 + $0x30] sm:$0xff]
    %v3180 = vld [vmem:[%s1493 + $0x38] sm:$0xff]
    %v3181 = vld [vmem:[%s1493 + $0x40] sm:$0xff]
    %v3182 = vld [vmem:[%s1493 + $0x48] sm:$0xff]
    %v3183 = vld [vmem:[%s1493 + $0x50] sm:$0xff]
    %v3184 = vld [vmem:[%s1493 + $0x58] sm:$0xff]
    %v3185 = vld [vmem:[%s1493 + $0x60] sm:$0xff]
    %v3186 = vld [vmem:[%s1493 + $0x68] sm:$0xff]
    %v3187 = vld [vmem:[%s1493 + $0x70] sm:$0xff]
    %v3188 = vld [vmem:[%s1493 + $0x78] sm:$0xff]
    %v3189 = vld [vmem:[%s1493 + $0x80] sm:$0xff]
    %v3190 = vld [vmem:[%s1493 + $0x88] sm:$0xff]
    %v3191 = vld [vmem:[%s1493 + $0x90] sm:$0xff]
    %v3192 = vld [vmem:[%s1493 + $0x98] sm:$0xff]
    %3193 = vmatpush.msra.mxu0 %v3188
    %3194 = vmatpush.msra.mxu0 %v3187
    %3195 = vmatpush.msra.mxu0 %v3186
    %3196 = vmatpush.msra.mxu0 %v3185
    %3197 = vmatpush.msra.mxu0 %v3184
    %3198 = vmatpush.msra.mxu0 %v3183
    %3199 = vmatpush.msra.mxu0 %v3182
    %3200 = vmatpush.msra.mxu0 %v3181
    %3201 = vmatpush.msra.mxu0 %v3180
    %3202 = vmatpush.msra.mxu0 %v3179
    %3203 = vmatpush.msra.mxu0 %v3178
    %3204 = vmatpush.msra.mxu0 %v3177
    %3205 = vmatpush.msra.mxu0 %v3176
    %3206 = vmatpush.msra.mxu0 %v3175
    %3207 = vmatpush.msra.mxu0 %v3174
    %3208 = vmatpush.msra.mxu0 %v3173
    %3209 = vmatmul.f32.gmra.mxu0 %v3108
    %v3210 = vpop.f32.mrf.mxu0
    %v3211 = vadd.f32 0.0, %v3210
    %3212 = vdwg.mxu0
    %3213 = vmatpush.msra.mxu0 0.0
    %3214 = vmatpush.msra.mxu0 0.0
    %3215 = vmatpush.msra.mxu0 0.0
    %3216 = vmatpush.msra.mxu0 0.0
    %3217 = vmatpush.msra.mxu0 0.0
    %3218 = vmatpush.msra.mxu0 0.0
    %3219 = vmatpush.msra.mxu0 0.0
    %3220 = vmatpush.msra.mxu0 0.0
    %3221 = vmatpush.msra.mxu0 0.0
    %3222 = vmatpush.msra.mxu0 0.0
    %3223 = vmatpush.msra.mxu0 0.0
    %3224 = vmatpush.msra.mxu0 0.0
    %3225 = vmatpush.msra.mxu0 %v3192
    %3226 = vmatpush.msra.mxu0 %v3191
    %3227 = vmatpush.msra.mxu0 %v3190
    %3228 = vmatpush.msra.mxu0 %v3189
    %3229 = vmatmul.f32.gmra.mxu0 %v3131
    %v3230 = vpop.f32.mrf.mxu0
    %v3231 = vadd.f32 %v3211, %v3230
    %3232 = vdwg.mxu0
    %v3233 = vmax.f32 %v3171, %v3231
    %s3234 = scalar_lea.vmem [#allocation3], 8
    %3235 = vst.msk [vmem:[%s3234] sm:$0x1f] %vm1555, %v3233
    %v3236 = vld [vmem:[%s3234] sm:$0x1]
    %v3237 = vld [vmem:[%s9] sm:$0xff]
    %v3238 = vld [vmem:[%s9 + $0x8] sm:$0xff]
    %v3239 = vld [vmem:[%s9 + $0x10] sm:$0xff]
    %v3240 = vld [vmem:[%s9 + $0x18] sm:$0xff]
    %v3241 = vld [vmem:[%s9 + $0x20] sm:$0xff]
    %v3242 = vld [vmem:[%s9 + $0x28] sm:$0xff]
    %v3243 = vld [vmem:[%s9 + $0x30] sm:$0xff]
    %v3244 = vld [vmem:[%s9 + $0x38] sm:$0xff]
    %v3245 = vld [vmem:[%s9 + $0x40] sm:$0xff]
    %v3246 = vld [vmem:[%s9 + $0x48] sm:$0xff]
    %v3248 = vsel %vm1568, %v3236, 0
    %3250 = vmatpush.msra.mxu0 0.0
    %3251 = vmatpush.msra.mxu0 0.0
    %3252 = vmatpush.msra.mxu0 0.0
    %3253 = vmatpush.msra.mxu0 0.0
    %3254 = vmatpush.msra.mxu0 0.0
    %3255 = vmatpush.msra.mxu0 0.0
    %3256 = vmatpush.msra.mxu0 %v3246
    %3257 = vmatpush.msra.mxu0 %v3245
    %3258 = vmatpush.msra.mxu0 %v3244
    %3259 = vmatpush.msra.mxu0 %v3243
    %3260 = vmatpush.msra.mxu0 %v3242
    %3261 = vmatpush.msra.mxu0 %v3241
    %3262 = vmatpush.msra.mxu0 %v3240
    %3263 = vmatpush.msra.mxu0 %v3239
    %3264 = vmatpush.msra.mxu0 %v3238
    %3265 = vmatpush.msra.mxu0 %v3237
    %3266 = vmatmul.f32.gmra.mxu0 %v3248
    %v3267 = vpop.f32.mrf.mxu0
    %v3268 = vadd.f32 0.0, %v3267
    %3269 = vdwg.mxu0
    %v3270 = vadd.f32 %v53, %v3268
    %v3271 = vld [vmem:[%s3234 + $0x1] sm:$0x1]
    %v3272 = vld [vmem:[%s1594] sm:$0xff]
    %v3273 = vld [vmem:[%s1594 + $0x8] sm:$0xff]
    %v3274 = vld [vmem:[%s1594 + $0x10] sm:$0xff]
    %v3275 = vld [vmem:[%s1594 + $0x18] sm:$0xff]
    %v3276 = vld [vmem:[%s1594 + $0x20] sm:$0xff]
    %v3277 = vld [vmem:[%s1594 + $0x28] sm:$0xff]
    %v3278 = vld [vmem:[%s1594 + $0x30] sm:$0xff]
    %v3279 = vld [vmem:[%s1594 + $0x38] sm:$0xff]
    %v3280 = vld [vmem:[%s1594 + $0x40] sm:$0xff]
    %v3281 = vld [vmem:[%s1594 + $0x48] sm:$0xff]
    %v3283 = vsel %vm1568, %v3271, 0
    %3285 = vmatpush.msra.mxu0 0.0
    %3286 = vmatpush.msra.mxu0 0.0
    %3287 = vmatpush.msra.mxu0 0.0
    %3288 = vmatpush.msra.mxu0 0.0
    %3289 = vmatpush.msra.mxu0 0.0
    %3290 = vmatpush.msra.mxu0 0.0
    %3291 = vmatpush.msra.mxu0 %v3281
    %3292 = vmatpush.msra.mxu0 %v3280
    %3293 = vmatpush.msra.mxu0 %v3279
    %3294 = vmatpush.msra.mxu0 %v3278
    %3295 = vmatpush.msra.mxu0 %v3277
    %3296 = vmatpush.msra.mxu0 %v3276
    %3297 = vmatpush.msra.mxu0 %v3275
    %3298 = vmatpush.msra.mxu0 %v3274
    %3299 = vmatpush.msra.mxu0 %v3273
    %3300 = vmatpush.msra.mxu0 %v3272
    %3301 = vmatmul.f32.gmra.mxu0 %v3283
    %v3302 = vpop.f32.mrf.mxu0
    %v3303 = vadd.f32 0.0, %v3302
    %3304 = vdwg.mxu0
    %v3305 = vadd.f32 %v3270, %v3303
    %v3306 = vld [vmem:[%s3234 + $0x2] sm:$0x1]
    %v3307 = vld [vmem:[%s1630] sm:$0xff]
    %v3308 = vld [vmem:[%s1630 + $0x8] sm:$0xff]
    %v3309 = vld [vmem:[%s1630 + $0x10] sm:$0xff]
    %v3310 = vld [vmem:[%s1630 + $0x18] sm:$0xff]
    %v3311 = vld [vmem:[%s1630 + $0x20] sm:$0xff]
    %v3312 = vld [vmem:[%s1630 + $0x28] sm:$0xff]
    %v3313 = vld [vmem:[%s1630 + $0x30] sm:$0xff]
    %v3314 = vld [vmem:[%s1630 + $0x38] sm:$0xff]
    %v3315 = vld [vmem:[%s1630 + $0x40] sm:$0xff]
    %v3316 = vld [vmem:[%s1630 + $0x48] sm:$0xff]
    %v3318 = vsel %vm1568, %v3306, 0
    %3320 = vmatpush.msra.mxu0 0.0
    %3321 = vmatpush.msra.mxu0 0.0
    %3322 = vmatpush.msra.mxu0 0.0
    %3323 = vmatpush.msra.mxu0 0.0
    %3324 = vmatpush.msra.mxu0 0.0
    %3325 = vmatpush.msra.mxu0 0.0
    %3326 = vmatpush.msra.mxu0 %v3316
    %3327 = vmatpush.msra.mxu0 %v3315
    %3328 = vmatpush.msra.mxu0 %v3314
    %3329 = vmatpush.msra.mxu0 %v3313
    %3330 = vmatpush.msra.mxu0 %v3312
    %3331 = vmatpush.msra.mxu0 %v3311
    %3332 = vmatpush.msra.mxu0 %v3310
    %3333 = vmatpush.msra.mxu0 %v3309
    %3334 = vmatpush.msra.mxu0 %v3308
    %3335 = vmatpush.msra.mxu0 %v3307
    %3336 = vmatmul.f32.gmra.mxu0 %v3318
    %v3337 = vpop.f32.mrf.mxu0
    %v3338 = vadd.f32 0.0, %v3337
    %3339 = vdwg.mxu0
    %v3340 = vadd.f32 %v3305, %v3338
    %v3341 = vld [vmem:[%s3234 + $0x3] sm:$0x1]
    %v3342 = vld [vmem:[%s1666] sm:$0xff]
    %v3343 = vld [vmem:[%s1666 + $0x8] sm:$0xff]
    %v3344 = vld [vmem:[%s1666 + $0x10] sm:$0xff]
    %v3345 = vld [vmem:[%s1666 + $0x18] sm:$0xff]
    %v3346 = vld [vmem:[%s1666 + $0x20] sm:$0xff]
    %v3347 = vld [vmem:[%s1666 + $0x28] sm:$0xff]
    %v3348 = vld [vmem:[%s1666 + $0x30] sm:$0xff]
    %v3349 = vld [vmem:[%s1666 + $0x38] sm:$0xff]
    %v3350 = vld [vmem:[%s1666 + $0x40] sm:$0xff]
    %v3351 = vld [vmem:[%s1666 + $0x48] sm:$0xff]
    %v3353 = vsel %vm1568, %v3341, 0
    %3355 = vmatpush.msra.mxu0 0.0
    %3356 = vmatpush.msra.mxu0 0.0
    %3357 = vmatpush.msra.mxu0 0.0
    %3358 = vmatpush.msra.mxu0 0.0
    %3359 = vmatpush.msra.mxu0 0.0
    %3360 = vmatpush.msra.mxu0 0.0
    %3361 = vmatpush.msra.mxu0 %v3351
    %3362 = vmatpush.msra.mxu0 %v3350
    %3363 = vmatpush.msra.mxu0 %v3349
    %3364 = vmatpush.msra.mxu0 %v3348
    %3365 = vmatpush.msra.mxu0 %v3347
    %3366 = vmatpush.msra.mxu0 %v3346
    %3367 = vmatpush.msra.mxu0 %v3345
    %3368 = vmatpush.msra.mxu0 %v3344
    %3369 = vmatpush.msra.mxu0 %v3343
    %3370 = vmatpush.msra.mxu0 %v3342
    %3371 = vmatmul.f32.gmra.mxu0 %v3353
    %v3372 = vpop.f32.mrf.mxu0
    %v3373 = vadd.f32 0.0, %v3372
    %3374 = vdwg.mxu0
    %v3375 = vadd.f32 %v3340, %v3373
    %v3376 = vld [vmem:[%s3234 + $0x4] sm:$0x1]
    %v3377 = vld [vmem:[%s1702] sm:$0xff]
    %v3378 = vld [vmem:[%s1702 + $0x8] sm:$0xff]
    %v3379 = vld [vmem:[%s1702 + $0x10] sm:$0xff]
    %v3380 = vld [vmem:[%s1702 + $0x18] sm:$0xff]
    %v3381 = vld [vmem:[%s1702 + $0x20] sm:$0xff]
    %v3382 = vld [vmem:[%s1702 + $0x28] sm:$0xff]
    %v3383 = vld [vmem:[%s1702 + $0x30] sm:$0xff]
    %v3384 = vld [vmem:[%s1702 + $0x38] sm:$0xff]
    %v3385 = vld [vmem:[%s1702 + $0x40] sm:$0xff]
    %v3386 = vld [vmem:[%s1702 + $0x48] sm:$0xff]
    %v3388 = vsel %vm1568, %v3376, 0
    %3390 = vmatpush.msra.mxu0 0.0
    %3391 = vmatpush.msra.mxu0 0.0
    %3392 = vmatpush.msra.mxu0 0.0
    %3393 = vmatpush.msra.mxu0 0.0
    %3394 = vmatpush.msra.mxu0 0.0
    %3395 = vmatpush.msra.mxu0 0.0
    %3396 = vmatpush.msra.mxu0 %v3386
    %3397 = vmatpush.msra.mxu0 %v3385
    %3398 = vmatpush.msra.mxu0 %v3384
    %3399 = vmatpush.msra.mxu0 %v3383
    %3400 = vmatpush.msra.mxu0 %v3382
    %3401 = vmatpush.msra.mxu0 %v3381
    %3402 = vmatpush.msra.mxu0 %v3380
    %3403 = vmatpush.msra.mxu0 %v3379
    %3404 = vmatpush.msra.mxu0 %v3378
    %3405 = vmatpush.msra.mxu0 %v3377
    %3406 = vmatmul.f32.gmra.mxu0 %v3388
    %v3407 = vpop.f32.mrf.mxu0
    %v3408 = vadd.f32 0.0, %v3407
    %3409 = vdwg.mxu0
    %v3410 = vadd.f32 %v3375, %v3408
    %v3411 = vmax.f32 %v3410, 0.0
    %v3413 = vsel %vm1738, %v3411, 0
    %3415 = vmatpush.msra.mxu0 0.0
    %3416 = vmatpush.msra.mxu0 %v70
    %3417 = vmatpush.msra.mxu0 %v69
    %3418 = vmatpush.msra.mxu0 %v68
    %3419 = vmatpush.msra.mxu0 %v67
    %3420 = vmatpush.msra.mxu0 %v66
    %3421 = vmatpush.msra.mxu0 %v65
    %3422 = vmatpush.msra.mxu0 %v64
    %3423 = vmatpush.msra.mxu0 %v63
    %3424 = vmatpush.msra.mxu0 %v62
    %3425 = vmatpush.msra.mxu0 %v61
    %3426 = vmatpush.msra.mxu0 %v60
    %3427 = vmatpush.msra.mxu0 %v59
    %3428 = vmatpush.msra.mxu0 %v58
    %3429 = vmatpush.msra.mxu0 %v57
    %3430 = vmatpush.msra.mxu0 %v56
    %3431 = vmatmul.f32.gmra.mxu0 %v3413
    %v3432 = vpop.f32.mrf.mxu0
    %v3433 = vadd.f32 %v54, %v3432
    %3434 = vdwg.mxu0
    %v3435 = vmax.f32 %v3433, 0.0
    %v3437 = vsel %vm887, %v3435, 0
    %3439 = vmatpush.msra.mxu0 0.0
    %3440 = vmatpush.msra.mxu0 0.0
    %3441 = vmatpush.msra.mxu0 0.0
    %3442 = vmatpush.msra.mxu0 0.0
    %3443 = vmatpush.msra.mxu0 0.0
    %3444 = vmatpush.msra.mxu0 %v1767
    %3445 = vmatpush.msra.mxu0 %v80
    %3446 = vmatpush.msra.mxu0 %v79
    %3447 = vmatpush.msra.mxu0 %v78
    %3448 = vmatpush.msra.mxu0 %v77
    %3449 = vmatpush.msra.mxu0 %v76
    %3450 = vmatpush.msra.mxu0 %v75
    %3451 = vmatpush.msra.mxu0 %v74
    %3452 = vmatpush.msra.mxu0 %v73
    %3453 = vmatpush.msra.mxu0 %v72
    %3454 = vmatpush.msra.mxu0 %v71
    %3455 = vmatmul.f32.gmra.mxu0 %v3437
    %v3456 = vpop.f32.mrf.mxu0
    %v3457 = vadd.f32 %v55, %v3456
    %3458 = vdwg.mxu0
    %3459 = vst [vmem:[#allocation4 + $0x1] sm:$0x1] %v3457
    // Predicated region
    $region62: #{lenet5_forward.1} parent=1 // pred_check
      _
    $region63: #{lenet5_forward.1} parent=1 // pred_check_branch
      %3461 = sbr.rel (0) target = $region65
    $region64: #{lenet5_forward.1} parent=1 // pred_region
      %3463 = vsyncadd [#allocation5], 0
      %s3465 = sshll.u32 [#allocation4], 4
      %s3466 = int_to_ptr.vmem [resolvable:$true] %s3465
      %s3467 = sshll.u32 %s15, 4
      %s3468 = int_to_ptr.hbm [resolvable:$true] %s3467
      %3470 = dma.vmem_to_hbm [thread:$0]  %s3466, 32, %s3468, [#allocation5]
    $region65: #{lenet5_forward.1} parent=1 // pred_fallthru
      _
    // Predicated region
    $region66: #{lenet5_forward.1} parent=1 // pred_check
      _
    $region67: #{lenet5_forward.1} parent=1 // pred_check_branch
      %3472 = sbr.rel (0) target = $region69
    $region68: #{lenet5_forward.1} parent=1 // pred_region
      %3474 = dma.done [#allocation5], 32
    $region69: #{lenet5_forward.1} parent=1 // pred_fallthru
      _
    %3475 = vsyncpa [#allocation5], 1

</llo_original>
